<compile_context>
chip_gen: v7x
topology: tpu7x:2x2x1
jax: 0.10.0
libtpu: 0.0.40
codegen_flags: <defaults>
</compile_context>

<pallas_src>
import functools

import jax
import jax.numpy as jnp
from jax.experimental import pallas as pl
from jax.experimental.pallas import tpu as pltpu


def _round_up(x, m):
    return ((x + m - 1) // m) * m


# ---------------------------------------------------------------------------
# Kernel
# ---------------------------------------------------------------------------
def _resblock_kernel(K, Wp, Mout,
                     xp_ref, mask_ref,
                     wa1_ref, ba1_ref, wak_ref, ba2_ref,
                     wbk_ref, bb1_ref, wcat_ref, bcat_ref,
                     out_ref):
    """Whole ResBlock for one batch element, spatial-minor layout.

    xp_ref  : (1, C_in, Mflat)  channels on sublanes, flattened zero-padded spatial
              grid (Hp*Wp, zero-extended to Mflat) on lanes.
    mask_ref: (1, Mflat)        1.0 at interior (non-halo) positions, else 0.0.
    wa1 (inner_p, C_in)          ba1 (inner_p, 1)   branch-a leading 1x1 (+folded BN)
    wak (K*K, inner_p, inner_p)  ba2 (inner_p, 1)   branch-a kxk conv taps
    wbk (K*K, C_bp, C_in)        bb1 (C_bp, 1)      branch-b kxk conv taps
    wcat (C_out_p, inner_p+C_bp) bcat (C_out_p, 1)  fused trailing 1x1 convs [a | b]
    out_ref: (1, C_out_p, Mout)  dense stride-1 result on the padded flat grid;
             the wrapper crops the (stride-)valid positions.
    """
    xp = xp_ref[0]                                              # (C_in, Mflat)

    # Branch-a head: 1x1 conv (+folded BN) + ReLU on the padded flat grid; the mask
    # zeroes the halo so the following kxk conv sees a zero-padded activation.
    h1 = jnp.maximum(
        jnp.dot(wa1_ref[...], xp, preferred_element_type=jnp.float32) + ba1_ref[...],
        0.0) * mask_ref[...]                                    # (inner_p, Mflat)

    def conv_kxk(v, w_ref, b_ref):
        # Dense stride-1 kxk conv on the flat grid via per-tap MXU accumulation.
        # Tap (dy, dx) for output base position q lives at flat index q + dy*Wp + dx.
        cout = w_ref.shape[1]
        acc = jnp.zeros((cout, Mout), jnp.float32) + b_ref[...]
        for t in range(K * K):
            off = (t // K) * Wp + (t % K)
            tap = jax.lax.slice(v, (0, off), (v.shape[0], off + Mout))
            acc = acc + jnp.dot(w_ref[t], tap, preferred_element_type=jnp.float32)
        return jnp.maximum(acc, 0.0)

    h2 = conv_kxk(h1, wak_ref, ba2_ref)                         # (inner_p, Mout)
    g1 = conv_kxk(xp, wbk_ref, bb1_ref)                         # (C_bp, Mout)

    # Fused trailing 1x1 convs (+folded BN) of both branches + residual add + ReLU:
    # weights stacked along the contraction axis, biases pre-summed in the wrapper.
    hg = jnp.concatenate([h2, g1], axis=0)                      # cheap sublane stack
    out = jnp.dot(wcat_ref[...], hg, preferred_element_type=jnp.float32) + bcat_ref[...]
    out_ref[0] = jnp.maximum(out, 0.0)


# ---------------------------------------------------------------------------
# Wrapper
# ---------------------------------------------------------------------------
@functools.partial(jax.jit, static_argnames=("kernel_size", "stride"))
def resblock_forward(x_nchw, params, *, kernel_size, stride):
    pad = {1: 0, 3: 1, 5: 2, 7: 3}[kernel_size]
    K, S, P = kernel_size, stride, pad
    N, C_in, H, W = x_nchw.shape
    inner = params["wa1"].shape[-1]
    C_out = params["wa3"].shape[-1]

    Hp, Wp = H + 2 * P, W + 2 * P
    Ho = (Hp - K) // S + 1
    Wo = (Wp - K) // S + 1

    # Flat spatial-minor geometry: lanes carry the flattened padded grid.
    Mout = _round_up(Hp * Wp, 128)                      # lane-dense compute/store extent
    Mflat = _round_up(Mout + (K - 1) * (Wp + 1), 128)   # + max tap offset head-room

    inner_p = _round_up(inner, 8)
    C_bp = _round_up(C_in, 8)
    C_out_p = _round_up(C_out, 8)

    # NCHW is already channel-on-sublanes / spatial-minor: zero-pad the halo and
    # flatten the padded grid onto lanes.  No transposes needed in either direction.
    x = x_nchw.astype(jnp.float32)
    xp = jnp.pad(x, ((0, 0), (0, 0), (P, P), (P, P))).reshape(N, C_in, Hp * Wp)
    xp = jnp.pad(xp, ((0, 0), (0, 0), (0, Mflat - Hp * Wp)))

    # Interior mask for the branch-a activation (resident in VMEM, built once).
    q = jnp.arange(Hp * Wp)
    r, c = q // Wp, q % Wp
    interior = ((r >= P) & (r < P + H) & (c >= P) & (c < P + W)).astype(jnp.float32)
    mask = jnp.pad(interior, (0, Mflat - Hp * Wp)).reshape(1, Mflat)

    # Weights in flipped (Cout, Cin) layout, sublane-padded.  kxk weights become
    # (K*K, Cout_p, Cin) tap stacks; the two trailing 1x1 convs are fused into one
    # matmul with stacked weights and a pre-summed bias.
    wa1_f = jnp.pad(params["wa1"].T, ((0, inner_p - inner), (0, 0)))
    ba1_f = jnp.pad(params["ba1"].reshape(-1, 1), ((0, inner_p - inner), (0, 0)))

    wak_f = jnp.transpose(params["wak"], (0, 1, 3, 2)).reshape(K * K, inner, inner)
    wak_f = jnp.pad(wak_f, ((0, 0), (0, inner_p - inner), (0, inner_p - inner)))
    ba2_f = jnp.pad(params["ba2"].reshape(-1, 1), ((0, inner_p - inner), (0, 0)))

    wbk_f = jnp.transpose(params["wbk"], (0, 1, 3, 2)).reshape(K * K, C_in, C_in)
    wbk_f = jnp.pad(wbk_f, ((0, 0), (0, C_bp - C_in), (0, 0)))
    bb1_f = jnp.pad(params["bb1"].reshape(-1, 1), ((0, C_bp - C_in), (0, 0)))

    wa3_f = jnp.pad(params["wa3"].T, ((0, C_out_p - C_out), (0, inner_p - inner)))
    wb2_f = jnp.pad(params["wb2"].T, ((0, C_out_p - C_out), (0, C_bp - C_in)))
    wcat = jnp.concatenate([wa3_f, wb2_f], axis=1)             # (C_out_p, inner_p+C_bp)
    bcat = jnp.pad((params["ba3"] + params["bb2"]).reshape(-1, 1),
                   ((0, C_out_p - C_out), (0, 0)))             # (C_out_p, 1)

    # Weights/biases/mask: full-array blocks, constant index_map (resident in VMEM).
    def full(arr):
        nd = arr.ndim
        return pl.BlockSpec(arr.shape, lambda n, _nd=nd: (0,) * _nd)

    kernel = functools.partial(_resblock_kernel, K, Wp, Mout)
    out_flat = pl.pallas_call(
        kernel,
        out_shape=jax.ShapeDtypeStruct((N, C_out_p, Mout), jnp.float32),
        grid=(N,),                                  # batch axis (megacore on v7x)
        in_specs=[
            pl.BlockSpec((1, C_in, Mflat), lambda n: (n, 0, 0)),
            full(mask),
            full(wa1_f), full(ba1_f), full(wak_f), full(ba2_f),
            full(wbk_f), full(bb1_f), full(wcat), full(bcat),
        ],
        out_specs=pl.BlockSpec((1, C_out_p, Mout), lambda n: (n, 0, 0)),
        compiler_params=pltpu.CompilerParams(
            dimension_semantics=("parallel",),
            vmem_limit_bytes=32 * 1024 * 1024,
        ),
    )(xp, mask, wa1_f, ba1_f, wak_f, ba2_f, wbk_f, bb1_f, wcat, bcat)

    # Crop: the kernel computed the dense (stride-1) result on the padded flat grid;
    # valid outputs sit at rows i*S and columns j*S of the padded grid.
    out = out_flat[:, :C_out, :Hp * Wp].reshape(N, C_out, Hp, Wp)
    out = out[:, :, 0:(Ho - 1) * S + 1:S, 0:(Wo - 1) * S + 1:S]
    return out                                                  # already NCHW


# ---------------------------------------------------------------------------
# Deterministic synthetic parameters (conv weights + eval-mode BN, folded)
# ---------------------------------------------------------------------------
def make_params(key, C_in, C_out, kernel_size, expansion):
    inner = int(C_in * expansion)
    if inner == 0:
        inner = 1
    keys = jax.random.split(key, 10)

    def conv_w(k, cout, cin, kh, kw):
        fan_in = cin * kh * kw
        w = jax.random.normal(k, (cout, cin, kh, kw), jnp.float32) / jnp.sqrt(fan_in)
        return jnp.transpose(w, (2, 3, 1, 0))  # OIHW -> HWIO

    def bn(k, c):
        k1, k2, k3, k4 = jax.random.split(k, 4)
        gamma = 1.0 + 0.1 * jax.random.normal(k1, (c,), jnp.float32)
        beta = 0.1 * jax.random.normal(k2, (c,), jnp.float32)
        mean = 0.1 * jax.random.normal(k3, (c,), jnp.float32)
        var = jnp.abs(jax.random.normal(k4, (c,), jnp.float32)) + 0.5
        return gamma, beta, mean, var

    def fold(w_hwio, bn_params, eps=1e-5):
        gamma, beta, mean, var = bn_params
        scale = gamma / jnp.sqrt(var + eps)
        return w_hwio * scale, (beta - mean * scale).reshape(1, -1)

    wa1, ba1 = fold(conv_w(keys[0], inner, C_in, 1, 1), bn(keys[1], inner))
    wak, ba2 = fold(conv_w(keys[2], inner, inner, kernel_size, kernel_size), bn(keys[3], inner))
    wa3, ba3 = fold(conv_w(keys[4], C_out, inner, 1, 1), bn(keys[5], C_out))
    wbk, bb1 = fold(conv_w(keys[6], C_in, C_in, kernel_size, kernel_size), bn(keys[7], C_in))
    wb2, bb2 = fold(conv_w(keys[8], C_out, C_in, 1, 1), bn(keys[9], C_out))

    return dict(wa1=wa1[0, 0], ba1=ba1,      # (C_in, inner), (1, inner)
                wak=wak, ba2=ba2,            # (k, k, inner, inner), (1, inner)
                wa3=wa3[0, 0], ba3=ba3,      # (inner, C_out), (1, C_out)
                wbk=wbk, bb1=bb1,            # (k, k, C_in, C_in), (1, C_in)
                wb2=wb2[0, 0], bb2=bb2)      # (C_in, C_out), (1, C_out)


# ---------------------------------------------------------------------------
# Pure-JAX reference (for a correctness check)
# ---------------------------------------------------------------------------
def ref_forward(x_nchw, p, kernel_size, stride):
    pad = {1: 0, 3: 1, 5: 2, 7: 3}[kernel_size]
    x = jnp.transpose(x_nchw, (0, 2, 3, 1)).astype(jnp.float32)

    def conv(v, w, s, pd):
        return jax.lax.conv_general_dilated(
            v, w, (s, s), [(pd, pd), (pd, pd)],
            dimension_numbers=("NHWC", "HWIO", "NHWC"))

    a = jax.nn.relu(conv(x, p["wa1"][None, None], 1, 0) + p["ba1"])
    a = jax.nn.relu(conv(a, p["wak"], stride, pad) + p["ba2"])
    a = conv(a, p["wa3"][None, None], 1, 0) + p["ba3"]
    b = jax.nn.relu(conv(x, p["wbk"], stride, pad) + p["bb1"])
    b = conv(b, p["wb2"][None, None], 1, 0) + p["bb2"]
    out = jax.nn.relu(a + b)
    return jnp.transpose(out, (0, 3, 1, 2))


if __name__ == "__main__":
    # Matches ResBlock(C_in=4, C_out=8, kernel_size=3, stride, expansion=2, bn=True)
    C_in, C_out, kernel_size, expansion = 4, 8, 3, 2.0
    key = jax.random.PRNGKey(0)
    kx, kp = jax.random.split(key)

    x = jax.random.normal(kx, (2, C_in, 16, 16), jnp.float32)   # NCHW, like PyTorch
    params = make_params(kp, C_in, C_out, kernel_size, expansion)

    for stride in (1, 2):
        y = resblock_forward(x, params, kernel_size=kernel_size, stride=stride)
        y = jax.block_until_ready(y)
        y_ref = ref_forward(x, params, kernel_size, stride)
        assert y.shape == y_ref.shape, (stride, y.shape, y_ref.shape)
        max_err = float(jnp.max(jnp.abs(y - y_ref)))
        assert max_err < 1e-3, f"stride={stride} max abs error {max_err}"

    print("KERNEL_OK")
</pallas_src>

<mosaic_0001>
module attributes {stable_mosaic.version = 11 : i64} {
  func.func @_resblock_kernel(%arg0: i32, %arg1: memref<1x4x512xf32, #tpu.memory_space<vmem>>, %arg2: memref<1x512xf32, #tpu.memory_space<vmem>>, %arg3: memref<8x4xf32, #tpu.memory_space<vmem>>, %arg4: memref<8x1xf32, #tpu.memory_space<vmem>>, %arg5: memref<9x8x8xf32, #tpu.memory_space<vmem>>, %arg6: memref<8x1xf32, #tpu.memory_space<vmem>>, %arg7: memref<9x8x4xf32, #tpu.memory_space<vmem>>, %arg8: memref<8x1xf32, #tpu.memory_space<vmem>>, %arg9: memref<8x16xf32, #tpu.memory_space<vmem>>, %arg10: memref<8x1xf32, #tpu.memory_space<vmem>>, %arg11: memref<1x8x384xf32, #tpu.memory_space<vmem>>) attributes {dimension_semantics = [#tpu.dimension_semantics<parallel>], iteration_bounds = array<i64: 2>, scalar_prefetch = 0 : i64, scratch_operands = 0 : i64, tpu.core_type = #tpu.core_type<tc>, window_params = [{transform_indices = @transform_0, window_bounds = array<i64: 1, 4, 512>}, {pipeline_mode = #tpu.pipeline_mode<synchronous>, transform_indices = @transform_1, window_bounds = array<i64: 1, 512>}, {pipeline_mode = #tpu.pipeline_mode<synchronous>, transform_indices = @transform_2, window_bounds = array<i64: 8, 4>}, {pipeline_mode = #tpu.pipeline_mode<synchronous>, transform_indices = @transform_3, window_bounds = array<i64: 8, 1>}, {pipeline_mode = #tpu.pipeline_mode<synchronous>, transform_indices = @transform_4, window_bounds = array<i64: 9, 8, 8>}, {pipeline_mode = #tpu.pipeline_mode<synchronous>, transform_indices = @transform_5, window_bounds = array<i64: 8, 1>}, {pipeline_mode = #tpu.pipeline_mode<synchronous>, transform_indices = @transform_6, window_bounds = array<i64: 9, 8, 4>}, {pipeline_mode = #tpu.pipeline_mode<synchronous>, transform_indices = @transform_7, window_bounds = array<i64: 8, 1>}, {pipeline_mode = #tpu.pipeline_mode<synchronous>, transform_indices = @transform_8, window_bounds = array<i64: 8, 16>}, {pipeline_mode = #tpu.pipeline_mode<synchronous>, transform_indices = @transform_9, window_bounds = array<i64: 8, 1>}, {transform_indices = @transform_10, window_bounds = array<i64: 1, 8, 384>}]} {
    %c0 = arith.constant 0 : index
    %c0_0 = arith.constant 0 : index
    %c0_1 = arith.constant 0 : index
    %0 = vector.load %arg1[%c0, %c0_0, %c0_1] : memref<1x4x512xf32, #tpu.memory_space<vmem>>, vector<1x4x512xf32>
    %1 = vector.shape_cast %0 : vector<1x4x512xf32> to vector<4x512xf32>
    %c0_2 = arith.constant 0 : index
    %c0_3 = arith.constant 0 : index
    %2 = vector.load %arg3[%c0_2, %c0_3] : memref<8x4xf32, #tpu.memory_space<vmem>>, vector<8x4xf32>
    %cst = arith.constant dense<0.000000e+00> : vector<8x512xf32>
    %3 = tpu.matmul %2, %1, %cst {dimension_numbers = #tpu.dot_dimension_numbers<[1], [0], [0], [1], [0, 0, 1, 1], [], []>} : vector<8x4xf32>, vector<4x512xf32>, vector<8x512xf32> -> vector<8x512xf32>
    %c0_4 = arith.constant 0 : index
    %c0_5 = arith.constant 0 : index
    %4 = vector.load %arg4[%c0_4, %c0_5] : memref<8x1xf32, #tpu.memory_space<vmem>>, vector<8x1xf32>
    %5 = vector.broadcast %4 : vector<8x1xf32> to vector<8x512xf32>
    %6 = arith.addf %3, %5 : vector<8x512xf32>
    %cst_6 = arith.constant 0.000000e+00 : f32
    %7 = vector.broadcast %cst_6 : f32 to vector<8x512xf32>
    %8 = arith.maximumf %6, %7 : vector<8x512xf32>
    %c0_7 = arith.constant 0 : index
    %c0_8 = arith.constant 0 : index
    %9 = vector.load %arg2[%c0_7, %c0_8] : memref<1x512xf32, #tpu.memory_space<vmem>>, vector<1x512xf32>
    %10 = vector.broadcast %9 : vector<1x512xf32> to vector<8x512xf32>
    %11 = arith.mulf %8, %10 : vector<8x512xf32>
    %cst_9 = arith.constant 0.000000e+00 : f32
    %12 = vector.broadcast %cst_9 : f32 to vector<8x384xf32>
    %c0_10 = arith.constant 0 : index
    %c0_11 = arith.constant 0 : index
    %13 = vector.load %arg6[%c0_10, %c0_11] : memref<8x1xf32, #tpu.memory_space<vmem>>, vector<8x1xf32>
    %14 = vector.broadcast %13 : vector<8x1xf32> to vector<8x384xf32>
    %15 = arith.addf %12, %14 : vector<8x384xf32>
    %16 = vector.extract_strided_slice %11 {offsets = [0, 0], sizes = [8, 384], strides = [1, 1]} : vector<8x512xf32> to vector<8x384xf32>
    %c0_12 = arith.constant 0 : index
    %c0_13 = arith.constant 0 : index
    %c0_14 = arith.constant 0 : index
    %17 = vector.load %arg5[%c0_12, %c0_13, %c0_14] : memref<9x8x8xf32, #tpu.memory_space<vmem>>, vector<1x8x8xf32>
    %18 = vector.shape_cast %17 : vector<1x8x8xf32> to vector<8x8xf32>
    %cst_15 = arith.constant dense<0.000000e+00> : vector<8x384xf32>
    %19 = tpu.matmul %18, %16, %cst_15 {dimension_numbers = #tpu.dot_dimension_numbers<[1], [0], [0], [1], [0, 0, 1, 1], [], []>} : vector<8x8xf32>, vector<8x384xf32>, vector<8x384xf32> -> vector<8x384xf32>
    %20 = arith.addf %15, %19 : vector<8x384xf32>
    %21 = vector.extract_strided_slice %11 {offsets = [0, 1], sizes = [8, 384], strides = [1, 1]} : vector<8x512xf32> to vector<8x384xf32>
    %c1 = arith.constant 1 : index
    %c0_16 = arith.constant 0 : index
    %c0_17 = arith.constant 0 : index
    %22 = vector.load %arg5[%c1, %c0_16, %c0_17] : memref<9x8x8xf32, #tpu.memory_space<vmem>>, vector<1x8x8xf32>
    %23 = vector.shape_cast %22 : vector<1x8x8xf32> to vector<8x8xf32>
    %cst_18 = arith.constant dense<0.000000e+00> : vector<8x384xf32>
    %24 = tpu.matmul %23, %21, %cst_18 {dimension_numbers = #tpu.dot_dimension_numbers<[1], [0], [0], [1], [0, 0, 1, 1], [], []>} : vector<8x8xf32>, vector<8x384xf32>, vector<8x384xf32> -> vector<8x384xf32>
    %25 = arith.addf %20, %24 : vector<8x384xf32>
    %26 = vector.extract_strided_slice %11 {offsets = [0, 2], sizes = [8, 384], strides = [1, 1]} : vector<8x512xf32> to vector<8x384xf32>
    %c2 = arith.constant 2 : index
    %c0_19 = arith.constant 0 : index
    %c0_20 = arith.constant 0 : index
    %27 = vector.load %arg5[%c2, %c0_19, %c0_20] : memref<9x8x8xf32, #tpu.memory_space<vmem>>, vector<1x8x8xf32>
    %28 = vector.shape_cast %27 : vector<1x8x8xf32> to vector<8x8xf32>
    %cst_21 = arith.constant dense<0.000000e+00> : vector<8x384xf32>
    %29 = tpu.matmul %28, %26, %cst_21 {dimension_numbers = #tpu.dot_dimension_numbers<[1], [0], [0], [1], [0, 0, 1, 1], [], []>} : vector<8x8xf32>, vector<8x384xf32>, vector<8x384xf32> -> vector<8x384xf32>
    %30 = arith.addf %25, %29 : vector<8x384xf32>
    %31 = vector.extract_strided_slice %11 {offsets = [0, 18], sizes = [8, 384], strides = [1, 1]} : vector<8x512xf32> to vector<8x384xf32>
    %c3 = arith.constant 3 : index
    %c0_22 = arith.constant 0 : index
    %c0_23 = arith.constant 0 : index
    %32 = vector.load %arg5[%c3, %c0_22, %c0_23] : memref<9x8x8xf32, #tpu.memory_space<vmem>>, vector<1x8x8xf32>
    %33 = vector.shape_cast %32 : vector<1x8x8xf32> to vector<8x8xf32>
    %cst_24 = arith.constant dense<0.000000e+00> : vector<8x384xf32>
    %34 = tpu.matmul %33, %31, %cst_24 {dimension_numbers = #tpu.dot_dimension_numbers<[1], [0], [0], [1], [0, 0, 1, 1], [], []>} : vector<8x8xf32>, vector<8x384xf32>, vector<8x384xf32> -> vector<8x384xf32>
    %35 = arith.addf %30, %34 : vector<8x384xf32>
    %36 = vector.extract_strided_slice %11 {offsets = [0, 19], sizes = [8, 384], strides = [1, 1]} : vector<8x512xf32> to vector<8x384xf32>
    %c4 = arith.constant 4 : index
    %c0_25 = arith.constant 0 : index
    %c0_26 = arith.constant 0 : index
    %37 = vector.load %arg5[%c4, %c0_25, %c0_26] : memref<9x8x8xf32, #tpu.memory_space<vmem>>, vector<1x8x8xf32>
    %38 = vector.shape_cast %37 : vector<1x8x8xf32> to vector<8x8xf32>
    %cst_27 = arith.constant dense<0.000000e+00> : vector<8x384xf32>
    %39 = tpu.matmul %38, %36, %cst_27 {dimension_numbers = #tpu.dot_dimension_numbers<[1], [0], [0], [1], [0, 0, 1, 1], [], []>} : vector<8x8xf32>, vector<8x384xf32>, vector<8x384xf32> -> vector<8x384xf32>
    %40 = arith.addf %35, %39 : vector<8x384xf32>
    %41 = vector.extract_strided_slice %11 {offsets = [0, 20], sizes = [8, 384], strides = [1, 1]} : vector<8x512xf32> to vector<8x384xf32>
    %c5 = arith.constant 5 : index
    %c0_28 = arith.constant 0 : index
    %c0_29 = arith.constant 0 : index
    %42 = vector.load %arg5[%c5, %c0_28, %c0_29] : memref<9x8x8xf32, #tpu.memory_space<vmem>>, vector<1x8x8xf32>
    %43 = vector.shape_cast %42 : vector<1x8x8xf32> to vector<8x8xf32>
    %cst_30 = arith.constant dense<0.000000e+00> : vector<8x384xf32>
    %44 = tpu.matmul %43, %41, %cst_30 {dimension_numbers = #tpu.dot_dimension_numbers<[1], [0], [0], [1], [0, 0, 1, 1], [], []>} : vector<8x8xf32>, vector<8x384xf32>, vector<8x384xf32> -> vector<8x384xf32>
    %45 = arith.addf %40, %44 : vector<8x384xf32>
    %46 = vector.extract_strided_slice %11 {offsets = [0, 36], sizes = [8, 384], strides = [1, 1]} : vector<8x512xf32> to vector<8x384xf32>
    %c6 = arith.constant 6 : index
    %c0_31 = arith.constant 0 : index
    %c0_32 = arith.constant 0 : index
    %47 = vector.load %arg5[%c6, %c0_31, %c0_32] : memref<9x8x8xf32, #tpu.memory_space<vmem>>, vector<1x8x8xf32>
    %48 = vector.shape_cast %47 : vector<1x8x8xf32> to vector<8x8xf32>
    %cst_33 = arith.constant dense<0.000000e+00> : vector<8x384xf32>
    %49 = tpu.matmul %48, %46, %cst_33 {dimension_numbers = #tpu.dot_dimension_numbers<[1], [0], [0], [1], [0, 0, 1, 1], [], []>} : vector<8x8xf32>, vector<8x384xf32>, vector<8x384xf32> -> vector<8x384xf32>
    %50 = arith.addf %45, %49 : vector<8x384xf32>
    %51 = vector.extract_strided_slice %11 {offsets = [0, 37], sizes = [8, 384], strides = [1, 1]} : vector<8x512xf32> to vector<8x384xf32>
    %c7 = arith.constant 7 : index
    %c0_34 = arith.constant 0 : index
    %c0_35 = arith.constant 0 : index
    %52 = vector.load %arg5[%c7, %c0_34, %c0_35] : memref<9x8x8xf32, #tpu.memory_space<vmem>>, vector<1x8x8xf32>
    %53 = vector.shape_cast %52 : vector<1x8x8xf32> to vector<8x8xf32>
    %cst_36 = arith.constant dense<0.000000e+00> : vector<8x384xf32>
    %54 = tpu.matmul %53, %51, %cst_36 {dimension_numbers = #tpu.dot_dimension_numbers<[1], [0], [0], [1], [0, 0, 1, 1], [], []>} : vector<8x8xf32>, vector<8x384xf32>, vector<8x384xf32> -> vector<8x384xf32>
    %55 = arith.addf %50, %54 : vector<8x384xf32>
    %56 = vector.extract_strided_slice %11 {offsets = [0, 38], sizes = [8, 384], strides = [1, 1]} : vector<8x512xf32> to vector<8x384xf32>
    %c8 = arith.constant 8 : index
    %c0_37 = arith.constant 0 : index
    %c0_38 = arith.constant 0 : index
    %57 = vector.load %arg5[%c8, %c0_37, %c0_38] : memref<9x8x8xf32, #tpu.memory_space<vmem>>, vector<1x8x8xf32>
    %58 = vector.shape_cast %57 : vector<1x8x8xf32> to vector<8x8xf32>
    %cst_39 = arith.constant dense<0.000000e+00> : vector<8x384xf32>
    %59 = tpu.matmul %58, %56, %cst_39 {dimension_numbers = #tpu.dot_dimension_numbers<[1], [0], [0], [1], [0, 0, 1, 1], [], []>} : vector<8x8xf32>, vector<8x384xf32>, vector<8x384xf32> -> vector<8x384xf32>
    %60 = arith.addf %55, %59 : vector<8x384xf32>
    %cst_40 = arith.constant 0.000000e+00 : f32
    %61 = vector.broadcast %cst_40 : f32 to vector<8x384xf32>
    %62 = arith.maximumf %60, %61 : vector<8x384xf32>
    %cst_41 = arith.constant 0.000000e+00 : f32
    %63 = vector.broadcast %cst_41 : f32 to vector<8x384xf32>
    %c0_42 = arith.constant 0 : index
    %c0_43 = arith.constant 0 : index
    %64 = vector.load %arg8[%c0_42, %c0_43] : memref<8x1xf32, #tpu.memory_space<vmem>>, vector<8x1xf32>
    %65 = vector.broadcast %64 : vector<8x1xf32> to vector<8x384xf32>
    %66 = arith.addf %63, %65 : vector<8x384xf32>
    %67 = vector.extract_strided_slice %1 {offsets = [0, 0], sizes = [4, 384], strides = [1, 1]} : vector<4x512xf32> to vector<4x384xf32>
    %c0_44 = arith.constant 0 : index
    %c0_45 = arith.constant 0 : index
    %c0_46 = arith.constant 0 : index
    %68 = vector.load %arg7[%c0_44, %c0_45, %c0_46] : memref<9x8x4xf32, #tpu.memory_space<vmem>>, vector<1x8x4xf32>
    %69 = vector.shape_cast %68 : vector<1x8x4xf32> to vector<8x4xf32>
    %cst_47 = arith.constant dense<0.000000e+00> : vector<8x384xf32>
    %70 = tpu.matmul %69, %67, %cst_47 {dimension_numbers = #tpu.dot_dimension_numbers<[1], [0], [0], [1], [0, 0, 1, 1], [], []>} : vector<8x4xf32>, vector<4x384xf32>, vector<8x384xf32> -> vector<8x384xf32>
    %71 = arith.addf %66, %70 : vector<8x384xf32>
    %72 = vector.extract_strided_slice %1 {offsets = [0, 1], sizes = [4, 384], strides = [1, 1]} : vector<4x512xf32> to vector<4x384xf32>
    %c1_48 = arith.constant 1 : index
    %c0_49 = arith.constant 0 : index
    %c0_50 = arith.constant 0 : index
    %73 = vector.load %arg7[%c1_48, %c0_49, %c0_50] : memref<9x8x4xf32, #tpu.memory_space<vmem>>, vector<1x8x4xf32>
    %74 = vector.shape_cast %73 : vector<1x8x4xf32> to vector<8x4xf32>
    %cst_51 = arith.constant dense<0.000000e+00> : vector<8x384xf32>
    %75 = tpu.matmul %74, %72, %cst_51 {dimension_numbers = #tpu.dot_dimension_numbers<[1], [0], [0], [1], [0, 0, 1, 1], [], []>} : vector<8x4xf32>, vector<4x384xf32>, vector<8x384xf32> -> vector<8x384xf32>
    %76 = arith.addf %71, %75 : vector<8x384xf32>
    %77 = vector.extract_strided_slice %1 {offsets = [0, 2], sizes = [4, 384], strides = [1, 1]} : vector<4x512xf32> to vector<4x384xf32>
    %c2_52 = arith.constant 2 : index
    %c0_53 = arith.constant 0 : index
    %c0_54 = arith.constant 0 : index
    %78 = vector.load %arg7[%c2_52, %c0_53, %c0_54] : memref<9x8x4xf32, #tpu.memory_space<vmem>>, vector<1x8x4xf32>
    %79 = vector.shape_cast %78 : vector<1x8x4xf32> to vector<8x4xf32>
    %cst_55 = arith.constant dense<0.000000e+00> : vector<8x384xf32>
    %80 = tpu.matmul %79, %77, %cst_55 {dimension_numbers = #tpu.dot_dimension_numbers<[1], [0], [0], [1], [0, 0, 1, 1], [], []>} : vector<8x4xf32>, vector<4x384xf32>, vector<8x384xf32> -> vector<8x384xf32>
    %81 = arith.addf %76, %80 : vector<8x384xf32>
    %82 = vector.extract_strided_slice %1 {offsets = [0, 18], sizes = [4, 384], strides = [1, 1]} : vector<4x512xf32> to vector<4x384xf32>
    %c3_56 = arith.constant 3 : index
    %c0_57 = arith.constant 0 : index
    %c0_58 = arith.constant 0 : index
    %83 = vector.load %arg7[%c3_56, %c0_57, %c0_58] : memref<9x8x4xf32, #tpu.memory_space<vmem>>, vector<1x8x4xf32>
    %84 = vector.shape_cast %83 : vector<1x8x4xf32> to vector<8x4xf32>
    %cst_59 = arith.constant dense<0.000000e+00> : vector<8x384xf32>
    %85 = tpu.matmul %84, %82, %cst_59 {dimension_numbers = #tpu.dot_dimension_numbers<[1], [0], [0], [1], [0, 0, 1, 1], [], []>} : vector<8x4xf32>, vector<4x384xf32>, vector<8x384xf32> -> vector<8x384xf32>
    %86 = arith.addf %81, %85 : vector<8x384xf32>
    %87 = vector.extract_strided_slice %1 {offsets = [0, 19], sizes = [4, 384], strides = [1, 1]} : vector<4x512xf32> to vector<4x384xf32>
    %c4_60 = arith.constant 4 : index
    %c0_61 = arith.constant 0 : index
    %c0_62 = arith.constant 0 : index
    %88 = vector.load %arg7[%c4_60, %c0_61, %c0_62] : memref<9x8x4xf32, #tpu.memory_space<vmem>>, vector<1x8x4xf32>
    %89 = vector.shape_cast %88 : vector<1x8x4xf32> to vector<8x4xf32>
    %cst_63 = arith.constant dense<0.000000e+00> : vector<8x384xf32>
    %90 = tpu.matmul %89, %87, %cst_63 {dimension_numbers = #tpu.dot_dimension_numbers<[1], [0], [0], [1], [0, 0, 1, 1], [], []>} : vector<8x4xf32>, vector<4x384xf32>, vector<8x384xf32> -> vector<8x384xf32>
    %91 = arith.addf %86, %90 : vector<8x384xf32>
    %92 = vector.extract_strided_slice %1 {offsets = [0, 20], sizes = [4, 384], strides = [1, 1]} : vector<4x512xf32> to vector<4x384xf32>
    %c5_64 = arith.constant 5 : index
    %c0_65 = arith.constant 0 : index
    %c0_66 = arith.constant 0 : index
    %93 = vector.load %arg7[%c5_64, %c0_65, %c0_66] : memref<9x8x4xf32, #tpu.memory_space<vmem>>, vector<1x8x4xf32>
    %94 = vector.shape_cast %93 : vector<1x8x4xf32> to vector<8x4xf32>
    %cst_67 = arith.constant dense<0.000000e+00> : vector<8x384xf32>
    %95 = tpu.matmul %94, %92, %cst_67 {dimension_numbers = #tpu.dot_dimension_numbers<[1], [0], [0], [1], [0, 0, 1, 1], [], []>} : vector<8x4xf32>, vector<4x384xf32>, vector<8x384xf32> -> vector<8x384xf32>
    %96 = arith.addf %91, %95 : vector<8x384xf32>
    %97 = vector.extract_strided_slice %1 {offsets = [0, 36], sizes = [4, 384], strides = [1, 1]} : vector<4x512xf32> to vector<4x384xf32>
    %c6_68 = arith.constant 6 : index
    %c0_69 = arith.constant 0 : index
    %c0_70 = arith.constant 0 : index
    %98 = vector.load %arg7[%c6_68, %c0_69, %c0_70] : memref<9x8x4xf32, #tpu.memory_space<vmem>>, vector<1x8x4xf32>
    %99 = vector.shape_cast %98 : vector<1x8x4xf32> to vector<8x4xf32>
    %cst_71 = arith.constant dense<0.000000e+00> : vector<8x384xf32>
    %100 = tpu.matmul %99, %97, %cst_71 {dimension_numbers = #tpu.dot_dimension_numbers<[1], [0], [0], [1], [0, 0, 1, 1], [], []>} : vector<8x4xf32>, vector<4x384xf32>, vector<8x384xf32> -> vector<8x384xf32>
    %101 = arith.addf %96, %100 : vector<8x384xf32>
    %102 = vector.extract_strided_slice %1 {offsets = [0, 37], sizes = [4, 384], strides = [1, 1]} : vector<4x512xf32> to vector<4x384xf32>
    %c7_72 = arith.constant 7 : index
    %c0_73 = arith.constant 0 : index
    %c0_74 = arith.constant 0 : index
    %103 = vector.load %arg7[%c7_72, %c0_73, %c0_74] : memref<9x8x4xf32, #tpu.memory_space<vmem>>, vector<1x8x4xf32>
    %104 = vector.shape_cast %103 : vector<1x8x4xf32> to vector<8x4xf32>
    %cst_75 = arith.constant dense<0.000000e+00> : vector<8x384xf32>
    %105 = tpu.matmul %104, %102, %cst_75 {dimension_numbers = #tpu.dot_dimension_numbers<[1], [0], [0], [1], [0, 0, 1, 1], [], []>} : vector<8x4xf32>, vector<4x384xf32>, vector<8x384xf32> -> vector<8x384xf32>
    %106 = arith.addf %101, %105 : vector<8x384xf32>
    %107 = vector.extract_strided_slice %1 {offsets = [0, 38], sizes = [4, 384], strides = [1, 1]} : vector<4x512xf32> to vector<4x384xf32>
    %c8_76 = arith.constant 8 : index
    %c0_77 = arith.constant 0 : index
    %c0_78 = arith.constant 0 : index
    %108 = vector.load %arg7[%c8_76, %c0_77, %c0_78] : memref<9x8x4xf32, #tpu.memory_space<vmem>>, vector<1x8x4xf32>
    %109 = vector.shape_cast %108 : vector<1x8x4xf32> to vector<8x4xf32>
    %cst_79 = arith.constant dense<0.000000e+00> : vector<8x384xf32>
    %110 = tpu.matmul %109, %107, %cst_79 {dimension_numbers = #tpu.dot_dimension_numbers<[1], [0], [0], [1], [0, 0, 1, 1], [], []>} : vector<8x4xf32>, vector<4x384xf32>, vector<8x384xf32> -> vector<8x384xf32>
    %111 = arith.addf %106, %110 : vector<8x384xf32>
    %cst_80 = arith.constant 0.000000e+00 : f32
    %112 = vector.broadcast %cst_80 : f32 to vector<8x384xf32>
    %113 = arith.maximumf %111, %112 : vector<8x384xf32>
    %114 = tpu.concatenate %62, %113 in 0 : vector<8x384xf32>, vector<8x384xf32> -> vector<16x384xf32>
    %c0_81 = arith.constant 0 : index
    %c0_82 = arith.constant 0 : index
    %115 = vector.load %arg9[%c0_81, %c0_82] : memref<8x16xf32, #tpu.memory_space<vmem>>, vector<8x16xf32>
    %cst_83 = arith.constant dense<0.000000e+00> : vector<8x384xf32>
    %116 = tpu.matmul %115, %114, %cst_83 {dimension_numbers = #tpu.dot_dimension_numbers<[1], [0], [0], [1], [0, 0, 1, 1], [], []>} : vector<8x16xf32>, vector<16x384xf32>, vector<8x384xf32> -> vector<8x384xf32>
    %c0_84 = arith.constant 0 : index
    %c0_85 = arith.constant 0 : index
    %117 = vector.load %arg10[%c0_84, %c0_85] : memref<8x1xf32, #tpu.memory_space<vmem>>, vector<8x1xf32>
    %118 = vector.broadcast %117 : vector<8x1xf32> to vector<8x384xf32>
    %119 = arith.addf %116, %118 : vector<8x384xf32>
    %cst_86 = arith.constant 0.000000e+00 : f32
    %120 = vector.broadcast %cst_86 : f32 to vector<8x384xf32>
    %121 = arith.maximumf %119, %120 : vector<8x384xf32>
    %c0_87 = arith.constant 0 : index
    %c0_88 = arith.constant 0 : index
    %c0_89 = arith.constant 0 : index
    %122 = vector.load %arg11[%c0_87, %c0_88, %c0_89] : memref<1x8x384xf32, #tpu.memory_space<vmem>>, vector<1x8x384xf32>
    %123 = vector.shape_cast %122 : vector<1x8x384xf32> to vector<8x384xf32>
    %124 = vector.shape_cast %121 : vector<8x384xf32> to vector<1x8x384xf32>
    tpu.vector_store %arg11[%c0_87, %c0_88, %c0_89], %124 {strides = array<i32>} : memref<1x8x384xf32, #tpu.memory_space<vmem>>, vector<1x8x384xf32>,
    return
  }
  func.func @transform_0(%arg0: i32) -> (i32, i32, i32) {
    %c0_i32 = arith.constant 0 : i32
    %c0_i32_0 = arith.constant 0 : i32
    %c0_i32_1 = arith.constant 0 : i32
    return %arg0, %c0_i32, %c0_i32_0 : i32, i32, i32
  }
  func.func @transform_1(%arg0: i32) -> (i32, i32) {
    %c0_i32 = arith.constant 0 : i32
    %c0_i32_0 = arith.constant 0 : i32
    %c0_i32_1 = arith.constant 0 : i32
    return %c0_i32, %c0_i32_0 : i32, i32
  }
  func.func @transform_2(%arg0: i32) -> (i32, i32) {
    %c0_i32 = arith.constant 0 : i32
    %c0_i32_0 = arith.constant 0 : i32
    %c0_i32_1 = arith.constant 0 : i32
    return %c0_i32, %c0_i32_0 : i32, i32
  }
  func.func @transform_3(%arg0: i32) -> (i32, i32) {
    %c0_i32 = arith.constant 0 : i32
    %c0_i32_0 = arith.constant 0 : i32
    %c0_i32_1 = arith.constant 0 : i32
    return %c0_i32, %c0_i32_0 : i32, i32
  }
  func.func @transform_4(%arg0: i32) -> (i32, i32, i32) {
    %c0_i32 = arith.constant 0 : i32
    %c0_i32_0 = arith.constant 0 : i32
    %c0_i32_1 = arith.constant 0 : i32
    %c0_i32_2 = arith.constant 0 : i32
    return %c0_i32, %c0_i32_0, %c0_i32_1 : i32, i32, i32
  }
  func.func @transform_5(%arg0: i32) -> (i32, i32) {
    %c0_i32 = arith.constant 0 : i32
    %c0_i32_0 = arith.constant 0 : i32
    %c0_i32_1 = arith.constant 0 : i32
    return %c0_i32, %c0_i32_0 : i32, i32
  }
  func.func @transform_6(%arg0: i32) -> (i32, i32, i32) {
    %c0_i32 = arith.constant 0 : i32
    %c0_i32_0 = arith.constant 0 : i32
    %c0_i32_1 = arith.constant 0 : i32
    %c0_i32_2 = arith.constant 0 : i32
    return %c0_i32, %c0_i32_0, %c0_i32_1 : i32, i32, i32
  }
  func.func @transform_7(%arg0: i32) -> (i32, i32) {
    %c0_i32 = arith.constant 0 : i32
    %c0_i32_0 = arith.constant 0 : i32
    %c0_i32_1 = arith.constant 0 : i32
    return %c0_i32, %c0_i32_0 : i32, i32
  }
  func.func @transform_8(%arg0: i32) -> (i32, i32) {
    %c0_i32 = arith.constant 0 : i32
    %c0_i32_0 = arith.constant 0 : i32
    %c0_i32_1 = arith.constant 0 : i32
    return %c0_i32, %c0_i32_0 : i32, i32
  }
  func.func @transform_9(%arg0: i32) -> (i32, i32) {
    %c0_i32 = arith.constant 0 : i32
    %c0_i32_0 = arith.constant 0 : i32
    %c0_i32_1 = arith.constant 0 : i32
    return %c0_i32, %c0_i32_0 : i32, i32
  }
  func.func @transform_10(%arg0: i32) -> (i32, i32, i32) {
    %c0_i32 = arith.constant 0 : i32
    %c0_i32_0 = arith.constant 0 : i32
    %c0_i32_1 = arith.constant 0 : i32
    return %arg0, %c0_i32, %c0_i32_0 : i32, i32, i32
  }
}

</mosaic_0001>

<llo_original>
// kernel: resblock_forward.1
$region0: #{resblock_forward.1}
  #allocation0 [shape = 'u32[]', space=smem, size = 0x4, offset = 0x4, fixed_abs, tag = 'smem constant byte address 0x4 - core index']
  #allocation1 [shape = 'u32[144,128]{1,0:T(1,128)}', space=vmem, size = 0x12000, scoped, tag = 'internal scratch']
  %s0 = inlined_call_operand.vmem [shape: f32[2,4,512], index: 0, kind: input, shape index: {}]
  %s1 = inlined_call_operand.vmem [shape: f32[1,512], index: 1, kind: input, shape index: {}]
  %s2 = inlined_call_operand.vmem [shape: f32[8,4], index: 2, kind: input, shape index: {}]
  %s3 = inlined_call_operand.vmem [shape: f32[8,1], index: 3, kind: input, shape index: {}]
  %s4 = inlined_call_operand.vmem [shape: f32[9,8,8], index: 4, kind: input, shape index: {}]
  %s5 = inlined_call_operand.vmem [shape: f32[8,1], index: 5, kind: input, shape index: {}]
  %s6 = inlined_call_operand.vmem [shape: f32[9,8,4], index: 6, kind: input, shape index: {}]
  %s7 = inlined_call_operand.vmem [shape: f32[8,1], index: 7, kind: input, shape index: {}]
  %s8 = inlined_call_operand.vmem [shape: f32[8,16], index: 8, kind: input, shape index: {}]
  %s9 = inlined_call_operand.vmem [shape: f32[8,1], index: 9, kind: input, shape index: {}]
  %s10 = inlined_call_operand.vmem [shape: f32[2,8,384], index: 10, kind: output, shape index: {}]
  %s11 = sld [smem:[#allocation0]]
  $region73: #{resblock_forward.1} parent=0
    _
  %s13 = ssub.s32 1, %s11
  %s14 = scalar_select 0, %s13, %s11
  loop: start=0, step=1, limit=4
  $region2: #{resblock_forward.1} parent=0 // loop_pre_header
    _
  $region3: #{resblock_forward.1} parent=0 // loop_header
    %s16 = sphi 0, %s20
    %p17 = scmp.ge.s32.totalorder %s16, 4
    %s26 = sphi 0, %s28
    %s29 = sphi 0, %s26
    %s30 = sphi 0, %s29
    %s46 = sphi 0, %s30
    %s50 = sphi 0, %s50
    %s52 = sphi 0, %s50
    %s53 = sphi 0, %s52
    %s67 = sphi 0, %s53
    %s71 = sphi 0, %s71
    %s73 = sphi 0, %s71
    %s74 = sphi 0, %s73
    %s88 = sphi 0, %s74
    %s92 = sphi 0, %s92
    %s94 = sphi 0, %s92
    %s95 = sphi 0, %s94
    %s109 = sphi 0, %s95
    %s113 = sphi 0, %s113
    %s115 = sphi 0, %s113
    %s116 = sphi 0, %s115
    %s130 = sphi 0, %s116
    %s134 = sphi 0, %s134
    %s136 = sphi 0, %s134
    %s137 = sphi 0, %s136
    %s151 = sphi 0, %s137
    %s155 = sphi 0, %s155
    %s157 = sphi 0, %s155
    %s158 = sphi 0, %s157
    %s172 = sphi 0, %s158
    %s176 = sphi 0, %s176
    %s178 = sphi 0, %s176
    %s179 = sphi 0, %s178
    %s193 = sphi 0, %s179
    %s197 = sphi 0, %s197
    %s199 = sphi 0, %s197
    %s200 = sphi 0, %s199
    %s214 = sphi 0, %s200
    %s218 = sphi 0, %s218
    %s220 = sphi 0, %s218
    %s221 = sphi 0, %s220
    %s235 = sphi 0, %s221
    %s241 = sphi 0, %s243
    %s244 = sphi 0, %s241
    %s245 = sphi 0, %s244
    %s261 = sphi 0, %s245
  $region4: #{resblock_forward.1} parent=0 // loop_header_branch
    %19 = sbr.rel (%p17) target = $region8
  $region5: #{resblock_forward.1} parent=0 // loop_body
    %s21 = ssub.s32 %s16, 1
    %s22 = ssub.s32 %s16, 2
    %s23 = sadd.s32 %s16, 1
    %s24 = ssub.s32 %s16, %s23
    %p25 = scmp.eq.s32.totalorder %s24, 0
    %s27 = sadd.s32 %s26, 1
    %s28 = scalar_select %p25, %s26, %s27
    %p31 = pneg %p25
    %p32 = scmp.eq.s32.totalorder %s16, 1
    %p33 = por %p31, %p32
    %p34 = scmp.ne.s32.totalorder %s26, %s29
    %p35 = scmp.eq.s32.totalorder %s16, 0
    %p36 = por %p34, %p35
    %p37 = scmp.ne.s32.totalorder %s26, %s29
    %p38 = scmp.eq.s32.totalorder %s21, 1
    %p39 = por %p37, %p38
    %p40 = scmp.ne.s32.totalorder %s29, %s30
    %p41 = scmp.eq.s32.totalorder %s21, 0
    %p42 = por %p40, %p41
    %p43 = scmp.ne.s32.totalorder %s29, %s30
    %p44 = scmp.eq.s32.totalorder %s22, 1
    %p45 = por %p43, %p44
    %p47 = scmp.ne.s32.totalorder %s30, %s46
    %p48 = scmp.eq.s32.totalorder %s22, 0
    %p49 = por %p47, %p48
    %s51 = sadd.s32 %s50, 1
    %p54 = scmp.eq.s32.totalorder %s16, 1
    %p55 = scmp.ne.s32.totalorder %s50, %s52
    %p56 = scmp.eq.s32.totalorder %s16, 0
    %p57 = por %p55, %p56
    %p58 = scmp.ne.s32.totalorder %s50, %s52
    %p59 = scmp.eq.s32.totalorder %s21, 1
    %p60 = por %p58, %p59
    %p61 = scmp.ne.s32.totalorder %s52, %s53
    %p62 = scmp.eq.s32.totalorder %s21, 0
    %p63 = por %p61, %p62
    %p64 = scmp.ne.s32.totalorder %s52, %s53
    %p65 = scmp.eq.s32.totalorder %s22, 1
    %p66 = por %p64, %p65
    %p68 = scmp.ne.s32.totalorder %s53, %s67
    %p69 = scmp.eq.s32.totalorder %s22, 0
    %p70 = por %p68, %p69
    %s72 = sadd.s32 %s71, 1
    %p75 = scmp.eq.s32.totalorder %s16, 1
    %p76 = scmp.ne.s32.totalorder %s71, %s73
    %p77 = scmp.eq.s32.totalorder %s16, 0
    %p78 = por %p76, %p77
    %p79 = scmp.ne.s32.totalorder %s71, %s73
    %p80 = scmp.eq.s32.totalorder %s21, 1
    %p81 = por %p79, %p80
    %p82 = scmp.ne.s32.totalorder %s73, %s74
    %p83 = scmp.eq.s32.totalorder %s21, 0
    %p84 = por %p82, %p83
    %p85 = scmp.ne.s32.totalorder %s73, %s74
    %p86 = scmp.eq.s32.totalorder %s22, 1
    %p87 = por %p85, %p86
    %p89 = scmp.ne.s32.totalorder %s74, %s88
    %p90 = scmp.eq.s32.totalorder %s22, 0
    %p91 = por %p89, %p90
    %s93 = sadd.s32 %s92, 1
    %p96 = scmp.eq.s32.totalorder %s16, 1
    %p97 = scmp.ne.s32.totalorder %s92, %s94
    %p98 = scmp.eq.s32.totalorder %s16, 0
    %p99 = por %p97, %p98
    %p100 = scmp.ne.s32.totalorder %s92, %s94
    %p101 = scmp.eq.s32.totalorder %s21, 1
    %p102 = por %p100, %p101
    %p103 = scmp.ne.s32.totalorder %s94, %s95
    %p104 = scmp.eq.s32.totalorder %s21, 0
    %p105 = por %p103, %p104
    %p106 = scmp.ne.s32.totalorder %s94, %s95
    %p107 = scmp.eq.s32.totalorder %s22, 1
    %p108 = por %p106, %p107
    %p110 = scmp.ne.s32.totalorder %s95, %s109
    %p111 = scmp.eq.s32.totalorder %s22, 0
    %p112 = por %p110, %p111
    %s114 = sadd.s32 %s113, 1
    %p117 = scmp.eq.s32.totalorder %s16, 1
    %p118 = scmp.ne.s32.totalorder %s113, %s115
    %p119 = scmp.eq.s32.totalorder %s16, 0
    %p120 = por %p118, %p119
    %p121 = scmp.ne.s32.totalorder %s113, %s115
    %p122 = scmp.eq.s32.totalorder %s21, 1
    %p123 = por %p121, %p122
    %p124 = scmp.ne.s32.totalorder %s115, %s116
    %p125 = scmp.eq.s32.totalorder %s21, 0
    %p126 = por %p124, %p125
    %p127 = scmp.ne.s32.totalorder %s115, %s116
    %p128 = scmp.eq.s32.totalorder %s22, 1
    %p129 = por %p127, %p128
    %p131 = scmp.ne.s32.totalorder %s116, %s130
    %p132 = scmp.eq.s32.totalorder %s22, 0
    %p133 = por %p131, %p132
    %s135 = sadd.s32 %s134, 1
    %p138 = scmp.eq.s32.totalorder %s16, 1
    %p139 = scmp.ne.s32.totalorder %s134, %s136
    %p140 = scmp.eq.s32.totalorder %s16, 0
    %p141 = por %p139, %p140
    %p142 = scmp.ne.s32.totalorder %s134, %s136
    %p143 = scmp.eq.s32.totalorder %s21, 1
    %p144 = por %p142, %p143
    %p145 = scmp.ne.s32.totalorder %s136, %s137
    %p146 = scmp.eq.s32.totalorder %s21, 0
    %p147 = por %p145, %p146
    %p148 = scmp.ne.s32.totalorder %s136, %s137
    %p149 = scmp.eq.s32.totalorder %s22, 1
    %p150 = por %p148, %p149
    %p152 = scmp.ne.s32.totalorder %s137, %s151
    %p153 = scmp.eq.s32.totalorder %s22, 0
    %p154 = por %p152, %p153
    %s156 = sadd.s32 %s155, 1
    %p159 = scmp.eq.s32.totalorder %s16, 1
    %p160 = scmp.ne.s32.totalorder %s155, %s157
    %p161 = scmp.eq.s32.totalorder %s16, 0
    %p162 = por %p160, %p161
    %p163 = scmp.ne.s32.totalorder %s155, %s157
    %p164 = scmp.eq.s32.totalorder %s21, 1
    %p165 = por %p163, %p164
    %p166 = scmp.ne.s32.totalorder %s157, %s158
    %p167 = scmp.eq.s32.totalorder %s21, 0
    %p168 = por %p166, %p167
    %p169 = scmp.ne.s32.totalorder %s157, %s158
    %p170 = scmp.eq.s32.totalorder %s22, 1
    %p171 = por %p169, %p170
    %p173 = scmp.ne.s32.totalorder %s158, %s172
    %p174 = scmp.eq.s32.totalorder %s22, 0
    %p175 = por %p173, %p174
    %s177 = sadd.s32 %s176, 1
    %p180 = scmp.eq.s32.totalorder %s16, 1
    %p181 = scmp.ne.s32.totalorder %s176, %s178
    %p182 = scmp.eq.s32.totalorder %s16, 0
    %p183 = por %p181, %p182
    %p184 = scmp.ne.s32.totalorder %s176, %s178
    %p185 = scmp.eq.s32.totalorder %s21, 1
    %p186 = por %p184, %p185
    %p187 = scmp.ne.s32.totalorder %s178, %s179
    %p188 = scmp.eq.s32.totalorder %s21, 0
    %p189 = por %p187, %p188
    %p190 = scmp.ne.s32.totalorder %s178, %s179
    %p191 = scmp.eq.s32.totalorder %s22, 1
    %p192 = por %p190, %p191
    %p194 = scmp.ne.s32.totalorder %s179, %s193
    %p195 = scmp.eq.s32.totalorder %s22, 0
    %p196 = por %p194, %p195
    %s198 = sadd.s32 %s197, 1
    %p201 = scmp.eq.s32.totalorder %s16, 1
    %p202 = scmp.ne.s32.totalorder %s197, %s199
    %p203 = scmp.eq.s32.totalorder %s16, 0
    %p204 = por %p202, %p203
    %p205 = scmp.ne.s32.totalorder %s197, %s199
    %p206 = scmp.eq.s32.totalorder %s21, 1
    %p207 = por %p205, %p206
    %p208 = scmp.ne.s32.totalorder %s199, %s200
    %p209 = scmp.eq.s32.totalorder %s21, 0
    %p210 = por %p208, %p209
    %p211 = scmp.ne.s32.totalorder %s199, %s200
    %p212 = scmp.eq.s32.totalorder %s22, 1
    %p213 = por %p211, %p212
    %p215 = scmp.ne.s32.totalorder %s200, %s214
    %p216 = scmp.eq.s32.totalorder %s22, 0
    %p217 = por %p215, %p216
    %s219 = sadd.s32 %s218, 1
    %p222 = scmp.eq.s32.totalorder %s16, 1
    %p223 = scmp.ne.s32.totalorder %s218, %s220
    %p224 = scmp.eq.s32.totalorder %s16, 0
    %p225 = por %p223, %p224
    %p226 = scmp.ne.s32.totalorder %s218, %s220
    %p227 = scmp.eq.s32.totalorder %s21, 1
    %p228 = por %p226, %p227
    %p229 = scmp.ne.s32.totalorder %s220, %s221
    %p230 = scmp.eq.s32.totalorder %s21, 0
    %p231 = por %p229, %p230
    %p232 = scmp.ne.s32.totalorder %s220, %s221
    %p233 = scmp.eq.s32.totalorder %s22, 1
    %p234 = por %p232, %p233
    %p236 = scmp.ne.s32.totalorder %s221, %s235
    %p237 = scmp.eq.s32.totalorder %s22, 0
    %p238 = por %p236, %p237
    %s239 = ssub.s32 %s16, %s23
    %p240 = scmp.eq.s32.totalorder %s239, 0
    %s242 = sadd.s32 %s241, 1
    %s243 = scalar_select %p240, %s241, %s242
    %p246 = pneg %p240
    %p247 = scmp.eq.s32.totalorder %s16, 1
    %p248 = por %p246, %p247
    %p249 = scmp.ne.s32.totalorder %s241, %s244
    %p250 = scmp.eq.s32.totalorder %s16, 0
    %p251 = por %p249, %p250
    %p252 = scmp.ne.s32.totalorder %s241, %s244
    %p253 = scmp.eq.s32.totalorder %s21, 1
    %p254 = por %p252, %p253
    %p255 = scmp.ne.s32.totalorder %s244, %s245
    %p256 = scmp.eq.s32.totalorder %s21, 0
    %p257 = por %p255, %p256
    %p258 = scmp.ne.s32.totalorder %s244, %s245
    %p259 = scmp.eq.s32.totalorder %s22, 1
    %p260 = por %p258, %p259
    %p262 = scmp.ne.s32.totalorder %s245, %s261
    %p263 = scmp.eq.s32.totalorder %s22, 0
    %p264 = por %p262, %p263
    %p265 = scmp.le.s32.totalorder 1, %s16
    %p266 = scmp.lt.s32.totalorder %s16, 3
    %p267 = pnand %p265, %p266
    %p268 = pneg %p267
    // Predicated region
    $region9: #{resblock_forward.1} parent=5 // pred_check
      _
    $region10: #{resblock_forward.1} parent=5 // pred_check_branch
      %270 = sbr.rel (%p267) target = $region12
    $region11: #{resblock_forward.1} parent=5 // pred_region
      %s271 = ssub.s32 %s16, 1
      // Predicated region
      $region13: #{resblock_forward.1} parent=11 // pred_check
        %p272 = pneg %p63
      $region14: #{resblock_forward.1} parent=11 // pred_check_branch
        %274 = sbr.rel (%p272) target = $region16
      $region15: #{resblock_forward.1} parent=11 // pred_region
        _
      $region16: #{resblock_forward.1} parent=11 // pred_fallthru
        _
      // Predicated region
      $region17: #{resblock_forward.1} parent=11 // pred_check
        %p275 = pneg %p84
      $region18: #{resblock_forward.1} parent=11 // pred_check_branch
        %277 = sbr.rel (%p275) target = $region20
      $region19: #{resblock_forward.1} parent=11 // pred_region
        _
      $region20: #{resblock_forward.1} parent=11 // pred_fallthru
        _
      // Predicated region
      $region21: #{resblock_forward.1} parent=11 // pred_check
        %p278 = pneg %p105
      $region22: #{resblock_forward.1} parent=11 // pred_check_branch
        %280 = sbr.rel (%p278) target = $region24
      $region23: #{resblock_forward.1} parent=11 // pred_region
        _
      $region24: #{resblock_forward.1} parent=11 // pred_fallthru
        _
      // Predicated region
      $region25: #{resblock_forward.1} parent=11 // pred_check
        %p281 = pneg %p126
      $region26: #{resblock_forward.1} parent=11 // pred_check_branch
        %283 = sbr.rel (%p281) target = $region28
      $region27: #{resblock_forward.1} parent=11 // pred_region
        _
      $region28: #{resblock_forward.1} parent=11 // pred_fallthru
        _
      // Predicated region
      $region29: #{resblock_forward.1} parent=11 // pred_check
        %p284 = pneg %p147
      $region30: #{resblock_forward.1} parent=11 // pred_check_branch
        %286 = sbr.rel (%p284) target = $region32
      $region31: #{resblock_forward.1} parent=11 // pred_region
        _
      $region32: #{resblock_forward.1} parent=11 // pred_fallthru
        _
      // Predicated region
      $region33: #{resblock_forward.1} parent=11 // pred_check
        %p287 = pneg %p168
      $region34: #{resblock_forward.1} parent=11 // pred_check_branch
        %289 = sbr.rel (%p287) target = $region36
      $region35: #{resblock_forward.1} parent=11 // pred_region
        _
      $region36: #{resblock_forward.1} parent=11 // pred_fallthru
        _
      // Predicated region
      $region37: #{resblock_forward.1} parent=11 // pred_check
        %p290 = pneg %p189
      $region38: #{resblock_forward.1} parent=11 // pred_check_branch
        %292 = sbr.rel (%p290) target = $region40
      $region39: #{resblock_forward.1} parent=11 // pred_region
        _
      $region40: #{resblock_forward.1} parent=11 // pred_fallthru
        _
      // Predicated region
      $region41: #{resblock_forward.1} parent=11 // pred_check
        %p293 = pneg %p210
      $region42: #{resblock_forward.1} parent=11 // pred_check_branch
        %295 = sbr.rel (%p293) target = $region44
      $region43: #{resblock_forward.1} parent=11 // pred_region
        _
      $region44: #{resblock_forward.1} parent=11 // pred_fallthru
        _
      // Predicated region
      $region45: #{resblock_forward.1} parent=11 // pred_check
        %p296 = pneg %p231
      $region46: #{resblock_forward.1} parent=11 // pred_check_branch
        %298 = sbr.rel (%p296) target = $region48
      $region47: #{resblock_forward.1} parent=11 // pred_region
        _
      $region48: #{resblock_forward.1} parent=11 // pred_fallthru
        _
    $region12: #{resblock_forward.1} parent=5 // pred_fallthru
      _
    %p299 = scmp.lt.s32.totalorder %s16, 2
    // Predicated region
    $region49: #{resblock_forward.1} parent=5 // pred_check
      %p300 = pneg %p299
    $region50: #{resblock_forward.1} parent=5 // pred_check_branch
      %302 = sbr.rel (%p300) target = $region52
    $region51: #{resblock_forward.1} parent=5 // pred_region
      // Predicated region
      $region53: #{resblock_forward.1} parent=51 // pred_check
        %p303 = pneg %p36
      $region54: #{resblock_forward.1} parent=51 // pred_check_branch
        %305 = sbr.rel (%p303) target = $region56
      $region55: #{resblock_forward.1} parent=51 // pred_region
        %p306 = scmp.lt.s32.totalorder %s16, 1
        %s307 = scalar_select %p306, %s16, 1
        %s308 = smul.addr %s307, 4
        %s309 = smul.addr %s308, 4
        %s310 = scalar_lea.vmem %s0, %s309
      $region56: #{resblock_forward.1} parent=51 // pred_fallthru
        _
    $region52: #{resblock_forward.1} parent=5 // pred_fallthru
      _
    %p311 = scmp.le.s32.totalorder 1, %s16
    %p312 = scmp.lt.s32.totalorder %s16, 3
    %p313 = pnand %p311, %p312
    %p314 = pneg %p313
    // Predicated region
    $region57: #{resblock_forward.1} parent=5 // pred_check
      _
    $region58: #{resblock_forward.1} parent=5 // pred_check_branch
      %316 = sbr.rel (%p313) target = $region60
    $region59: #{resblock_forward.1} parent=5 // pred_region
      %s317 = ssub.s32 %s16, 1
      %p318 = scmp.lt.s32.totalorder %s21, 1
      %s319 = scalar_select %p318, %s21, 1
      %s320 = smul.addr %s319, 4
      %s321 = smul.addr %s320, 4
      %s322 = scalar_lea.vmem %s0, %s321
      %p323 = pneg %p42
      %p324 = pneg %p39
      %p325 = pneg %p63
      %p326 = pneg %p60
      %p327 = pneg %p84
      %p328 = pneg %p81
      %p329 = pneg %p105
      %p330 = pneg %p102
      %p331 = pneg %p126
      %p332 = pneg %p123
      %p333 = pneg %p147
      %p334 = pneg %p144
      %p335 = pneg %p168
      %p336 = pneg %p165
      %p337 = pneg %p189
      %p338 = pneg %p186
      %p339 = pneg %p210
      %p340 = pneg %p207
      %p341 = pneg %p231
      %p342 = pneg %p228
      %p343 = pneg %p257
      %p344 = pneg %p254
      %p345 = scmp.lt.s32.totalorder %s21, 1
      %s346 = scalar_select %p345, %s21, 1
      %s347 = smul.addr %s346, 3
      %s348 = smul.addr %s347, 8
      %s349 = scalar_lea.vmem %s10, %s348
      %p350 = scmp.lt.s32.totalorder %s21, 1
      %s351 = scalar_select %p350, %s21, 1
      %s352 = smul.addr %s351, 4
      %s353 = smul.addr %s352, 4
      %s354 = scalar_lea.vmem %s0, %s353
      %p355 = scmp.lt.s32.totalorder %s21, 1
      %s356 = scalar_select %p355, %s21, 1
      %s357 = smul.addr %s356, 3
      %s358 = smul.addr %s357, 8
      %s359 = scalar_lea.vmem %s10, %s358
      %v360 = vld [vmem:[%s354] sm:$0xff]
      %v361 = vld [vmem:[%s354 + $0x8] sm:$0xff]
      %v362 = vld [vmem:[%s2] sm:$0xff]
      %v363 = vld [vmem:[%s3] sm:$0xff]
      %365 = vset.pattern.permute.xlu0 0
      %366 = vperm.xlu0 %365, %v363
      %v367 = vpop.permute.xlu0 %366
      %v371 = vcombine.high %v360, %v360
      %v372 = vcombine.high %v361, %v361
      %vm373 = vcmask 31744
      %v375 = vsel %vm373, %v362, 0
      %vm377 = vcmask 1043456
      %v378 = vsel %vm377, %v360, 0
      %v380 = vsel %vm377, %v371, 0
      %v382 = vsel %vm377, %v361, 0
      %v384 = vsel %vm377, %v372, 0
      %386 = vmatprep.subr.mxu0 %v380
      %387 = vmatpush1.msra.mxu0 %v378
      %388 = vmatprep.subr.mxu0 0.0
      %389 = vmatpush1.msra.mxu0 0.0
      %390 = vmatprep.subr.mxu0 0.0
      %391 = vmatpush1.msra.mxu0 0.0
      %392 = vmatprep.subr.mxu0 0.0
      %393 = vmatpush1.msra.mxu0 0.0
      %394 = vmatprep.subr.mxu0 0.0
      %395 = vmatpush1.msra.mxu0 0.0
      %396 = vmatprep.subr.mxu0 0.0
      %397 = vmatpush1.msra.mxu0 0.0
      %398 = vmatprep.subr.mxu0 0.0
      %399 = vmatpush1.msra.mxu0 0.0
      %400 = vmatprep.subr.mxu0 0.0
      %401 = vmatpush1.msra.mxu0 0.0
      %402 = vmatprep.subr.mxu0 0.0
      %403 = vmatpush1.msra.mxu0 0.0
      %404 = vmatprep.subr.mxu0 0.0
      %405 = vmatpush1.msra.mxu0 0.0
      %406 = vmatprep.subr.mxu0 0.0
      %407 = vmatpush1.msra.mxu0 0.0
      %408 = vmatprep.subr.mxu0 0.0
      %409 = vmatpush1.msra.mxu0 0.0
      %410 = vmatprep.subr.mxu0 0.0
      %411 = vmatpush1.msra.mxu0 0.0
      %412 = vmatprep.subr.mxu0 0.0
      %413 = vmatpush1.msra.mxu0 0.0
      %414 = vmatprep.subr.mxu0 0.0
      %415 = vmatpush1.msra.mxu0 0.0
      %416 = vmatprep.subr.mxu0 0.0
      %417 = vmatpush1.msra.mxu0 0.0
      %418 = vmatprep.subr.mxu0 0.0
      %419 = vmatpush1.msra.mxu0 0.0
      %420 = vmatprep.subr.mxu0 0.0
      %421 = vmatpush1.msra.mxu0 0.0
      %422 = vmatprep.subr.mxu0 0.0
      %423 = vmatpush1.msra.mxu0 0.0
      %424 = vmatprep.subr.mxu0 0.0
      %425 = vmatpush1.msra.mxu0 0.0
      %426 = vmatprep.subr.mxu0 0.0
      %427 = vmatpush1.msra.mxu0 0.0
      %428 = vmatprep.subr.mxu0 0.0
      %429 = vmatpush1.msra.mxu0 0.0
      %430 = vmatprep.subr.mxu0 0.0
      %431 = vmatpush1.msra.mxu0 0.0
      %432 = vmatprep.subr.mxu0 0.0
      %433 = vmatpush1.msra.mxu0 0.0
      %434 = vmatprep.subr.mxu0 0.0
      %435 = vmatpush1.msra.mxu0 0.0
      %436 = vmatprep.subr.mxu0 0.0
      %437 = vmatpush1.msra.mxu0 0.0
      %438 = vmatprep.subr.mxu0 0.0
      %439 = vmatpush1.msra.mxu0 0.0
      %440 = vmatprep.subr.mxu0 0.0
      %441 = vmatpush1.msra.mxu0 0.0
      %442 = vmatprep.subr.mxu0 0.0
      %443 = vmatpush1.msra.mxu0 0.0
      %444 = vmatprep.subr.mxu0 0.0
      %445 = vmatpush1.msra.mxu0 0.0
      %446 = vmatprep.subr.mxu0 0.0
      %447 = vmatpush1.msra.mxu0 0.0
      %448 = vmatprep.subr.mxu0 0.0
      %449 = vmatpush1.msra.mxu0 0.0
      %450 = vmatprep.mubr.f32.mxu0 0.0
      %451 = vmatmul.mubr.f32.gmra.mrb[0].mxu0 %v375
      %v452 = vpop.f32.mrb[0].mxu0
      %v453 = vadd.f32 %v367, %v452
      %v454 = vpop.f32.mrb[0].mxu0
      %v455 = vadd.f32 %v367, %v454
      %456 = vdwg.mxu0
      %457 = vmatprep.subr.mxu0 %v384
      %458 = vmatpush1.msra.mxu0 %v382
      %459 = vmatprep.subr.mxu0 0.0
      %460 = vmatpush1.msra.mxu0 0.0
      %461 = vmatprep.subr.mxu0 0.0
      %462 = vmatpush1.msra.mxu0 0.0
      %463 = vmatprep.subr.mxu0 0.0
      %464 = vmatpush1.msra.mxu0 0.0
      %465 = vmatprep.subr.mxu0 0.0
      %466 = vmatpush1.msra.mxu0 0.0
      %467 = vmatprep.subr.mxu0 0.0
      %468 = vmatpush1.msra.mxu0 0.0
      %469 = vmatprep.subr.mxu0 0.0
      %470 = vmatpush1.msra.mxu0 0.0
      %471 = vmatprep.subr.mxu0 0.0
      %472 = vmatpush1.msra.mxu0 0.0
      %473 = vmatprep.subr.mxu0 0.0
      %474 = vmatpush1.msra.mxu0 0.0
      %475 = vmatprep.subr.mxu0 0.0
      %476 = vmatpush1.msra.mxu0 0.0
      %477 = vmatprep.subr.mxu0 0.0
      %478 = vmatpush1.msra.mxu0 0.0
      %479 = vmatprep.subr.mxu0 0.0
      %480 = vmatpush1.msra.mxu0 0.0
      %481 = vmatprep.subr.mxu0 0.0
      %482 = vmatpush1.msra.mxu0 0.0
      %483 = vmatprep.subr.mxu0 0.0
      %484 = vmatpush1.msra.mxu0 0.0
      %485 = vmatprep.subr.mxu0 0.0
      %486 = vmatpush1.msra.mxu0 0.0
      %487 = vmatprep.subr.mxu0 0.0
      %488 = vmatpush1.msra.mxu0 0.0
      %489 = vmatprep.subr.mxu0 0.0
      %490 = vmatpush1.msra.mxu0 0.0
      %491 = vmatprep.subr.mxu0 0.0
      %492 = vmatpush1.msra.mxu0 0.0
      %493 = vmatprep.subr.mxu0 0.0
      %494 = vmatpush1.msra.mxu0 0.0
      %495 = vmatprep.subr.mxu0 0.0
      %496 = vmatpush1.msra.mxu0 0.0
      %497 = vmatprep.subr.mxu0 0.0
      %498 = vmatpush1.msra.mxu0 0.0
      %499 = vmatprep.subr.mxu0 0.0
      %500 = vmatpush1.msra.mxu0 0.0
      %501 = vmatprep.subr.mxu0 0.0
      %502 = vmatpush1.msra.mxu0 0.0
      %503 = vmatprep.subr.mxu0 0.0
      %504 = vmatpush1.msra.mxu0 0.0
      %505 = vmatprep.subr.mxu0 0.0
      %506 = vmatpush1.msra.mxu0 0.0
      %507 = vmatprep.subr.mxu0 0.0
      %508 = vmatpush1.msra.mxu0 0.0
      %509 = vmatprep.subr.mxu0 0.0
      %510 = vmatpush1.msra.mxu0 0.0
      %511 = vmatprep.subr.mxu0 0.0
      %512 = vmatpush1.msra.mxu0 0.0
      %513 = vmatprep.subr.mxu0 0.0
      %514 = vmatpush1.msra.mxu0 0.0
      %515 = vmatprep.subr.mxu0 0.0
      %516 = vmatpush1.msra.mxu0 0.0
      %517 = vmatprep.subr.mxu0 0.0
      %518 = vmatpush1.msra.mxu0 0.0
      %519 = vmatprep.subr.mxu0 0.0
      %520 = vmatpush1.msra.mxu0 0.0
      %521 = vmatprep.mubr.f32.mxu0 0.0
      %522 = vmatmul.mubr.f32.gmra.mrb[0].mxu0 %v375
      %v523 = vpop.f32.mrb[0].mxu0
      %v524 = vadd.f32 %v367, %v523
      %v525 = vpop.f32.mrb[0].mxu0
      %v526 = vadd.f32 %v367, %v525
      %527 = vdwg.mxu0
      %v528 = vmax.f32 %v453, 0.0
      %v529 = vmax.f32 %v455, 0.0
      %v530 = vmax.f32 %v524, 0.0
      %v531 = vmax.f32 %v526, 0.0
      %v532 = vld [vmem:[%s1] sm:$0xf]
      %v534 = vlaneseq
      %v535 = vshrl.u32 %v534, 7
      %v536 = vsub.s32 0, %v535
      %v537 = vrot.slane %v532, %v536
      %v538 = vlaneseq
      %v539 = vshrl.u32 %v538, 7
      %v540 = vsub.s32 1, %v539
      %v541 = vrot.slane %v532, %v540
      %v542 = vlaneseq
      %v543 = vshrl.u32 %v542, 7
      %v544 = vsub.s32 2, %v543
      %v545 = vrot.slane %v532, %v544
      %v546 = vlaneseq
      %v547 = vshrl.u32 %v546, 7
      %v548 = vsub.s32 3, %v547
      %v549 = vrot.slane %v532, %v548
      %v554 = vmul.f32 %v528, %v537
      %v555 = vmul.f32 %v529, %v541
      %v556 = vmul.f32 %v530, %v545
      %v557 = vmul.f32 %v531, %v549
      %v558 = vld [vmem:[%s5] sm:$0xff]
      %560 = vset.pattern.permute.xlu0 0
      %561 = vperm.xlu0 %560, %v558
      %v562 = vpop.permute.xlu0 %561
      %v564 = vadd.f32 %v562, 0.0
      %v565 = vld [vmem:[%s4] sm:$0xff]
      %vm566 = vcmask 64512
      %v568 = vsel %vm566, %v565, 0
      %570 = vmatprep.subr.mxu0 %v555
      %571 = vmatpush1.msra.mxu0 %v554
      %572 = vmatprep.subr.mxu0 0.0
      %573 = vmatpush1.msra.mxu0 0.0
      %574 = vmatprep.subr.mxu0 0.0
      %575 = vmatpush1.msra.mxu0 0.0
      %576 = vmatprep.subr.mxu0 0.0
      %577 = vmatpush1.msra.mxu0 0.0
      %578 = vmatprep.subr.mxu0 0.0
      %579 = vmatpush1.msra.mxu0 0.0
      %580 = vmatprep.subr.mxu0 0.0
      %581 = vmatpush1.msra.mxu0 0.0
      %582 = vmatprep.subr.mxu0 0.0
      %583 = vmatpush1.msra.mxu0 0.0
      %584 = vmatprep.subr.mxu0 0.0
      %585 = vmatpush1.msra.mxu0 0.0
      %586 = vmatprep.subr.mxu0 0.0
      %587 = vmatpush1.msra.mxu0 0.0
      %588 = vmatprep.subr.mxu0 0.0
      %589 = vmatpush1.msra.mxu0 0.0
      %590 = vmatprep.subr.mxu0 0.0
      %591 = vmatpush1.msra.mxu0 0.0
      %592 = vmatprep.subr.mxu0 0.0
      %593 = vmatpush1.msra.mxu0 0.0
      %594 = vmatprep.subr.mxu0 0.0
      %595 = vmatpush1.msra.mxu0 0.0
      %596 = vmatprep.subr.mxu0 0.0
      %597 = vmatpush1.msra.mxu0 0.0
      %598 = vmatprep.subr.mxu0 0.0
      %599 = vmatpush1.msra.mxu0 0.0
      %600 = vmatprep.subr.mxu0 0.0
      %601 = vmatpush1.msra.mxu0 0.0
      %602 = vmatprep.subr.mxu0 0.0
      %603 = vmatpush1.msra.mxu0 0.0
      %604 = vmatprep.subr.mxu0 0.0
      %605 = vmatpush1.msra.mxu0 0.0
      %606 = vmatprep.subr.mxu0 0.0
      %607 = vmatpush1.msra.mxu0 0.0
      %608 = vmatprep.subr.mxu0 0.0
      %609 = vmatpush1.msra.mxu0 0.0
      %610 = vmatprep.subr.mxu0 0.0
      %611 = vmatpush1.msra.mxu0 0.0
      %612 = vmatprep.subr.mxu0 0.0
      %613 = vmatpush1.msra.mxu0 0.0
      %614 = vmatprep.subr.mxu0 0.0
      %615 = vmatpush1.msra.mxu0 0.0
      %616 = vmatprep.subr.mxu0 0.0
      %617 = vmatpush1.msra.mxu0 0.0
      %618 = vmatprep.subr.mxu0 0.0
      %619 = vmatpush1.msra.mxu0 0.0
      %620 = vmatprep.subr.mxu0 0.0
      %621 = vmatpush1.msra.mxu0 0.0
      %622 = vmatprep.subr.mxu0 0.0
      %623 = vmatpush1.msra.mxu0 0.0
      %624 = vmatprep.subr.mxu0 0.0
      %625 = vmatpush1.msra.mxu0 0.0
      %626 = vmatprep.subr.mxu0 0.0
      %627 = vmatpush1.msra.mxu0 0.0
      %628 = vmatprep.subr.mxu0 0.0
      %629 = vmatpush1.msra.mxu0 0.0
      %630 = vmatprep.subr.mxu0 0.0
      %631 = vmatpush1.msra.mxu0 0.0
      %632 = vmatprep.subr.mxu0 0.0
      %633 = vmatpush1.msra.mxu0 0.0
      %634 = vmatprep.mubr.f32.mxu0 0.0
      %635 = vmatmul.mubr.f32.gmra.mrb[0].mxu0 %v568
      %v636 = vpop.f32.mrb[0].mxu0
      %v637 = vadd.f32 0.0, %v636
      %v638 = vpop.f32.mrb[0].mxu0
      %v639 = vadd.f32 0.0, %v638
      %640 = vdwg.mxu0
      %641 = vmatprep.subr.mxu0 0.0
      %642 = vmatpush1.msra.mxu0 %v556
      %643 = vmatprep.subr.mxu0 0.0
      %644 = vmatpush1.msra.mxu0 0.0
      %645 = vmatprep.subr.mxu0 0.0
      %646 = vmatpush1.msra.mxu0 0.0
      %647 = vmatprep.subr.mxu0 0.0
      %648 = vmatpush1.msra.mxu0 0.0
      %649 = vmatprep.subr.mxu0 0.0
      %650 = vmatpush1.msra.mxu0 0.0
      %651 = vmatprep.subr.mxu0 0.0
      %652 = vmatpush1.msra.mxu0 0.0
      %653 = vmatprep.subr.mxu0 0.0
      %654 = vmatpush1.msra.mxu0 0.0
      %655 = vmatprep.subr.mxu0 0.0
      %656 = vmatpush1.msra.mxu0 0.0
      %657 = vmatprep.subr.mxu0 0.0
      %658 = vmatpush1.msra.mxu0 0.0
      %659 = vmatprep.subr.mxu0 0.0
      %660 = vmatpush1.msra.mxu0 0.0
      %661 = vmatprep.subr.mxu0 0.0
      %662 = vmatpush1.msra.mxu0 0.0
      %663 = vmatprep.subr.mxu0 0.0
      %664 = vmatpush1.msra.mxu0 0.0
      %665 = vmatprep.subr.mxu0 0.0
      %666 = vmatpush1.msra.mxu0 0.0
      %667 = vmatprep.subr.mxu0 0.0
      %668 = vmatpush1.msra.mxu0 0.0
      %669 = vmatprep.subr.mxu0 0.0
      %670 = vmatpush1.msra.mxu0 0.0
      %671 = vmatprep.subr.mxu0 0.0
      %672 = vmatpush1.msra.mxu0 0.0
      %673 = vmatprep.subr.mxu0 0.0
      %674 = vmatpush1.msra.mxu0 0.0
      %675 = vmatprep.subr.mxu0 0.0
      %676 = vmatpush1.msra.mxu0 0.0
      %677 = vmatprep.subr.mxu0 0.0
      %678 = vmatpush1.msra.mxu0 0.0
      %679 = vmatprep.subr.mxu0 0.0
      %680 = vmatpush1.msra.mxu0 0.0
      %681 = vmatprep.subr.mxu0 0.0
      %682 = vmatpush1.msra.mxu0 0.0
      %683 = vmatprep.subr.mxu0 0.0
      %684 = vmatpush1.msra.mxu0 0.0
      %685 = vmatprep.subr.mxu0 0.0
      %686 = vmatpush1.msra.mxu0 0.0
      %687 = vmatprep.subr.mxu0 0.0
      %688 = vmatpush1.msra.mxu0 0.0
      %689 = vmatprep.subr.mxu0 0.0
      %690 = vmatpush1.msra.mxu0 0.0
      %691 = vmatprep.subr.mxu0 0.0
      %692 = vmatpush1.msra.mxu0 0.0
      %693 = vmatprep.subr.mxu0 0.0
      %694 = vmatpush1.msra.mxu0 0.0
      %695 = vmatprep.subr.mxu0 0.0
      %696 = vmatpush1.msra.mxu0 0.0
      %697 = vmatprep.subr.mxu0 0.0
      %698 = vmatpush1.msra.mxu0 0.0
      %699 = vmatprep.subr.mxu0 0.0
      %700 = vmatpush1.msra.mxu0 0.0
      %701 = vmatprep.subr.mxu0 0.0
      %702 = vmatpush1.msra.mxu0 0.0
      %703 = vmatprep.subr.mxu0 0.0
      %704 = vmatpush1.msra.mxu0 0.0
      %705 = vmatprep.mubr.f32.mxu0 0.0
      %706 = vmatmul.mubr.f32.gmra.mrb[0].mxu0 %v568
      %v707 = vpop.f32.mrb[0].mxu0
      %v708 = vadd.f32 0.0, %v707
      %v709 = vpop.f32.mrb[0].mxu0
      %710 = vdwg.mxu0
      %v711 = vadd.f32 %v564, %v637
      %v712 = vadd.f32 %v564, %v639
      %v713 = vadd.f32 %v564, %v708
      %s714 = scalar_lea.vmem %s4, 8
      %v715 = vld [vmem:[%s714] sm:$0xff]
      %720 = vrot.lane.b32.xlu0 %v554, 127
      %v721 = vpop.permute.xlu0 %720
      %722 = vrot.lane.b32.xlu0 %v555, 127
      %v723 = vpop.permute.xlu0 %722
      %724 = vrot.lane.b32.xlu0 %v556, 127
      %v725 = vpop.permute.xlu0 %724
      %726 = vrot.lane.b32.xlu0 %v557, 127
      %v727 = vpop.permute.xlu0 %726
      %vm728 = vcmask 1039360
      %v729 = vsel %vm728, %v721, %v723
      %v730 = vsel %vm728, %v723, %v725
      %v731 = vsel %vm728, %v725, %v727
      %v736 = vsel %vm566, %v715, 0
      %738 = vmatprep.subr.mxu0 %v730
      %739 = vmatpush1.msra.mxu0 %v729
      %740 = vmatprep.subr.mxu0 0.0
      %741 = vmatpush1.msra.mxu0 0.0
      %742 = vmatprep.subr.mxu0 0.0
      %743 = vmatpush1.msra.mxu0 0.0
      %744 = vmatprep.subr.mxu0 0.0
      %745 = vmatpush1.msra.mxu0 0.0
      %746 = vmatprep.subr.mxu0 0.0
      %747 = vmatpush1.msra.mxu0 0.0
      %748 = vmatprep.subr.mxu0 0.0
      %749 = vmatpush1.msra.mxu0 0.0
      %750 = vmatprep.subr.mxu0 0.0
      %751 = vmatpush1.msra.mxu0 0.0
      %752 = vmatprep.subr.mxu0 0.0
      %753 = vmatpush1.msra.mxu0 0.0
      %754 = vmatprep.subr.mxu0 0.0
      %755 = vmatpush1.msra.mxu0 0.0
      %756 = vmatprep.subr.mxu0 0.0
      %757 = vmatpush1.msra.mxu0 0.0
      %758 = vmatprep.subr.mxu0 0.0
      %759 = vmatpush1.msra.mxu0 0.0
      %760 = vmatprep.subr.mxu0 0.0
      %761 = vmatpush1.msra.mxu0 0.0
      %762 = vmatprep.subr.mxu0 0.0
      %763 = vmatpush1.msra.mxu0 0.0
      %764 = vmatprep.subr.mxu0 0.0
      %765 = vmatpush1.msra.mxu0 0.0
      %766 = vmatprep.subr.mxu0 0.0
      %767 = vmatpush1.msra.mxu0 0.0
      %768 = vmatprep.subr.mxu0 0.0
      %769 = vmatpush1.msra.mxu0 0.0
      %770 = vmatprep.subr.mxu0 0.0
      %771 = vmatpush1.msra.mxu0 0.0
      %772 = vmatprep.subr.mxu0 0.0
      %773 = vmatpush1.msra.mxu0 0.0
      %774 = vmatprep.subr.mxu0 0.0
      %775 = vmatpush1.msra.mxu0 0.0
      %776 = vmatprep.subr.mxu0 0.0
      %777 = vmatpush1.msra.mxu0 0.0
      %778 = vmatprep.subr.mxu0 0.0
      %779 = vmatpush1.msra.mxu0 0.0
      %780 = vmatprep.subr.mxu0 0.0
      %781 = vmatpush1.msra.mxu0 0.0
      %782 = vmatprep.subr.mxu0 0.0
      %783 = vmatpush1.msra.mxu0 0.0
      %784 = vmatprep.subr.mxu0 0.0
      %785 = vmatpush1.msra.mxu0 0.0
      %786 = vmatprep.subr.mxu0 0.0
      %787 = vmatpush1.msra.mxu0 0.0
      %788 = vmatprep.subr.mxu0 0.0
      %789 = vmatpush1.msra.mxu0 0.0
      %790 = vmatprep.subr.mxu0 0.0
      %791 = vmatpush1.msra.mxu0 0.0
      %792 = vmatprep.subr.mxu0 0.0
      %793 = vmatpush1.msra.mxu0 0.0
      %794 = vmatprep.subr.mxu0 0.0
      %795 = vmatpush1.msra.mxu0 0.0
      %796 = vmatprep.subr.mxu0 0.0
      %797 = vmatpush1.msra.mxu0 0.0
      %798 = vmatprep.subr.mxu0 0.0
      %799 = vmatpush1.msra.mxu0 0.0
      %800 = vmatprep.subr.mxu0 0.0
      %801 = vmatpush1.msra.mxu0 0.0
      %802 = vmatprep.mubr.f32.mxu0 0.0
      %803 = vmatmul.mubr.f32.gmra.mrb[0].mxu0 %v736
      %v804 = vpop.f32.mrb[0].mxu0
      %v805 = vadd.f32 0.0, %v804
      %v806 = vpop.f32.mrb[0].mxu0
      %v807 = vadd.f32 0.0, %v806
      %808 = vdwg.mxu0
      %809 = vmatprep.subr.mxu0 0.0
      %810 = vmatpush1.msra.mxu0 %v731
      %811 = vmatprep.subr.mxu0 0.0
      %812 = vmatpush1.msra.mxu0 0.0
      %813 = vmatprep.subr.mxu0 0.0
      %814 = vmatpush1.msra.mxu0 0.0
      %815 = vmatprep.subr.mxu0 0.0
      %816 = vmatpush1.msra.mxu0 0.0
      %817 = vmatprep.subr.mxu0 0.0
      %818 = vmatpush1.msra.mxu0 0.0
      %819 = vmatprep.subr.mxu0 0.0
      %820 = vmatpush1.msra.mxu0 0.0
      %821 = vmatprep.subr.mxu0 0.0
      %822 = vmatpush1.msra.mxu0 0.0
      %823 = vmatprep.subr.mxu0 0.0
      %824 = vmatpush1.msra.mxu0 0.0
      %825 = vmatprep.subr.mxu0 0.0
      %826 = vmatpush1.msra.mxu0 0.0
      %827 = vmatprep.subr.mxu0 0.0
      %828 = vmatpush1.msra.mxu0 0.0
      %829 = vmatprep.subr.mxu0 0.0
      %830 = vmatpush1.msra.mxu0 0.0
      %831 = vmatprep.subr.mxu0 0.0
      %832 = vmatpush1.msra.mxu0 0.0
      %833 = vmatprep.subr.mxu0 0.0
      %834 = vmatpush1.msra.mxu0 0.0
      %835 = vmatprep.subr.mxu0 0.0
      %836 = vmatpush1.msra.mxu0 0.0
      %837 = vmatprep.subr.mxu0 0.0
      %838 = vmatpush1.msra.mxu0 0.0
      %839 = vmatprep.subr.mxu0 0.0
      %840 = vmatpush1.msra.mxu0 0.0
      %841 = vmatprep.subr.mxu0 0.0
      %842 = vmatpush1.msra.mxu0 0.0
      %843 = vmatprep.subr.mxu0 0.0
      %844 = vmatpush1.msra.mxu0 0.0
      %845 = vmatprep.subr.mxu0 0.0
      %846 = vmatpush1.msra.mxu0 0.0
      %847 = vmatprep.subr.mxu0 0.0
      %848 = vmatpush1.msra.mxu0 0.0
      %849 = vmatprep.subr.mxu0 0.0
      %850 = vmatpush1.msra.mxu0 0.0
      %851 = vmatprep.subr.mxu0 0.0
      %852 = vmatpush1.msra.mxu0 0.0
      %853 = vmatprep.subr.mxu0 0.0
      %854 = vmatpush1.msra.mxu0 0.0
      %855 = vmatprep.subr.mxu0 0.0
      %856 = vmatpush1.msra.mxu0 0.0
      %857 = vmatprep.subr.mxu0 0.0
      %858 = vmatpush1.msra.mxu0 0.0
      %859 = vmatprep.subr.mxu0 0.0
      %860 = vmatpush1.msra.mxu0 0.0
      %861 = vmatprep.subr.mxu0 0.0
      %862 = vmatpush1.msra.mxu0 0.0
      %863 = vmatprep.subr.mxu0 0.0
      %864 = vmatpush1.msra.mxu0 0.0
      %865 = vmatprep.subr.mxu0 0.0
      %866 = vmatpush1.msra.mxu0 0.0
      %867 = vmatprep.subr.mxu0 0.0
      %868 = vmatpush1.msra.mxu0 0.0
      %869 = vmatprep.subr.mxu0 0.0
      %870 = vmatpush1.msra.mxu0 0.0
      %871 = vmatprep.subr.mxu0 0.0
      %872 = vmatpush1.msra.mxu0 0.0
      %873 = vmatprep.mubr.f32.mxu0 0.0
      %874 = vmatmul.mubr.f32.gmra.mrb[0].mxu0 %v736
      %v875 = vpop.f32.mrb[0].mxu0
      %v876 = vadd.f32 0.0, %v875
      %v877 = vpop.f32.mrb[0].mxu0
      %878 = vdwg.mxu0
      %v879 = vadd.f32 %v711, %v805
      %v880 = vadd.f32 %v712, %v807
      %v881 = vadd.f32 %v713, %v876
      %s882 = scalar_lea.vmem %s4, 16
      %v883 = vld [vmem:[%s882] sm:$0xff]
      %884 = vrot.lane.b32.xlu0 %v554, 126
      %v885 = vpop.permute.xlu0 %884
      %886 = vrot.lane.b32.xlu0 %v555, 126
      %v887 = vpop.permute.xlu0 %886
      %888 = vrot.lane.b32.xlu0 %v556, 126
      %v889 = vpop.permute.xlu0 %888
      %890 = vrot.lane.b32.xlu0 %v557, 126
      %v891 = vpop.permute.xlu0 %890
      %vm892 = vcmask 1031168
      %v893 = vsel %vm892, %v885, %v887
      %v894 = vsel %vm892, %v887, %v889
      %v895 = vsel %vm892, %v889, %v891
      %v900 = vsel %vm566, %v883, 0
      %902 = vmatprep.subr.mxu0 %v894
      %903 = vmatpush1.msra.mxu0 %v893
      %904 = vmatprep.subr.mxu0 0.0
      %905 = vmatpush1.msra.mxu0 0.0
      %906 = vmatprep.subr.mxu0 0.0
      %907 = vmatpush1.msra.mxu0 0.0
      %908 = vmatprep.subr.mxu0 0.0
      %909 = vmatpush1.msra.mxu0 0.0
      %910 = vmatprep.subr.mxu0 0.0
      %911 = vmatpush1.msra.mxu0 0.0
      %912 = vmatprep.subr.mxu0 0.0
      %913 = vmatpush1.msra.mxu0 0.0
      %914 = vmatprep.subr.mxu0 0.0
      %915 = vmatpush1.msra.mxu0 0.0
      %916 = vmatprep.subr.mxu0 0.0
      %917 = vmatpush1.msra.mxu0 0.0
      %918 = vmatprep.subr.mxu0 0.0
      %919 = vmatpush1.msra.mxu0 0.0
      %920 = vmatprep.subr.mxu0 0.0
      %921 = vmatpush1.msra.mxu0 0.0
      %922 = vmatprep.subr.mxu0 0.0
      %923 = vmatpush1.msra.mxu0 0.0
      %924 = vmatprep.subr.mxu0 0.0
      %925 = vmatpush1.msra.mxu0 0.0
      %926 = vmatprep.subr.mxu0 0.0
      %927 = vmatpush1.msra.mxu0 0.0
      %928 = vmatprep.subr.mxu0 0.0
      %929 = vmatpush1.msra.mxu0 0.0
      %930 = vmatprep.subr.mxu0 0.0
      %931 = vmatpush1.msra.mxu0 0.0
      %932 = vmatprep.subr.mxu0 0.0
      %933 = vmatpush1.msra.mxu0 0.0
      %934 = vmatprep.subr.mxu0 0.0
      %935 = vmatpush1.msra.mxu0 0.0
      %936 = vmatprep.subr.mxu0 0.0
      %937 = vmatpush1.msra.mxu0 0.0
      %938 = vmatprep.subr.mxu0 0.0
      %939 = vmatpush1.msra.mxu0 0.0
      %940 = vmatprep.subr.mxu0 0.0
      %941 = vmatpush1.msra.mxu0 0.0
      %942 = vmatprep.subr.mxu0 0.0
      %943 = vmatpush1.msra.mxu0 0.0
      %944 = vmatprep.subr.mxu0 0.0
      %945 = vmatpush1.msra.mxu0 0.0
      %946 = vmatprep.subr.mxu0 0.0
      %947 = vmatpush1.msra.mxu0 0.0
      %948 = vmatprep.subr.mxu0 0.0
      %949 = vmatpush1.msra.mxu0 0.0
      %950 = vmatprep.subr.mxu0 0.0
      %951 = vmatpush1.msra.mxu0 0.0
      %952 = vmatprep.subr.mxu0 0.0
      %953 = vmatpush1.msra.mxu0 0.0
      %954 = vmatprep.subr.mxu0 0.0
      %955 = vmatpush1.msra.mxu0 0.0
      %956 = vmatprep.subr.mxu0 0.0
      %957 = vmatpush1.msra.mxu0 0.0
      %958 = vmatprep.subr.mxu0 0.0
      %959 = vmatpush1.msra.mxu0 0.0
      %960 = vmatprep.subr.mxu0 0.0
      %961 = vmatpush1.msra.mxu0 0.0
      %962 = vmatprep.subr.mxu0 0.0
      %963 = vmatpush1.msra.mxu0 0.0
      %964 = vmatprep.subr.mxu0 0.0
      %965 = vmatpush1.msra.mxu0 0.0
      %966 = vmatprep.mubr.f32.mxu0 0.0
      %967 = vmatmul.mubr.f32.gmra.mrb[0].mxu0 %v900
      %v968 = vpop.f32.mrb[0].mxu0
      %v969 = vadd.f32 0.0, %v968
      %v970 = vpop.f32.mrb[0].mxu0
      %v971 = vadd.f32 0.0, %v970
      %972 = vdwg.mxu0
      %973 = vmatprep.subr.mxu0 0.0
      %974 = vmatpush1.msra.mxu0 %v895
      %975 = vmatprep.subr.mxu0 0.0
      %976 = vmatpush1.msra.mxu0 0.0
      %977 = vmatprep.subr.mxu0 0.0
      %978 = vmatpush1.msra.mxu0 0.0
      %979 = vmatprep.subr.mxu0 0.0
      %980 = vmatpush1.msra.mxu0 0.0
      %981 = vmatprep.subr.mxu0 0.0
      %982 = vmatpush1.msra.mxu0 0.0
      %983 = vmatprep.subr.mxu0 0.0
      %984 = vmatpush1.msra.mxu0 0.0
      %985 = vmatprep.subr.mxu0 0.0
      %986 = vmatpush1.msra.mxu0 0.0
      %987 = vmatprep.subr.mxu0 0.0
      %988 = vmatpush1.msra.mxu0 0.0
      %989 = vmatprep.subr.mxu0 0.0
      %990 = vmatpush1.msra.mxu0 0.0
      %991 = vmatprep.subr.mxu0 0.0
      %992 = vmatpush1.msra.mxu0 0.0
      %993 = vmatprep.subr.mxu0 0.0
      %994 = vmatpush1.msra.mxu0 0.0
      %995 = vmatprep.subr.mxu0 0.0
      %996 = vmatpush1.msra.mxu0 0.0
      %997 = vmatprep.subr.mxu0 0.0
      %998 = vmatpush1.msra.mxu0 0.0
      %999 = vmatprep.subr.mxu0 0.0
      %1000 = vmatpush1.msra.mxu0 0.0
      %1001 = vmatprep.subr.mxu0 0.0
      %1002 = vmatpush1.msra.mxu0 0.0
      %1003 = vmatprep.subr.mxu0 0.0
      %1004 = vmatpush1.msra.mxu0 0.0
      %1005 = vmatprep.subr.mxu0 0.0
      %1006 = vmatpush1.msra.mxu0 0.0
      %1007 = vmatprep.subr.mxu0 0.0
      %1008 = vmatpush1.msra.mxu0 0.0
      %1009 = vmatprep.subr.mxu0 0.0
      %1010 = vmatpush1.msra.mxu0 0.0
      %1011 = vmatprep.subr.mxu0 0.0
      %1012 = vmatpush1.msra.mxu0 0.0
      %1013 = vmatprep.subr.mxu0 0.0
      %1014 = vmatpush1.msra.mxu0 0.0
      %1015 = vmatprep.subr.mxu0 0.0
      %1016 = vmatpush1.msra.mxu0 0.0
      %1017 = vmatprep.subr.mxu0 0.0
      %1018 = vmatpush1.msra.mxu0 0.0
      %1019 = vmatprep.subr.mxu0 0.0
      %1020 = vmatpush1.msra.mxu0 0.0
      %1021 = vmatprep.subr.mxu0 0.0
      %1022 = vmatpush1.msra.mxu0 0.0
      %1023 = vmatprep.subr.mxu0 0.0
      %1024 = vmatpush1.msra.mxu0 0.0
      %1025 = vmatprep.subr.mxu0 0.0
      %1026 = vmatpush1.msra.mxu0 0.0
      %1027 = vmatprep.subr.mxu0 0.0
      %1028 = vmatpush1.msra.mxu0 0.0
      %1029 = vmatprep.subr.mxu0 0.0
      %1030 = vmatpush1.msra.mxu0 0.0
      %1031 = vmatprep.subr.mxu0 0.0
      %1032 = vmatpush1.msra.mxu0 0.0
      %1033 = vmatprep.subr.mxu0 0.0
      %1034 = vmatpush1.msra.mxu0 0.0
      %1035 = vmatprep.subr.mxu0 0.0
      %1036 = vmatpush1.msra.mxu0 0.0
      %1037 = vmatprep.mubr.f32.mxu0 0.0
      %1038 = vmatmul.mubr.f32.gmra.mrb[0].mxu0 %v900
      %v1039 = vpop.f32.mrb[0].mxu0
      %v1040 = vadd.f32 0.0, %v1039
      %v1041 = vpop.f32.mrb[0].mxu0
      %1042 = vdwg.mxu0
      %v1043 = vadd.f32 %v879, %v969
      %v1044 = vadd.f32 %v880, %v971
      %v1045 = vadd.f32 %v881, %v1040
      %s1046 = scalar_lea.vmem %s4, 24
      %v1047 = vld [vmem:[%s1046] sm:$0xff]
      %1048 = vrot.lane.b32.xlu0 %v554, 110
      %v1049 = vpop.permute.xlu0 %1048
      %1050 = vrot.lane.b32.xlu0 %v555, 110
      %v1051 = vpop.permute.xlu0 %1050
      %1052 = vrot.lane.b32.xlu0 %v556, 110
      %v1053 = vpop.permute.xlu0 %1052
      %1054 = vrot.lane.b32.xlu0 %v557, 110
      %v1055 = vpop.permute.xlu0 %1054
      %vm1056 = vcmask 900096
      %v1057 = vsel %vm1056, %v1049, %v1051
      %v1058 = vsel %vm1056, %v1051, %v1053
      %v1059 = vsel %vm1056, %v1053, %v1055
      %v1064 = vsel %vm566, %v1047, 0
      %1066 = vmatprep.subr.mxu0 %v1058
      %1067 = vmatpush1.msra.mxu0 %v1057
      %1068 = vmatprep.subr.mxu0 0.0
      %1069 = vmatpush1.msra.mxu0 0.0
      %1070 = vmatprep.subr.mxu0 0.0
      %1071 = vmatpush1.msra.mxu0 0.0
      %1072 = vmatprep.subr.mxu0 0.0
      %1073 = vmatpush1.msra.mxu0 0.0
      %1074 = vmatprep.subr.mxu0 0.0
      %1075 = vmatpush1.msra.mxu0 0.0
      %1076 = vmatprep.subr.mxu0 0.0
      %1077 = vmatpush1.msra.mxu0 0.0
      %1078 = vmatprep.subr.mxu0 0.0
      %1079 = vmatpush1.msra.mxu0 0.0
      %1080 = vmatprep.subr.mxu0 0.0
      %1081 = vmatpush1.msra.mxu0 0.0
      %1082 = vmatprep.subr.mxu0 0.0
      %1083 = vmatpush1.msra.mxu0 0.0
      %1084 = vmatprep.subr.mxu0 0.0
      %1085 = vmatpush1.msra.mxu0 0.0
      %1086 = vmatprep.subr.mxu0 0.0
      %1087 = vmatpush1.msra.mxu0 0.0
      %1088 = vmatprep.subr.mxu0 0.0
      %1089 = vmatpush1.msra.mxu0 0.0
      %1090 = vmatprep.subr.mxu0 0.0
      %1091 = vmatpush1.msra.mxu0 0.0
      %1092 = vmatprep.subr.mxu0 0.0
      %1093 = vmatpush1.msra.mxu0 0.0
      %1094 = vmatprep.subr.mxu0 0.0
      %1095 = vmatpush1.msra.mxu0 0.0
      %1096 = vmatprep.subr.mxu0 0.0
      %1097 = vmatpush1.msra.mxu0 0.0
      %1098 = vmatprep.subr.mxu0 0.0
      %1099 = vmatpush1.msra.mxu0 0.0
      %1100 = vmatprep.subr.mxu0 0.0
      %1101 = vmatpush1.msra.mxu0 0.0
      %1102 = vmatprep.subr.mxu0 0.0
      %1103 = vmatpush1.msra.mxu0 0.0
      %1104 = vmatprep.subr.mxu0 0.0
      %1105 = vmatpush1.msra.mxu0 0.0
      %1106 = vmatprep.subr.mxu0 0.0
      %1107 = vmatpush1.msra.mxu0 0.0
      %1108 = vmatprep.subr.mxu0 0.0
      %1109 = vmatpush1.msra.mxu0 0.0
      %1110 = vmatprep.subr.mxu0 0.0
      %1111 = vmatpush1.msra.mxu0 0.0
      %1112 = vmatprep.subr.mxu0 0.0
      %1113 = vmatpush1.msra.mxu0 0.0
      %1114 = vmatprep.subr.mxu0 0.0
      %1115 = vmatpush1.msra.mxu0 0.0
      %1116 = vmatprep.subr.mxu0 0.0
      %1117 = vmatpush1.msra.mxu0 0.0
      %1118 = vmatprep.subr.mxu0 0.0
      %1119 = vmatpush1.msra.mxu0 0.0
      %1120 = vmatprep.subr.mxu0 0.0
      %1121 = vmatpush1.msra.mxu0 0.0
      %1122 = vmatprep.subr.mxu0 0.0
      %1123 = vmatpush1.msra.mxu0 0.0
      %1124 = vmatprep.subr.mxu0 0.0
      %1125 = vmatpush1.msra.mxu0 0.0
      %1126 = vmatprep.subr.mxu0 0.0
      %1127 = vmatpush1.msra.mxu0 0.0
      %1128 = vmatprep.subr.mxu0 0.0
      %1129 = vmatpush1.msra.mxu0 0.0
      %1130 = vmatprep.mubr.f32.mxu0 0.0
      %1131 = vmatmul.mubr.f32.gmra.mrb[0].mxu0 %v1064
      %v1132 = vpop.f32.mrb[0].mxu0
      %v1133 = vadd.f32 0.0, %v1132
      %v1134 = vpop.f32.mrb[0].mxu0
      %v1135 = vadd.f32 0.0, %v1134
      %1136 = vdwg.mxu0
      %1137 = vmatprep.subr.mxu0 0.0
      %1138 = vmatpush1.msra.mxu0 %v1059
      %1139 = vmatprep.subr.mxu0 0.0
      %1140 = vmatpush1.msra.mxu0 0.0
      %1141 = vmatprep.subr.mxu0 0.0
      %1142 = vmatpush1.msra.mxu0 0.0
      %1143 = vmatprep.subr.mxu0 0.0
      %1144 = vmatpush1.msra.mxu0 0.0
      %1145 = vmatprep.subr.mxu0 0.0
      %1146 = vmatpush1.msra.mxu0 0.0
      %1147 = vmatprep.subr.mxu0 0.0
      %1148 = vmatpush1.msra.mxu0 0.0
      %1149 = vmatprep.subr.mxu0 0.0
      %1150 = vmatpush1.msra.mxu0 0.0
      %1151 = vmatprep.subr.mxu0 0.0
      %1152 = vmatpush1.msra.mxu0 0.0
      %1153 = vmatprep.subr.mxu0 0.0
      %1154 = vmatpush1.msra.mxu0 0.0
      %1155 = vmatprep.subr.mxu0 0.0
      %1156 = vmatpush1.msra.mxu0 0.0
      %1157 = vmatprep.subr.mxu0 0.0
      %1158 = vmatpush1.msra.mxu0 0.0
      %1159 = vmatprep.subr.mxu0 0.0
      %1160 = vmatpush1.msra.mxu0 0.0
      %1161 = vmatprep.subr.mxu0 0.0
      %1162 = vmatpush1.msra.mxu0 0.0
      %1163 = vmatprep.subr.mxu0 0.0
      %1164 = vmatpush1.msra.mxu0 0.0
      %1165 = vmatprep.subr.mxu0 0.0
      %1166 = vmatpush1.msra.mxu0 0.0
      %1167 = vmatprep.subr.mxu0 0.0
      %1168 = vmatpush1.msra.mxu0 0.0
      %1169 = vmatprep.subr.mxu0 0.0
      %1170 = vmatpush1.msra.mxu0 0.0
      %1171 = vmatprep.subr.mxu0 0.0
      %1172 = vmatpush1.msra.mxu0 0.0
      %1173 = vmatprep.subr.mxu0 0.0
      %1174 = vmatpush1.msra.mxu0 0.0
      %1175 = vmatprep.subr.mxu0 0.0
      %1176 = vmatpush1.msra.mxu0 0.0
      %1177 = vmatprep.subr.mxu0 0.0
      %1178 = vmatpush1.msra.mxu0 0.0
      %1179 = vmatprep.subr.mxu0 0.0
      %1180 = vmatpush1.msra.mxu0 0.0
      %1181 = vmatprep.subr.mxu0 0.0
      %1182 = vmatpush1.msra.mxu0 0.0
      %1183 = vmatprep.subr.mxu0 0.0
      %1184 = vmatpush1.msra.mxu0 0.0
      %1185 = vmatprep.subr.mxu0 0.0
      %1186 = vmatpush1.msra.mxu0 0.0
      %1187 = vmatprep.subr.mxu0 0.0
      %1188 = vmatpush1.msra.mxu0 0.0
      %1189 = vmatprep.subr.mxu0 0.0
      %1190 = vmatpush1.msra.mxu0 0.0
      %1191 = vmatprep.subr.mxu0 0.0
      %1192 = vmatpush1.msra.mxu0 0.0
      %1193 = vmatprep.subr.mxu0 0.0
      %1194 = vmatpush1.msra.mxu0 0.0
      %1195 = vmatprep.subr.mxu0 0.0
      %1196 = vmatpush1.msra.mxu0 0.0
      %1197 = vmatprep.subr.mxu0 0.0
      %1198 = vmatpush1.msra.mxu0 0.0
      %1199 = vmatprep.subr.mxu0 0.0
      %1200 = vmatpush1.msra.mxu0 0.0
      %1201 = vmatprep.mubr.f32.mxu0 0.0
      %1202 = vmatmul.mubr.f32.gmra.mrb[0].mxu0 %v1064
      %v1203 = vpop.f32.mrb[0].mxu0
      %v1204 = vadd.f32 0.0, %v1203
      %v1205 = vpop.f32.mrb[0].mxu0
      %1206 = vdwg.mxu0
      %v1207 = vadd.f32 %v1043, %v1133
      %v1208 = vadd.f32 %v1044, %v1135
      %v1209 = vadd.f32 %v1045, %v1204
      %s1210 = scalar_lea.vmem %s4, 32
      %v1211 = vld [vmem:[%s1210] sm:$0xff]
      %1212 = vrot.lane.b32.xlu0 %v554, 109
      %v1213 = vpop.permute.xlu0 %1212
      %1214 = vrot.lane.b32.xlu0 %v555, 109
      %v1215 = vpop.permute.xlu0 %1214
      %1216 = vrot.lane.b32.xlu0 %v556, 109
      %v1217 = vpop.permute.xlu0 %1216
      %1218 = vrot.lane.b32.xlu0 %v557, 109
      %v1219 = vpop.permute.xlu0 %1218
      %vm1220 = vcmask 891904
      %v1221 = vsel %vm1220, %v1213, %v1215
      %v1222 = vsel %vm1220, %v1215, %v1217
      %v1223 = vsel %vm1220, %v1217, %v1219
      %v1228 = vsel %vm566, %v1211, 0
      %1230 = vmatprep.subr.mxu0 %v1222
      %1231 = vmatpush1.msra.mxu0 %v1221
      %1232 = vmatprep.subr.mxu0 0.0
      %1233 = vmatpush1.msra.mxu0 0.0
      %1234 = vmatprep.subr.mxu0 0.0
      %1235 = vmatpush1.msra.mxu0 0.0
      %1236 = vmatprep.subr.mxu0 0.0
      %1237 = vmatpush1.msra.mxu0 0.0
      %1238 = vmatprep.subr.mxu0 0.0
      %1239 = vmatpush1.msra.mxu0 0.0
      %1240 = vmatprep.subr.mxu0 0.0
      %1241 = vmatpush1.msra.mxu0 0.0
      %1242 = vmatprep.subr.mxu0 0.0
      %1243 = vmatpush1.msra.mxu0 0.0
      %1244 = vmatprep.subr.mxu0 0.0
      %1245 = vmatpush1.msra.mxu0 0.0
      %1246 = vmatprep.subr.mxu0 0.0
      %1247 = vmatpush1.msra.mxu0 0.0
      %1248 = vmatprep.subr.mxu0 0.0
      %1249 = vmatpush1.msra.mxu0 0.0
      %1250 = vmatprep.subr.mxu0 0.0
      %1251 = vmatpush1.msra.mxu0 0.0
      %1252 = vmatprep.subr.mxu0 0.0
      %1253 = vmatpush1.msra.mxu0 0.0
      %1254 = vmatprep.subr.mxu0 0.0
      %1255 = vmatpush1.msra.mxu0 0.0
      %1256 = vmatprep.subr.mxu0 0.0
      %1257 = vmatpush1.msra.mxu0 0.0
      %1258 = vmatprep.subr.mxu0 0.0
      %1259 = vmatpush1.msra.mxu0 0.0
      %1260 = vmatprep.subr.mxu0 0.0
      %1261 = vmatpush1.msra.mxu0 0.0
      %1262 = vmatprep.subr.mxu0 0.0
      %1263 = vmatpush1.msra.mxu0 0.0
      %1264 = vmatprep.subr.mxu0 0.0
      %1265 = vmatpush1.msra.mxu0 0.0
      %1266 = vmatprep.subr.mxu0 0.0
      %1267 = vmatpush1.msra.mxu0 0.0
      %1268 = vmatprep.subr.mxu0 0.0
      %1269 = vmatpush1.msra.mxu0 0.0
      %1270 = vmatprep.subr.mxu0 0.0
      %1271 = vmatpush1.msra.mxu0 0.0
      %1272 = vmatprep.subr.mxu0 0.0
      %1273 = vmatpush1.msra.mxu0 0.0
      %1274 = vmatprep.subr.mxu0 0.0
      %1275 = vmatpush1.msra.mxu0 0.0
      %1276 = vmatprep.subr.mxu0 0.0
      %1277 = vmatpush1.msra.mxu0 0.0
      %1278 = vmatprep.subr.mxu0 0.0
      %1279 = vmatpush1.msra.mxu0 0.0
      %1280 = vmatprep.subr.mxu0 0.0
      %1281 = vmatpush1.msra.mxu0 0.0
      %1282 = vmatprep.subr.mxu0 0.0
      %1283 = vmatpush1.msra.mxu0 0.0
      %1284 = vmatprep.subr.mxu0 0.0
      %1285 = vmatpush1.msra.mxu0 0.0
      %1286 = vmatprep.subr.mxu0 0.0
      %1287 = vmatpush1.msra.mxu0 0.0
      %1288 = vmatprep.subr.mxu0 0.0
      %1289 = vmatpush1.msra.mxu0 0.0
      %1290 = vmatprep.subr.mxu0 0.0
      %1291 = vmatpush1.msra.mxu0 0.0
      %1292 = vmatprep.subr.mxu0 0.0
      %1293 = vmatpush1.msra.mxu0 0.0
      %1294 = vmatprep.mubr.f32.mxu0 0.0
      %1295 = vmatmul.mubr.f32.gmra.mrb[0].mxu0 %v1228
      %v1296 = vpop.f32.mrb[0].mxu0
      %v1297 = vadd.f32 0.0, %v1296
      %v1298 = vpop.f32.mrb[0].mxu0
      %v1299 = vadd.f32 0.0, %v1298
      %1300 = vdwg.mxu0
      %1301 = vmatprep.subr.mxu0 0.0
      %1302 = vmatpush1.msra.mxu0 %v1223
      %1303 = vmatprep.subr.mxu0 0.0
      %1304 = vmatpush1.msra.mxu0 0.0
      %1305 = vmatprep.subr.mxu0 0.0
      %1306 = vmatpush1.msra.mxu0 0.0
      %1307 = vmatprep.subr.mxu0 0.0
      %1308 = vmatpush1.msra.mxu0 0.0
      %1309 = vmatprep.subr.mxu0 0.0
      %1310 = vmatpush1.msra.mxu0 0.0
      %1311 = vmatprep.subr.mxu0 0.0
      %1312 = vmatpush1.msra.mxu0 0.0
      %1313 = vmatprep.subr.mxu0 0.0
      %1314 = vmatpush1.msra.mxu0 0.0
      %1315 = vmatprep.subr.mxu0 0.0
      %1316 = vmatpush1.msra.mxu0 0.0
      %1317 = vmatprep.subr.mxu0 0.0
      %1318 = vmatpush1.msra.mxu0 0.0
      %1319 = vmatprep.subr.mxu0 0.0
      %1320 = vmatpush1.msra.mxu0 0.0
      %1321 = vmatprep.subr.mxu0 0.0
      %1322 = vmatpush1.msra.mxu0 0.0
      %1323 = vmatprep.subr.mxu0 0.0
      %1324 = vmatpush1.msra.mxu0 0.0
      %1325 = vmatprep.subr.mxu0 0.0
      %1326 = vmatpush1.msra.mxu0 0.0
      %1327 = vmatprep.subr.mxu0 0.0
      %1328 = vmatpush1.msra.mxu0 0.0
      %1329 = vmatprep.subr.mxu0 0.0
      %1330 = vmatpush1.msra.mxu0 0.0
      %1331 = vmatprep.subr.mxu0 0.0
      %1332 = vmatpush1.msra.mxu0 0.0
      %1333 = vmatprep.subr.mxu0 0.0
      %1334 = vmatpush1.msra.mxu0 0.0
      %1335 = vmatprep.subr.mxu0 0.0
      %1336 = vmatpush1.msra.mxu0 0.0
      %1337 = vmatprep.subr.mxu0 0.0
      %1338 = vmatpush1.msra.mxu0 0.0
      %1339 = vmatprep.subr.mxu0 0.0
      %1340 = vmatpush1.msra.mxu0 0.0
      %1341 = vmatprep.subr.mxu0 0.0
      %1342 = vmatpush1.msra.mxu0 0.0
      %1343 = vmatprep.subr.mxu0 0.0
      %1344 = vmatpush1.msra.mxu0 0.0
      %1345 = vmatprep.subr.mxu0 0.0
      %1346 = vmatpush1.msra.mxu0 0.0
      %1347 = vmatprep.subr.mxu0 0.0
      %1348 = vmatpush1.msra.mxu0 0.0
      %1349 = vmatprep.subr.mxu0 0.0
      %1350 = vmatpush1.msra.mxu0 0.0
      %1351 = vmatprep.subr.mxu0 0.0
      %1352 = vmatpush1.msra.mxu0 0.0
      %1353 = vmatprep.subr.mxu0 0.0
      %1354 = vmatpush1.msra.mxu0 0.0
      %1355 = vmatprep.subr.mxu0 0.0
      %1356 = vmatpush1.msra.mxu0 0.0
      %1357 = vmatprep.subr.mxu0 0.0
      %1358 = vmatpush1.msra.mxu0 0.0
      %1359 = vmatprep.subr.mxu0 0.0
      %1360 = vmatpush1.msra.mxu0 0.0
      %1361 = vmatprep.subr.mxu0 0.0
      %1362 = vmatpush1.msra.mxu0 0.0
      %1363 = vmatprep.subr.mxu0 0.0
      %1364 = vmatpush1.msra.mxu0 0.0
      %1365 = vmatprep.mubr.f32.mxu0 0.0
      %1366 = vmatmul.mubr.f32.gmra.mrb[0].mxu0 %v1228
      %v1367 = vpop.f32.mrb[0].mxu0
      %v1368 = vadd.f32 0.0, %v1367
      %v1369 = vpop.f32.mrb[0].mxu0
      %1370 = vdwg.mxu0
      %v1371 = vadd.f32 %v1207, %v1297
      %v1372 = vadd.f32 %v1208, %v1299
      %v1373 = vadd.f32 %v1209, %v1368
      %s1374 = scalar_lea.vmem %s4, 40
      %v1375 = vld [vmem:[%s1374] sm:$0xff]
      %1376 = vrot.lane.b32.xlu0 %v554, 108
      %v1377 = vpop.permute.xlu0 %1376
      %1378 = vrot.lane.b32.xlu0 %v555, 108
      %v1379 = vpop.permute.xlu0 %1378
      %1380 = vrot.lane.b32.xlu0 %v556, 108
      %v1381 = vpop.permute.xlu0 %1380
      %1382 = vrot.lane.b32.xlu0 %v557, 108
      %v1383 = vpop.permute.xlu0 %1382
      %vm1384 = vcmask 883712
      %v1385 = vsel %vm1384, %v1377, %v1379
      %v1386 = vsel %vm1384, %v1379, %v1381
      %v1387 = vsel %vm1384, %v1381, %v1383
      %v1392 = vsel %vm566, %v1375, 0
      %1394 = vmatprep.subr.mxu0 %v1386
      %1395 = vmatpush1.msra.mxu0 %v1385
      %1396 = vmatprep.subr.mxu0 0.0
      %1397 = vmatpush1.msra.mxu0 0.0
      %1398 = vmatprep.subr.mxu0 0.0
      %1399 = vmatpush1.msra.mxu0 0.0
      %1400 = vmatprep.subr.mxu0 0.0
      %1401 = vmatpush1.msra.mxu0 0.0
      %1402 = vmatprep.subr.mxu0 0.0
      %1403 = vmatpush1.msra.mxu0 0.0
      %1404 = vmatprep.subr.mxu0 0.0
      %1405 = vmatpush1.msra.mxu0 0.0
      %1406 = vmatprep.subr.mxu0 0.0
      %1407 = vmatpush1.msra.mxu0 0.0
      %1408 = vmatprep.subr.mxu0 0.0
      %1409 = vmatpush1.msra.mxu0 0.0
      %1410 = vmatprep.subr.mxu0 0.0
      %1411 = vmatpush1.msra.mxu0 0.0
      %1412 = vmatprep.subr.mxu0 0.0
      %1413 = vmatpush1.msra.mxu0 0.0
      %1414 = vmatprep.subr.mxu0 0.0
      %1415 = vmatpush1.msra.mxu0 0.0
      %1416 = vmatprep.subr.mxu0 0.0
      %1417 = vmatpush1.msra.mxu0 0.0
      %1418 = vmatprep.subr.mxu0 0.0
      %1419 = vmatpush1.msra.mxu0 0.0
      %1420 = vmatprep.subr.mxu0 0.0
      %1421 = vmatpush1.msra.mxu0 0.0
      %1422 = vmatprep.subr.mxu0 0.0
      %1423 = vmatpush1.msra.mxu0 0.0
      %1424 = vmatprep.subr.mxu0 0.0
      %1425 = vmatpush1.msra.mxu0 0.0
      %1426 = vmatprep.subr.mxu0 0.0
      %1427 = vmatpush1.msra.mxu0 0.0
      %1428 = vmatprep.subr.mxu0 0.0
      %1429 = vmatpush1.msra.mxu0 0.0
      %1430 = vmatprep.subr.mxu0 0.0
      %1431 = vmatpush1.msra.mxu0 0.0
      %1432 = vmatprep.subr.mxu0 0.0
      %1433 = vmatpush1.msra.mxu0 0.0
      %1434 = vmatprep.subr.mxu0 0.0
      %1435 = vmatpush1.msra.mxu0 0.0
      %1436 = vmatprep.subr.mxu0 0.0
      %1437 = vmatpush1.msra.mxu0 0.0
      %1438 = vmatprep.subr.mxu0 0.0
      %1439 = vmatpush1.msra.mxu0 0.0
      %1440 = vmatprep.subr.mxu0 0.0
      %1441 = vmatpush1.msra.mxu0 0.0
      %1442 = vmatprep.subr.mxu0 0.0
      %1443 = vmatpush1.msra.mxu0 0.0
      %1444 = vmatprep.subr.mxu0 0.0
      %1445 = vmatpush1.msra.mxu0 0.0
      %1446 = vmatprep.subr.mxu0 0.0
      %1447 = vmatpush1.msra.mxu0 0.0
      %1448 = vmatprep.subr.mxu0 0.0
      %1449 = vmatpush1.msra.mxu0 0.0
      %1450 = vmatprep.subr.mxu0 0.0
      %1451 = vmatpush1.msra.mxu0 0.0
      %1452 = vmatprep.subr.mxu0 0.0
      %1453 = vmatpush1.msra.mxu0 0.0
      %1454 = vmatprep.subr.mxu0 0.0
      %1455 = vmatpush1.msra.mxu0 0.0
      %1456 = vmatprep.subr.mxu0 0.0
      %1457 = vmatpush1.msra.mxu0 0.0
      %1458 = vmatprep.mubr.f32.mxu0 0.0
      %1459 = vmatmul.mubr.f32.gmra.mrb[0].mxu0 %v1392
      %v1460 = vpop.f32.mrb[0].mxu0
      %v1461 = vadd.f32 0.0, %v1460
      %v1462 = vpop.f32.mrb[0].mxu0
      %v1463 = vadd.f32 0.0, %v1462
      %1464 = vdwg.mxu0
      %1465 = vmatprep.subr.mxu0 0.0
      %1466 = vmatpush1.msra.mxu0 %v1387
      %1467 = vmatprep.subr.mxu0 0.0
      %1468 = vmatpush1.msra.mxu0 0.0
      %1469 = vmatprep.subr.mxu0 0.0
      %1470 = vmatpush1.msra.mxu0 0.0
      %1471 = vmatprep.subr.mxu0 0.0
      %1472 = vmatpush1.msra.mxu0 0.0
      %1473 = vmatprep.subr.mxu0 0.0
      %1474 = vmatpush1.msra.mxu0 0.0
      %1475 = vmatprep.subr.mxu0 0.0
      %1476 = vmatpush1.msra.mxu0 0.0
      %1477 = vmatprep.subr.mxu0 0.0
      %1478 = vmatpush1.msra.mxu0 0.0
      %1479 = vmatprep.subr.mxu0 0.0
      %1480 = vmatpush1.msra.mxu0 0.0
      %1481 = vmatprep.subr.mxu0 0.0
      %1482 = vmatpush1.msra.mxu0 0.0
      %1483 = vmatprep.subr.mxu0 0.0
      %1484 = vmatpush1.msra.mxu0 0.0
      %1485 = vmatprep.subr.mxu0 0.0
      %1486 = vmatpush1.msra.mxu0 0.0
      %1487 = vmatprep.subr.mxu0 0.0
      %1488 = vmatpush1.msra.mxu0 0.0
      %1489 = vmatprep.subr.mxu0 0.0
      %1490 = vmatpush1.msra.mxu0 0.0
      %1491 = vmatprep.subr.mxu0 0.0
      %1492 = vmatpush1.msra.mxu0 0.0
      %1493 = vmatprep.subr.mxu0 0.0
      %1494 = vmatpush1.msra.mxu0 0.0
      %1495 = vmatprep.subr.mxu0 0.0
      %1496 = vmatpush1.msra.mxu0 0.0
      %1497 = vmatprep.subr.mxu0 0.0
      %1498 = vmatpush1.msra.mxu0 0.0
      %1499 = vmatprep.subr.mxu0 0.0
      %1500 = vmatpush1.msra.mxu0 0.0
      %1501 = vmatprep.subr.mxu0 0.0
      %1502 = vmatpush1.msra.mxu0 0.0
      %1503 = vmatprep.subr.mxu0 0.0
      %1504 = vmatpush1.msra.mxu0 0.0
      %1505 = vmatprep.subr.mxu0 0.0
      %1506 = vmatpush1.msra.mxu0 0.0
      %1507 = vmatprep.subr.mxu0 0.0
      %1508 = vmatpush1.msra.mxu0 0.0
      %1509 = vmatprep.subr.mxu0 0.0
      %1510 = vmatpush1.msra.mxu0 0.0
      %1511 = vmatprep.subr.mxu0 0.0
      %1512 = vmatpush1.msra.mxu0 0.0
      %1513 = vmatprep.subr.mxu0 0.0
      %1514 = vmatpush1.msra.mxu0 0.0
      %1515 = vmatprep.subr.mxu0 0.0
      %1516 = vmatpush1.msra.mxu0 0.0
      %1517 = vmatprep.subr.mxu0 0.0
      %1518 = vmatpush1.msra.mxu0 0.0
      %1519 = vmatprep.subr.mxu0 0.0
      %1520 = vmatpush1.msra.mxu0 0.0
      %1521 = vmatprep.subr.mxu0 0.0
      %1522 = vmatpush1.msra.mxu0 0.0
      %1523 = vmatprep.subr.mxu0 0.0
      %1524 = vmatpush1.msra.mxu0 0.0
      %1525 = vmatprep.subr.mxu0 0.0
      %1526 = vmatpush1.msra.mxu0 0.0
      %1527 = vmatprep.subr.mxu0 0.0
      %1528 = vmatpush1.msra.mxu0 0.0
      %1529 = vmatprep.mubr.f32.mxu0 0.0
      %1530 = vmatmul.mubr.f32.gmra.mrb[0].mxu0 %v1392
      %v1531 = vpop.f32.mrb[0].mxu0
      %v1532 = vadd.f32 0.0, %v1531
      %v1533 = vpop.f32.mrb[0].mxu0
      %1534 = vdwg.mxu0
      %v1535 = vadd.f32 %v1371, %v1461
      %v1536 = vadd.f32 %v1372, %v1463
      %v1537 = vadd.f32 %v1373, %v1532
      %s1538 = scalar_lea.vmem %s4, 48
      %v1539 = vld [vmem:[%s1538] sm:$0xff]
      %1540 = vrot.lane.b32.xlu0 %v554, 92
      %v1541 = vpop.permute.xlu0 %1540
      %1542 = vrot.lane.b32.xlu0 %v555, 92
      %v1543 = vpop.permute.xlu0 %1542
      %1544 = vrot.lane.b32.xlu0 %v556, 92
      %v1545 = vpop.permute.xlu0 %1544
      %1546 = vrot.lane.b32.xlu0 %v557, 92
      %v1547 = vpop.permute.xlu0 %1546
      %vm1548 = vcmask 752640
      %v1549 = vsel %vm1548, %v1541, %v1543
      %v1550 = vsel %vm1548, %v1543, %v1545
      %v1551 = vsel %vm1548, %v1545, %v1547
      %v1556 = vsel %vm566, %v1539, 0
      %1558 = vmatprep.subr.mxu0 %v1550
      %1559 = vmatpush1.msra.mxu0 %v1549
      %1560 = vmatprep.subr.mxu0 0.0
      %1561 = vmatpush1.msra.mxu0 0.0
      %1562 = vmatprep.subr.mxu0 0.0
      %1563 = vmatpush1.msra.mxu0 0.0
      %1564 = vmatprep.subr.mxu0 0.0
      %1565 = vmatpush1.msra.mxu0 0.0
      %1566 = vmatprep.subr.mxu0 0.0
      %1567 = vmatpush1.msra.mxu0 0.0
      %1568 = vmatprep.subr.mxu0 0.0
      %1569 = vmatpush1.msra.mxu0 0.0
      %1570 = vmatprep.subr.mxu0 0.0
      %1571 = vmatpush1.msra.mxu0 0.0
      %1572 = vmatprep.subr.mxu0 0.0
      %1573 = vmatpush1.msra.mxu0 0.0
      %1574 = vmatprep.subr.mxu0 0.0
      %1575 = vmatpush1.msra.mxu0 0.0
      %1576 = vmatprep.subr.mxu0 0.0
      %1577 = vmatpush1.msra.mxu0 0.0
      %1578 = vmatprep.subr.mxu0 0.0
      %1579 = vmatpush1.msra.mxu0 0.0
      %1580 = vmatprep.subr.mxu0 0.0
      %1581 = vmatpush1.msra.mxu0 0.0
      %1582 = vmatprep.subr.mxu0 0.0
      %1583 = vmatpush1.msra.mxu0 0.0
      %1584 = vmatprep.subr.mxu0 0.0
      %1585 = vmatpush1.msra.mxu0 0.0
      %1586 = vmatprep.subr.mxu0 0.0
      %1587 = vmatpush1.msra.mxu0 0.0
      %1588 = vmatprep.subr.mxu0 0.0
      %1589 = vmatpush1.msra.mxu0 0.0
      %1590 = vmatprep.subr.mxu0 0.0
      %1591 = vmatpush1.msra.mxu0 0.0
      %1592 = vmatprep.subr.mxu0 0.0
      %1593 = vmatpush1.msra.mxu0 0.0
      %1594 = vmatprep.subr.mxu0 0.0
      %1595 = vmatpush1.msra.mxu0 0.0
      %1596 = vmatprep.subr.mxu0 0.0
      %1597 = vmatpush1.msra.mxu0 0.0
      %1598 = vmatprep.subr.mxu0 0.0
      %1599 = vmatpush1.msra.mxu0 0.0
      %1600 = vmatprep.subr.mxu0 0.0
      %1601 = vmatpush1.msra.mxu0 0.0
      %1602 = vmatprep.subr.mxu0 0.0
      %1603 = vmatpush1.msra.mxu0 0.0
      %1604 = vmatprep.subr.mxu0 0.0
      %1605 = vmatpush1.msra.mxu0 0.0
      %1606 = vmatprep.subr.mxu0 0.0
      %1607 = vmatpush1.msra.mxu0 0.0
      %1608 = vmatprep.subr.mxu0 0.0
      %1609 = vmatpush1.msra.mxu0 0.0
      %1610 = vmatprep.subr.mxu0 0.0
      %1611 = vmatpush1.msra.mxu0 0.0
      %1612 = vmatprep.subr.mxu0 0.0
      %1613 = vmatpush1.msra.mxu0 0.0
      %1614 = vmatprep.subr.mxu0 0.0
      %1615 = vmatpush1.msra.mxu0 0.0
      %1616 = vmatprep.subr.mxu0 0.0
      %1617 = vmatpush1.msra.mxu0 0.0
      %1618 = vmatprep.subr.mxu0 0.0
      %1619 = vmatpush1.msra.mxu0 0.0
      %1620 = vmatprep.subr.mxu0 0.0
      %1621 = vmatpush1.msra.mxu0 0.0
      %1622 = vmatprep.mubr.f32.mxu0 0.0
      %1623 = vmatmul.mubr.f32.gmra.mrb[0].mxu0 %v1556
      %v1624 = vpop.f32.mrb[0].mxu0
      %v1625 = vadd.f32 0.0, %v1624
      %v1626 = vpop.f32.mrb[0].mxu0
      %v1627 = vadd.f32 0.0, %v1626
      %1628 = vdwg.mxu0
      %1629 = vmatprep.subr.mxu0 0.0
      %1630 = vmatpush1.msra.mxu0 %v1551
      %1631 = vmatprep.subr.mxu0 0.0
      %1632 = vmatpush1.msra.mxu0 0.0
      %1633 = vmatprep.subr.mxu0 0.0
      %1634 = vmatpush1.msra.mxu0 0.0
      %1635 = vmatprep.subr.mxu0 0.0
      %1636 = vmatpush1.msra.mxu0 0.0
      %1637 = vmatprep.subr.mxu0 0.0
      %1638 = vmatpush1.msra.mxu0 0.0
      %1639 = vmatprep.subr.mxu0 0.0
      %1640 = vmatpush1.msra.mxu0 0.0
      %1641 = vmatprep.subr.mxu0 0.0
      %1642 = vmatpush1.msra.mxu0 0.0
      %1643 = vmatprep.subr.mxu0 0.0
      %1644 = vmatpush1.msra.mxu0 0.0
      %1645 = vmatprep.subr.mxu0 0.0
      %1646 = vmatpush1.msra.mxu0 0.0
      %1647 = vmatprep.subr.mxu0 0.0
      %1648 = vmatpush1.msra.mxu0 0.0
      %1649 = vmatprep.subr.mxu0 0.0
      %1650 = vmatpush1.msra.mxu0 0.0
      %1651 = vmatprep.subr.mxu0 0.0
      %1652 = vmatpush1.msra.mxu0 0.0
      %1653 = vmatprep.subr.mxu0 0.0
      %1654 = vmatpush1.msra.mxu0 0.0
      %1655 = vmatprep.subr.mxu0 0.0
      %1656 = vmatpush1.msra.mxu0 0.0
      %1657 = vmatprep.subr.mxu0 0.0
      %1658 = vmatpush1.msra.mxu0 0.0
      %1659 = vmatprep.subr.mxu0 0.0
      %1660 = vmatpush1.msra.mxu0 0.0
      %1661 = vmatprep.subr.mxu0 0.0
      %1662 = vmatpush1.msra.mxu0 0.0
      %1663 = vmatprep.subr.mxu0 0.0
      %1664 = vmatpush1.msra.mxu0 0.0
      %1665 = vmatprep.subr.mxu0 0.0
      %1666 = vmatpush1.msra.mxu0 0.0
      %1667 = vmatprep.subr.mxu0 0.0
      %1668 = vmatpush1.msra.mxu0 0.0
      %1669 = vmatprep.subr.mxu0 0.0
      %1670 = vmatpush1.msra.mxu0 0.0
      %1671 = vmatprep.subr.mxu0 0.0
      %1672 = vmatpush1.msra.mxu0 0.0
      %1673 = vmatprep.subr.mxu0 0.0
      %1674 = vmatpush1.msra.mxu0 0.0
      %1675 = vmatprep.subr.mxu0 0.0
      %1676 = vmatpush1.msra.mxu0 0.0
      %1677 = vmatprep.subr.mxu0 0.0
      %1678 = vmatpush1.msra.mxu0 0.0
      %1679 = vmatprep.subr.mxu0 0.0
      %1680 = vmatpush1.msra.mxu0 0.0
      %1681 = vmatprep.subr.mxu0 0.0
      %1682 = vmatpush1.msra.mxu0 0.0
      %1683 = vmatprep.subr.mxu0 0.0
      %1684 = vmatpush1.msra.mxu0 0.0
      %1685 = vmatprep.subr.mxu0 0.0
      %1686 = vmatpush1.msra.mxu0 0.0
      %1687 = vmatprep.subr.mxu0 0.0
      %1688 = vmatpush1.msra.mxu0 0.0
      %1689 = vmatprep.subr.mxu0 0.0
      %1690 = vmatpush1.msra.mxu0 0.0
      %1691 = vmatprep.subr.mxu0 0.0
      %1692 = vmatpush1.msra.mxu0 0.0
      %1693 = vmatprep.mubr.f32.mxu0 0.0
      %1694 = vmatmul.mubr.f32.gmra.mrb[0].mxu0 %v1556
      %v1695 = vpop.f32.mrb[0].mxu0
      %v1696 = vadd.f32 0.0, %v1695
      %v1697 = vpop.f32.mrb[0].mxu0
      %1698 = vdwg.mxu0
      %v1699 = vadd.f32 %v1535, %v1625
      %v1700 = vadd.f32 %v1536, %v1627
      %v1701 = vadd.f32 %v1537, %v1696
      %s1702 = scalar_lea.vmem %s4, 56
      %v1703 = vld [vmem:[%s1702] sm:$0xff]
      %1704 = vrot.lane.b32.xlu0 %v554, 91
      %v1705 = vpop.permute.xlu0 %1704
      %1706 = vrot.lane.b32.xlu0 %v555, 91
      %v1707 = vpop.permute.xlu0 %1706
      %1708 = vrot.lane.b32.xlu0 %v556, 91
      %v1709 = vpop.permute.xlu0 %1708
      %1710 = vrot.lane.b32.xlu0 %v557, 91
      %v1711 = vpop.permute.xlu0 %1710
      %vm1712 = vcmask 744448
      %v1713 = vsel %vm1712, %v1705, %v1707
      %v1714 = vsel %vm1712, %v1707, %v1709
      %v1715 = vsel %vm1712, %v1709, %v1711
      %v1720 = vsel %vm566, %v1703, 0
      %1722 = vmatprep.subr.mxu0 %v1714
      %1723 = vmatpush1.msra.mxu0 %v1713
      %1724 = vmatprep.subr.mxu0 0.0
      %1725 = vmatpush1.msra.mxu0 0.0
      %1726 = vmatprep.subr.mxu0 0.0
      %1727 = vmatpush1.msra.mxu0 0.0
      %1728 = vmatprep.subr.mxu0 0.0
      %1729 = vmatpush1.msra.mxu0 0.0
      %1730 = vmatprep.subr.mxu0 0.0
      %1731 = vmatpush1.msra.mxu0 0.0
      %1732 = vmatprep.subr.mxu0 0.0
      %1733 = vmatpush1.msra.mxu0 0.0
      %1734 = vmatprep.subr.mxu0 0.0
      %1735 = vmatpush1.msra.mxu0 0.0
      %1736 = vmatprep.subr.mxu0 0.0
      %1737 = vmatpush1.msra.mxu0 0.0
      %1738 = vmatprep.subr.mxu0 0.0
      %1739 = vmatpush1.msra.mxu0 0.0
      %1740 = vmatprep.subr.mxu0 0.0
      %1741 = vmatpush1.msra.mxu0 0.0
      %1742 = vmatprep.subr.mxu0 0.0
      %1743 = vmatpush1.msra.mxu0 0.0
      %1744 = vmatprep.subr.mxu0 0.0
      %1745 = vmatpush1.msra.mxu0 0.0
      %1746 = vmatprep.subr.mxu0 0.0
      %1747 = vmatpush1.msra.mxu0 0.0
      %1748 = vmatprep.subr.mxu0 0.0
      %1749 = vmatpush1.msra.mxu0 0.0
      %1750 = vmatprep.subr.mxu0 0.0
      %1751 = vmatpush1.msra.mxu0 0.0
      %1752 = vmatprep.subr.mxu0 0.0
      %1753 = vmatpush1.msra.mxu0 0.0
      %1754 = vmatprep.subr.mxu0 0.0
      %1755 = vmatpush1.msra.mxu0 0.0
      %1756 = vmatprep.subr.mxu0 0.0
      %1757 = vmatpush1.msra.mxu0 0.0
      %1758 = vmatprep.subr.mxu0 0.0
      %1759 = vmatpush1.msra.mxu0 0.0
      %1760 = vmatprep.subr.mxu0 0.0
      %1761 = vmatpush1.msra.mxu0 0.0
      %1762 = vmatprep.subr.mxu0 0.0
      %1763 = vmatpush1.msra.mxu0 0.0
      %1764 = vmatprep.subr.mxu0 0.0
      %1765 = vmatpush1.msra.mxu0 0.0
      %1766 = vmatprep.subr.mxu0 0.0
      %1767 = vmatpush1.msra.mxu0 0.0
      %1768 = vmatprep.subr.mxu0 0.0
      %1769 = vmatpush1.msra.mxu0 0.0
      %1770 = vmatprep.subr.mxu0 0.0
      %1771 = vmatpush1.msra.mxu0 0.0
      %1772 = vmatprep.subr.mxu0 0.0
      %1773 = vmatpush1.msra.mxu0 0.0
      %1774 = vmatprep.subr.mxu0 0.0
      %1775 = vmatpush1.msra.mxu0 0.0
      %1776 = vmatprep.subr.mxu0 0.0
      %1777 = vmatpush1.msra.mxu0 0.0
      %1778 = vmatprep.subr.mxu0 0.0
      %1779 = vmatpush1.msra.mxu0 0.0
      %1780 = vmatprep.subr.mxu0 0.0
      %1781 = vmatpush1.msra.mxu0 0.0
      %1782 = vmatprep.subr.mxu0 0.0
      %1783 = vmatpush1.msra.mxu0 0.0
      %1784 = vmatprep.subr.mxu0 0.0
      %1785 = vmatpush1.msra.mxu0 0.0
      %1786 = vmatprep.mubr.f32.mxu0 0.0
      %1787 = vmatmul.mubr.f32.gmra.mrb[0].mxu0 %v1720
      %v1788 = vpop.f32.mrb[0].mxu0
      %v1789 = vadd.f32 0.0, %v1788
      %v1790 = vpop.f32.mrb[0].mxu0
      %v1791 = vadd.f32 0.0, %v1790
      %1792 = vdwg.mxu0
      %1793 = vmatprep.subr.mxu0 0.0
      %1794 = vmatpush1.msra.mxu0 %v1715
      %1795 = vmatprep.subr.mxu0 0.0
      %1796 = vmatpush1.msra.mxu0 0.0
      %1797 = vmatprep.subr.mxu0 0.0
      %1798 = vmatpush1.msra.mxu0 0.0
      %1799 = vmatprep.subr.mxu0 0.0
      %1800 = vmatpush1.msra.mxu0 0.0
      %1801 = vmatprep.subr.mxu0 0.0
      %1802 = vmatpush1.msra.mxu0 0.0
      %1803 = vmatprep.subr.mxu0 0.0
      %1804 = vmatpush1.msra.mxu0 0.0
      %1805 = vmatprep.subr.mxu0 0.0
      %1806 = vmatpush1.msra.mxu0 0.0
      %1807 = vmatprep.subr.mxu0 0.0
      %1808 = vmatpush1.msra.mxu0 0.0
      %1809 = vmatprep.subr.mxu0 0.0
      %1810 = vmatpush1.msra.mxu0 0.0
      %1811 = vmatprep.subr.mxu0 0.0
      %1812 = vmatpush1.msra.mxu0 0.0
      %1813 = vmatprep.subr.mxu0 0.0
      %1814 = vmatpush1.msra.mxu0 0.0
      %1815 = vmatprep.subr.mxu0 0.0
      %1816 = vmatpush1.msra.mxu0 0.0
      %1817 = vmatprep.subr.mxu0 0.0
      %1818 = vmatpush1.msra.mxu0 0.0
      %1819 = vmatprep.subr.mxu0 0.0
      %1820 = vmatpush1.msra.mxu0 0.0
      %1821 = vmatprep.subr.mxu0 0.0
      %1822 = vmatpush1.msra.mxu0 0.0
      %1823 = vmatprep.subr.mxu0 0.0
      %1824 = vmatpush1.msra.mxu0 0.0
      %1825 = vmatprep.subr.mxu0 0.0
      %1826 = vmatpush1.msra.mxu0 0.0
      %1827 = vmatprep.subr.mxu0 0.0
      %1828 = vmatpush1.msra.mxu0 0.0
      %1829 = vmatprep.subr.mxu0 0.0
      %1830 = vmatpush1.msra.mxu0 0.0
      %1831 = vmatprep.subr.mxu0 0.0
      %1832 = vmatpush1.msra.mxu0 0.0
      %1833 = vmatprep.subr.mxu0 0.0
      %1834 = vmatpush1.msra.mxu0 0.0
      %1835 = vmatprep.subr.mxu0 0.0
      %1836 = vmatpush1.msra.mxu0 0.0
      %1837 = vmatprep.subr.mxu0 0.0
      %1838 = vmatpush1.msra.mxu0 0.0
      %1839 = vmatprep.subr.mxu0 0.0
      %1840 = vmatpush1.msra.mxu0 0.0
      %1841 = vmatprep.subr.mxu0 0.0
      %1842 = vmatpush1.msra.mxu0 0.0
      %1843 = vmatprep.subr.mxu0 0.0
      %1844 = vmatpush1.msra.mxu0 0.0
      %1845 = vmatprep.subr.mxu0 0.0
      %1846 = vmatpush1.msra.mxu0 0.0
      %1847 = vmatprep.subr.mxu0 0.0
      %1848 = vmatpush1.msra.mxu0 0.0
      %1849 = vmatprep.subr.mxu0 0.0
      %1850 = vmatpush1.msra.mxu0 0.0
      %1851 = vmatprep.subr.mxu0 0.0
      %1852 = vmatpush1.msra.mxu0 0.0
      %1853 = vmatprep.subr.mxu0 0.0
      %1854 = vmatpush1.msra.mxu0 0.0
      %1855 = vmatprep.subr.mxu0 0.0
      %1856 = vmatpush1.msra.mxu0 0.0
      %1857 = vmatprep.mubr.f32.mxu0 0.0
      %1858 = vmatmul.mubr.f32.gmra.mrb[0].mxu0 %v1720
      %v1859 = vpop.f32.mrb[0].mxu0
      %v1860 = vadd.f32 0.0, %v1859
      %v1861 = vpop.f32.mrb[0].mxu0
      %1862 = vdwg.mxu0
      %v1863 = vadd.f32 %v1699, %v1789
      %v1864 = vadd.f32 %v1700, %v1791
      %v1865 = vadd.f32 %v1701, %v1860
      %s1866 = scalar_lea.vmem %s4, 64
      %v1867 = vld [vmem:[%s1866] sm:$0xff]
      %1868 = vrot.lane.b32.xlu0 %v554, 90
      %v1869 = vpop.permute.xlu0 %1868
      %1870 = vrot.lane.b32.xlu0 %v555, 90
      %v1871 = vpop.permute.xlu0 %1870
      %1872 = vrot.lane.b32.xlu0 %v556, 90
      %v1873 = vpop.permute.xlu0 %1872
      %1874 = vrot.lane.b32.xlu0 %v557, 90
      %v1875 = vpop.permute.xlu0 %1874
      %vm1876 = vcmask 736256
      %v1877 = vsel %vm1876, %v1869, %v1871
      %v1878 = vsel %vm1876, %v1871, %v1873
      %v1879 = vsel %vm1876, %v1873, %v1875
      %v1884 = vsel %vm566, %v1867, 0
      %1886 = vmatprep.subr.mxu0 %v1878
      %1887 = vmatpush1.msra.mxu0 %v1877
      %1888 = vmatprep.subr.mxu0 0.0
      %1889 = vmatpush1.msra.mxu0 0.0
      %1890 = vmatprep.subr.mxu0 0.0
      %1891 = vmatpush1.msra.mxu0 0.0
      %1892 = vmatprep.subr.mxu0 0.0
      %1893 = vmatpush1.msra.mxu0 0.0
      %1894 = vmatprep.subr.mxu0 0.0
      %1895 = vmatpush1.msra.mxu0 0.0
      %1896 = vmatprep.subr.mxu0 0.0
      %1897 = vmatpush1.msra.mxu0 0.0
      %1898 = vmatprep.subr.mxu0 0.0
      %1899 = vmatpush1.msra.mxu0 0.0
      %1900 = vmatprep.subr.mxu0 0.0
      %1901 = vmatpush1.msra.mxu0 0.0
      %1902 = vmatprep.subr.mxu0 0.0
      %1903 = vmatpush1.msra.mxu0 0.0
      %1904 = vmatprep.subr.mxu0 0.0
      %1905 = vmatpush1.msra.mxu0 0.0
      %1906 = vmatprep.subr.mxu0 0.0
      %1907 = vmatpush1.msra.mxu0 0.0
      %1908 = vmatprep.subr.mxu0 0.0
      %1909 = vmatpush1.msra.mxu0 0.0
      %1910 = vmatprep.subr.mxu0 0.0
      %1911 = vmatpush1.msra.mxu0 0.0
      %1912 = vmatprep.subr.mxu0 0.0
      %1913 = vmatpush1.msra.mxu0 0.0
      %1914 = vmatprep.subr.mxu0 0.0
      %1915 = vmatpush1.msra.mxu0 0.0
      %1916 = vmatprep.subr.mxu0 0.0
      %1917 = vmatpush1.msra.mxu0 0.0
      %1918 = vmatprep.subr.mxu0 0.0
      %1919 = vmatpush1.msra.mxu0 0.0
      %1920 = vmatprep.subr.mxu0 0.0
      %1921 = vmatpush1.msra.mxu0 0.0
      %1922 = vmatprep.subr.mxu0 0.0
      %1923 = vmatpush1.msra.mxu0 0.0
      %1924 = vmatprep.subr.mxu0 0.0
      %1925 = vmatpush1.msra.mxu0 0.0
      %1926 = vmatprep.subr.mxu0 0.0
      %1927 = vmatpush1.msra.mxu0 0.0
      %1928 = vmatprep.subr.mxu0 0.0
      %1929 = vmatpush1.msra.mxu0 0.0
      %1930 = vmatprep.subr.mxu0 0.0
      %1931 = vmatpush1.msra.mxu0 0.0
      %1932 = vmatprep.subr.mxu0 0.0
      %1933 = vmatpush1.msra.mxu0 0.0
      %1934 = vmatprep.subr.mxu0 0.0
      %1935 = vmatpush1.msra.mxu0 0.0
      %1936 = vmatprep.subr.mxu0 0.0
      %1937 = vmatpush1.msra.mxu0 0.0
      %1938 = vmatprep.subr.mxu0 0.0
      %1939 = vmatpush1.msra.mxu0 0.0
      %1940 = vmatprep.subr.mxu0 0.0
      %1941 = vmatpush1.msra.mxu0 0.0
      %1942 = vmatprep.subr.mxu0 0.0
      %1943 = vmatpush1.msra.mxu0 0.0
      %1944 = vmatprep.subr.mxu0 0.0
      %1945 = vmatpush1.msra.mxu0 0.0
      %1946 = vmatprep.subr.mxu0 0.0
      %1947 = vmatpush1.msra.mxu0 0.0
      %1948 = vmatprep.subr.mxu0 0.0
      %1949 = vmatpush1.msra.mxu0 0.0
      %1950 = vmatprep.mubr.f32.mxu0 0.0
      %1951 = vmatmul.mubr.f32.gmra.mrb[0].mxu0 %v1884
      %v1952 = vpop.f32.mrb[0].mxu0
      %v1953 = vadd.f32 0.0, %v1952
      %v1954 = vpop.f32.mrb[0].mxu0
      %v1955 = vadd.f32 0.0, %v1954
      %1956 = vdwg.mxu0
      %1957 = vmatprep.subr.mxu0 0.0
      %1958 = vmatpush1.msra.mxu0 %v1879
      %1959 = vmatprep.subr.mxu0 0.0
      %1960 = vmatpush1.msra.mxu0 0.0
      %1961 = vmatprep.subr.mxu0 0.0
      %1962 = vmatpush1.msra.mxu0 0.0
      %1963 = vmatprep.subr.mxu0 0.0
      %1964 = vmatpush1.msra.mxu0 0.0
      %1965 = vmatprep.subr.mxu0 0.0
      %1966 = vmatpush1.msra.mxu0 0.0
      %1967 = vmatprep.subr.mxu0 0.0
      %1968 = vmatpush1.msra.mxu0 0.0
      %1969 = vmatprep.subr.mxu0 0.0
      %1970 = vmatpush1.msra.mxu0 0.0
      %1971 = vmatprep.subr.mxu0 0.0
      %1972 = vmatpush1.msra.mxu0 0.0
      %1973 = vmatprep.subr.mxu0 0.0
      %1974 = vmatpush1.msra.mxu0 0.0
      %1975 = vmatprep.subr.mxu0 0.0
      %1976 = vmatpush1.msra.mxu0 0.0
      %1977 = vmatprep.subr.mxu0 0.0
      %1978 = vmatpush1.msra.mxu0 0.0
      %1979 = vmatprep.subr.mxu0 0.0
      %1980 = vmatpush1.msra.mxu0 0.0
      %1981 = vmatprep.subr.mxu0 0.0
      %1982 = vmatpush1.msra.mxu0 0.0
      %1983 = vmatprep.subr.mxu0 0.0
      %1984 = vmatpush1.msra.mxu0 0.0
      %1985 = vmatprep.subr.mxu0 0.0
      %1986 = vmatpush1.msra.mxu0 0.0
      %1987 = vmatprep.subr.mxu0 0.0
      %1988 = vmatpush1.msra.mxu0 0.0
      %1989 = vmatprep.subr.mxu0 0.0
      %1990 = vmatpush1.msra.mxu0 0.0
      %1991 = vmatprep.subr.mxu0 0.0
      %1992 = vmatpush1.msra.mxu0 0.0
      %1993 = vmatprep.subr.mxu0 0.0
      %1994 = vmatpush1.msra.mxu0 0.0
      %1995 = vmatprep.subr.mxu0 0.0
      %1996 = vmatpush1.msra.mxu0 0.0
      %1997 = vmatprep.subr.mxu0 0.0
      %1998 = vmatpush1.msra.mxu0 0.0
      %1999 = vmatprep.subr.mxu0 0.0
      %2000 = vmatpush1.msra.mxu0 0.0
      %2001 = vmatprep.subr.mxu0 0.0
      %2002 = vmatpush1.msra.mxu0 0.0
      %2003 = vmatprep.subr.mxu0 0.0
      %2004 = vmatpush1.msra.mxu0 0.0
      %2005 = vmatprep.subr.mxu0 0.0
      %2006 = vmatpush1.msra.mxu0 0.0
      %2007 = vmatprep.subr.mxu0 0.0
      %2008 = vmatpush1.msra.mxu0 0.0
      %2009 = vmatprep.subr.mxu0 0.0
      %2010 = vmatpush1.msra.mxu0 0.0
      %2011 = vmatprep.subr.mxu0 0.0
      %2012 = vmatpush1.msra.mxu0 0.0
      %2013 = vmatprep.subr.mxu0 0.0
      %2014 = vmatpush1.msra.mxu0 0.0
      %2015 = vmatprep.subr.mxu0 0.0
      %2016 = vmatpush1.msra.mxu0 0.0
      %2017 = vmatprep.subr.mxu0 0.0
      %2018 = vmatpush1.msra.mxu0 0.0
      %2019 = vmatprep.subr.mxu0 0.0
      %2020 = vmatpush1.msra.mxu0 0.0
      %2021 = vmatprep.mubr.f32.mxu0 0.0
      %2022 = vmatmul.mubr.f32.gmra.mrb[0].mxu0 %v1884
      %v2023 = vpop.f32.mrb[0].mxu0
      %v2024 = vadd.f32 0.0, %v2023
      %v2025 = vpop.f32.mrb[0].mxu0
      %2026 = vdwg.mxu0
      %v2027 = vadd.f32 %v1863, %v1953
      %v2028 = vadd.f32 %v1864, %v1955
      %v2029 = vadd.f32 %v1865, %v2024
      %v2030 = vmax.f32 %v2027, 0.0
      %v2031 = vmax.f32 %v2028, 0.0
      %v2032 = vmax.f32 %v2029, 0.0
      %v2033 = vld [vmem:[%s7] sm:$0xff]
      %2035 = vset.pattern.permute.xlu0 0
      %2036 = vperm.xlu0 %2035, %v2033
      %v2037 = vpop.permute.xlu0 %2036
      %v2039 = vadd.f32 %v2037, 0.0
      %v2040 = vld [vmem:[%s6] sm:$0xff]
      %v2042 = vsel %vm373, %v2040, 0
      %2044 = vmatprep.subr.mxu0 %v380
      %2045 = vmatpush1.msra.mxu0 %v378
      %2046 = vmatprep.subr.mxu0 0.0
      %2047 = vmatpush1.msra.mxu0 0.0
      %2048 = vmatprep.subr.mxu0 0.0
      %2049 = vmatpush1.msra.mxu0 0.0
      %2050 = vmatprep.subr.mxu0 0.0
      %2051 = vmatpush1.msra.mxu0 0.0
      %2052 = vmatprep.subr.mxu0 0.0
      %2053 = vmatpush1.msra.mxu0 0.0
      %2054 = vmatprep.subr.mxu0 0.0
      %2055 = vmatpush1.msra.mxu0 0.0
      %2056 = vmatprep.subr.mxu0 0.0
      %2057 = vmatpush1.msra.mxu0 0.0
      %2058 = vmatprep.subr.mxu0 0.0
      %2059 = vmatpush1.msra.mxu0 0.0
      %2060 = vmatprep.subr.mxu0 0.0
      %2061 = vmatpush1.msra.mxu0 0.0
      %2062 = vmatprep.subr.mxu0 0.0
      %2063 = vmatpush1.msra.mxu0 0.0
      %2064 = vmatprep.subr.mxu0 0.0
      %2065 = vmatpush1.msra.mxu0 0.0
      %2066 = vmatprep.subr.mxu0 0.0
      %2067 = vmatpush1.msra.mxu0 0.0
      %2068 = vmatprep.subr.mxu0 0.0
      %2069 = vmatpush1.msra.mxu0 0.0
      %2070 = vmatprep.subr.mxu0 0.0
      %2071 = vmatpush1.msra.mxu0 0.0
      %2072 = vmatprep.subr.mxu0 0.0
      %2073 = vmatpush1.msra.mxu0 0.0
      %2074 = vmatprep.subr.mxu0 0.0
      %2075 = vmatpush1.msra.mxu0 0.0
      %2076 = vmatprep.subr.mxu0 0.0
      %2077 = vmatpush1.msra.mxu0 0.0
      %2078 = vmatprep.subr.mxu0 0.0
      %2079 = vmatpush1.msra.mxu0 0.0
      %2080 = vmatprep.subr.mxu0 0.0
      %2081 = vmatpush1.msra.mxu0 0.0
      %2082 = vmatprep.subr.mxu0 0.0
      %2083 = vmatpush1.msra.mxu0 0.0
      %2084 = vmatprep.subr.mxu0 0.0
      %2085 = vmatpush1.msra.mxu0 0.0
      %2086 = vmatprep.subr.mxu0 0.0
      %2087 = vmatpush1.msra.mxu0 0.0
      %2088 = vmatprep.subr.mxu0 0.0
      %2089 = vmatpush1.msra.mxu0 0.0
      %2090 = vmatprep.subr.mxu0 0.0
      %2091 = vmatpush1.msra.mxu0 0.0
      %2092 = vmatprep.subr.mxu0 0.0
      %2093 = vmatpush1.msra.mxu0 0.0
      %2094 = vmatprep.subr.mxu0 0.0
      %2095 = vmatpush1.msra.mxu0 0.0
      %2096 = vmatprep.subr.mxu0 0.0
      %2097 = vmatpush1.msra.mxu0 0.0
      %2098 = vmatprep.subr.mxu0 0.0
      %2099 = vmatpush1.msra.mxu0 0.0
      %2100 = vmatprep.subr.mxu0 0.0
      %2101 = vmatpush1.msra.mxu0 0.0
      %2102 = vmatprep.subr.mxu0 0.0
      %2103 = vmatpush1.msra.mxu0 0.0
      %2104 = vmatprep.subr.mxu0 0.0
      %2105 = vmatpush1.msra.mxu0 0.0
      %2106 = vmatprep.subr.mxu0 0.0
      %2107 = vmatpush1.msra.mxu0 0.0
      %2108 = vmatprep.mubr.f32.mxu0 0.0
      %2109 = vmatmul.mubr.f32.gmra.mrb[0].mxu0 %v2042
      %v2110 = vpop.f32.mrb[0].mxu0
      %v2111 = vadd.f32 0.0, %v2110
      %v2112 = vpop.f32.mrb[0].mxu0
      %v2113 = vadd.f32 0.0, %v2112
      %2114 = vdwg.mxu0
      %2115 = vmatprep.subr.mxu0 0.0
      %2116 = vmatpush1.msra.mxu0 %v382
      %2117 = vmatprep.subr.mxu0 0.0
      %2118 = vmatpush1.msra.mxu0 0.0
      %2119 = vmatprep.subr.mxu0 0.0
      %2120 = vmatpush1.msra.mxu0 0.0
      %2121 = vmatprep.subr.mxu0 0.0
      %2122 = vmatpush1.msra.mxu0 0.0
      %2123 = vmatprep.subr.mxu0 0.0
      %2124 = vmatpush1.msra.mxu0 0.0
      %2125 = vmatprep.subr.mxu0 0.0
      %2126 = vmatpush1.msra.mxu0 0.0
      %2127 = vmatprep.subr.mxu0 0.0
      %2128 = vmatpush1.msra.mxu0 0.0
      %2129 = vmatprep.subr.mxu0 0.0
      %2130 = vmatpush1.msra.mxu0 0.0
      %2131 = vmatprep.subr.mxu0 0.0
      %2132 = vmatpush1.msra.mxu0 0.0
      %2133 = vmatprep.subr.mxu0 0.0
      %2134 = vmatpush1.msra.mxu0 0.0
      %2135 = vmatprep.subr.mxu0 0.0
      %2136 = vmatpush1.msra.mxu0 0.0
      %2137 = vmatprep.subr.mxu0 0.0
      %2138 = vmatpush1.msra.mxu0 0.0
      %2139 = vmatprep.subr.mxu0 0.0
      %2140 = vmatpush1.msra.mxu0 0.0
      %2141 = vmatprep.subr.mxu0 0.0
      %2142 = vmatpush1.msra.mxu0 0.0
      %2143 = vmatprep.subr.mxu0 0.0
      %2144 = vmatpush1.msra.mxu0 0.0
      %2145 = vmatprep.subr.mxu0 0.0
      %2146 = vmatpush1.msra.mxu0 0.0
      %2147 = vmatprep.subr.mxu0 0.0
      %2148 = vmatpush1.msra.mxu0 0.0
      %2149 = vmatprep.subr.mxu0 0.0
      %2150 = vmatpush1.msra.mxu0 0.0
      %2151 = vmatprep.subr.mxu0 0.0
      %2152 = vmatpush1.msra.mxu0 0.0
      %2153 = vmatprep.subr.mxu0 0.0
      %2154 = vmatpush1.msra.mxu0 0.0
      %2155 = vmatprep.subr.mxu0 0.0
      %2156 = vmatpush1.msra.mxu0 0.0
      %2157 = vmatprep.subr.mxu0 0.0
      %2158 = vmatpush1.msra.mxu0 0.0
      %2159 = vmatprep.subr.mxu0 0.0
      %2160 = vmatpush1.msra.mxu0 0.0
      %2161 = vmatprep.subr.mxu0 0.0
      %2162 = vmatpush1.msra.mxu0 0.0
      %2163 = vmatprep.subr.mxu0 0.0
      %2164 = vmatpush1.msra.mxu0 0.0
      %2165 = vmatprep.subr.mxu0 0.0
      %2166 = vmatpush1.msra.mxu0 0.0
      %2167 = vmatprep.subr.mxu0 0.0
      %2168 = vmatpush1.msra.mxu0 0.0
      %2169 = vmatprep.subr.mxu0 0.0
      %2170 = vmatpush1.msra.mxu0 0.0
      %2171 = vmatprep.subr.mxu0 0.0
      %2172 = vmatpush1.msra.mxu0 0.0
      %2173 = vmatprep.subr.mxu0 0.0
      %2174 = vmatpush1.msra.mxu0 0.0
      %2175 = vmatprep.subr.mxu0 0.0
      %2176 = vmatpush1.msra.mxu0 0.0
      %2177 = vmatprep.subr.mxu0 0.0
      %2178 = vmatpush1.msra.mxu0 0.0
      %2179 = vmatprep.mubr.f32.mxu0 0.0
      %2180 = vmatmul.mubr.f32.gmra.mrb[0].mxu0 %v2042
      %v2181 = vpop.f32.mrb[0].mxu0
      %v2182 = vadd.f32 0.0, %v2181
      %v2183 = vpop.f32.mrb[0].mxu0
      %2184 = vdwg.mxu0
      %v2185 = vadd.f32 %v2039, %v2111
      %v2186 = vadd.f32 %v2039, %v2113
      %v2187 = vadd.f32 %v2039, %v2182
      %s2188 = scalar_lea.vmem %s6, 8
      %v2189 = vld [vmem:[%s2188] sm:$0xff]
      %2190 = vrot.lane.b32.xlu0 %v360, 127
      %v2191 = vpop.permute.xlu0 %2190
      %2192 = vrot.lane.b32.xlu0 %v371, 127
      %v2193 = vpop.permute.xlu0 %2192
      %2194 = vrot.lane.b32.xlu0 %v361, 127
      %v2195 = vpop.permute.xlu0 %2194
      %2196 = vrot.lane.b32.xlu0 %v372, 127
      %v2197 = vpop.permute.xlu0 %2196
      %v2198 = vsel %vm728, %v2191, %v2193
      %v2199 = vsel %vm728, %v2193, %v2195
      %v2200 = vsel %vm728, %v2195, %v2197
      %v2202 = vsel %vm373, %v2189, 0
      %v2204 = vsel %vm377, %v2198, 0
      %v2206 = vsel %vm377, %v2199, 0
      %v2208 = vsel %vm377, %v2200, 0
      %2210 = vmatprep.subr.mxu0 %v2206
      %2211 = vmatpush1.msra.mxu0 %v2204
      %2212 = vmatprep.subr.mxu0 0.0
      %2213 = vmatpush1.msra.mxu0 0.0
      %2214 = vmatprep.subr.mxu0 0.0
      %2215 = vmatpush1.msra.mxu0 0.0
      %2216 = vmatprep.subr.mxu0 0.0
      %2217 = vmatpush1.msra.mxu0 0.0
      %2218 = vmatprep.subr.mxu0 0.0
      %2219 = vmatpush1.msra.mxu0 0.0
      %2220 = vmatprep.subr.mxu0 0.0
      %2221 = vmatpush1.msra.mxu0 0.0
      %2222 = vmatprep.subr.mxu0 0.0
      %2223 = vmatpush1.msra.mxu0 0.0
      %2224 = vmatprep.subr.mxu0 0.0
      %2225 = vmatpush1.msra.mxu0 0.0
      %2226 = vmatprep.subr.mxu0 0.0
      %2227 = vmatpush1.msra.mxu0 0.0
      %2228 = vmatprep.subr.mxu0 0.0
      %2229 = vmatpush1.msra.mxu0 0.0
      %2230 = vmatprep.subr.mxu0 0.0
      %2231 = vmatpush1.msra.mxu0 0.0
      %2232 = vmatprep.subr.mxu0 0.0
      %2233 = vmatpush1.msra.mxu0 0.0
      %2234 = vmatprep.subr.mxu0 0.0
      %2235 = vmatpush1.msra.mxu0 0.0
      %2236 = vmatprep.subr.mxu0 0.0
      %2237 = vmatpush1.msra.mxu0 0.0
      %2238 = vmatprep.subr.mxu0 0.0
      %2239 = vmatpush1.msra.mxu0 0.0
      %2240 = vmatprep.subr.mxu0 0.0
      %2241 = vmatpush1.msra.mxu0 0.0
      %2242 = vmatprep.subr.mxu0 0.0
      %2243 = vmatpush1.msra.mxu0 0.0
      %2244 = vmatprep.subr.mxu0 0.0
      %2245 = vmatpush1.msra.mxu0 0.0
      %2246 = vmatprep.subr.mxu0 0.0
      %2247 = vmatpush1.msra.mxu0 0.0
      %2248 = vmatprep.subr.mxu0 0.0
      %2249 = vmatpush1.msra.mxu0 0.0
      %2250 = vmatprep.subr.mxu0 0.0
      %2251 = vmatpush1.msra.mxu0 0.0
      %2252 = vmatprep.subr.mxu0 0.0
      %2253 = vmatpush1.msra.mxu0 0.0
      %2254 = vmatprep.subr.mxu0 0.0
      %2255 = vmatpush1.msra.mxu0 0.0
      %2256 = vmatprep.subr.mxu0 0.0
      %2257 = vmatpush1.msra.mxu0 0.0
      %2258 = vmatprep.subr.mxu0 0.0
      %2259 = vmatpush1.msra.mxu0 0.0
      %2260 = vmatprep.subr.mxu0 0.0
      %2261 = vmatpush1.msra.mxu0 0.0
      %2262 = vmatprep.subr.mxu0 0.0
      %2263 = vmatpush1.msra.mxu0 0.0
      %2264 = vmatprep.subr.mxu0 0.0
      %2265 = vmatpush1.msra.mxu0 0.0
      %2266 = vmatprep.subr.mxu0 0.0
      %2267 = vmatpush1.msra.mxu0 0.0
      %2268 = vmatprep.subr.mxu0 0.0
      %2269 = vmatpush1.msra.mxu0 0.0
      %2270 = vmatprep.subr.mxu0 0.0
      %2271 = vmatpush1.msra.mxu0 0.0
      %2272 = vmatprep.subr.mxu0 0.0
      %2273 = vmatpush1.msra.mxu0 0.0
      %2274 = vmatprep.mubr.f32.mxu0 0.0
      %2275 = vmatmul.mubr.f32.gmra.mrb[0].mxu0 %v2202
      %v2276 = vpop.f32.mrb[0].mxu0
      %v2277 = vadd.f32 0.0, %v2276
      %v2278 = vpop.f32.mrb[0].mxu0
      %v2279 = vadd.f32 0.0, %v2278
      %2280 = vdwg.mxu0
      %2281 = vmatprep.subr.mxu0 0.0
      %2282 = vmatpush1.msra.mxu0 %v2208
      %2283 = vmatprep.subr.mxu0 0.0
      %2284 = vmatpush1.msra.mxu0 0.0
      %2285 = vmatprep.subr.mxu0 0.0
      %2286 = vmatpush1.msra.mxu0 0.0
      %2287 = vmatprep.subr.mxu0 0.0
      %2288 = vmatpush1.msra.mxu0 0.0
      %2289 = vmatprep.subr.mxu0 0.0
      %2290 = vmatpush1.msra.mxu0 0.0
      %2291 = vmatprep.subr.mxu0 0.0
      %2292 = vmatpush1.msra.mxu0 0.0
      %2293 = vmatprep.subr.mxu0 0.0
      %2294 = vmatpush1.msra.mxu0 0.0
      %2295 = vmatprep.subr.mxu0 0.0
      %2296 = vmatpush1.msra.mxu0 0.0
      %2297 = vmatprep.subr.mxu0 0.0
      %2298 = vmatpush1.msra.mxu0 0.0
      %2299 = vmatprep.subr.mxu0 0.0
      %2300 = vmatpush1.msra.mxu0 0.0
      %2301 = vmatprep.subr.mxu0 0.0
      %2302 = vmatpush1.msra.mxu0 0.0
      %2303 = vmatprep.subr.mxu0 0.0
      %2304 = vmatpush1.msra.mxu0 0.0
      %2305 = vmatprep.subr.mxu0 0.0
      %2306 = vmatpush1.msra.mxu0 0.0
      %2307 = vmatprep.subr.mxu0 0.0
      %2308 = vmatpush1.msra.mxu0 0.0
      %2309 = vmatprep.subr.mxu0 0.0
      %2310 = vmatpush1.msra.mxu0 0.0
      %2311 = vmatprep.subr.mxu0 0.0
      %2312 = vmatpush1.msra.mxu0 0.0
      %2313 = vmatprep.subr.mxu0 0.0
      %2314 = vmatpush1.msra.mxu0 0.0
      %2315 = vmatprep.subr.mxu0 0.0
      %2316 = vmatpush1.msra.mxu0 0.0
      %2317 = vmatprep.subr.mxu0 0.0
      %2318 = vmatpush1.msra.mxu0 0.0
      %2319 = vmatprep.subr.mxu0 0.0
      %2320 = vmatpush1.msra.mxu0 0.0
      %2321 = vmatprep.subr.mxu0 0.0
      %2322 = vmatpush1.msra.mxu0 0.0
      %2323 = vmatprep.subr.mxu0 0.0
      %2324 = vmatpush1.msra.mxu0 0.0
      %2325 = vmatprep.subr.mxu0 0.0
      %2326 = vmatpush1.msra.mxu0 0.0
      %2327 = vmatprep.subr.mxu0 0.0
      %2328 = vmatpush1.msra.mxu0 0.0
      %2329 = vmatprep.subr.mxu0 0.0
      %2330 = vmatpush1.msra.mxu0 0.0
      %2331 = vmatprep.subr.mxu0 0.0
      %2332 = vmatpush1.msra.mxu0 0.0
      %2333 = vmatprep.subr.mxu0 0.0
      %2334 = vmatpush1.msra.mxu0 0.0
      %2335 = vmatprep.subr.mxu0 0.0
      %2336 = vmatpush1.msra.mxu0 0.0
      %2337 = vmatprep.subr.mxu0 0.0
      %2338 = vmatpush1.msra.mxu0 0.0
      %2339 = vmatprep.subr.mxu0 0.0
      %2340 = vmatpush1.msra.mxu0 0.0
      %2341 = vmatprep.subr.mxu0 0.0
      %2342 = vmatpush1.msra.mxu0 0.0
      %2343 = vmatprep.subr.mxu0 0.0
      %2344 = vmatpush1.msra.mxu0 0.0
      %2345 = vmatprep.mubr.f32.mxu0 0.0
      %2346 = vmatmul.mubr.f32.gmra.mrb[0].mxu0 %v2202
      %v2347 = vpop.f32.mrb[0].mxu0
      %v2348 = vadd.f32 0.0, %v2347
      %v2349 = vpop.f32.mrb[0].mxu0
      %2350 = vdwg.mxu0
      %v2351 = vadd.f32 %v2185, %v2277
      %v2352 = vadd.f32 %v2186, %v2279
      %v2353 = vadd.f32 %v2187, %v2348
      %s2354 = scalar_lea.vmem %s6, 16
      %v2355 = vld [vmem:[%s2354] sm:$0xff]
      %2356 = vrot.lane.b32.xlu0 %v360, 126
      %v2357 = vpop.permute.xlu0 %2356
      %2358 = vrot.lane.b32.xlu0 %v371, 126
      %v2359 = vpop.permute.xlu0 %2358
      %2360 = vrot.lane.b32.xlu0 %v361, 126
      %v2361 = vpop.permute.xlu0 %2360
      %2362 = vrot.lane.b32.xlu0 %v372, 126
      %v2363 = vpop.permute.xlu0 %2362
      %v2364 = vsel %vm892, %v2357, %v2359
      %v2365 = vsel %vm892, %v2359, %v2361
      %v2366 = vsel %vm892, %v2361, %v2363
      %v2368 = vsel %vm373, %v2355, 0
      %v2370 = vsel %vm377, %v2364, 0
      %v2372 = vsel %vm377, %v2365, 0
      %v2374 = vsel %vm377, %v2366, 0
      %2376 = vmatprep.subr.mxu0 %v2372
      %2377 = vmatpush1.msra.mxu0 %v2370
      %2378 = vmatprep.subr.mxu0 0.0
      %2379 = vmatpush1.msra.mxu0 0.0
      %2380 = vmatprep.subr.mxu0 0.0
      %2381 = vmatpush1.msra.mxu0 0.0
      %2382 = vmatprep.subr.mxu0 0.0
      %2383 = vmatpush1.msra.mxu0 0.0
      %2384 = vmatprep.subr.mxu0 0.0
      %2385 = vmatpush1.msra.mxu0 0.0
      %2386 = vmatprep.subr.mxu0 0.0
      %2387 = vmatpush1.msra.mxu0 0.0
      %2388 = vmatprep.subr.mxu0 0.0
      %2389 = vmatpush1.msra.mxu0 0.0
      %2390 = vmatprep.subr.mxu0 0.0
      %2391 = vmatpush1.msra.mxu0 0.0
      %2392 = vmatprep.subr.mxu0 0.0
      %2393 = vmatpush1.msra.mxu0 0.0
      %2394 = vmatprep.subr.mxu0 0.0
      %2395 = vmatpush1.msra.mxu0 0.0
      %2396 = vmatprep.subr.mxu0 0.0
      %2397 = vmatpush1.msra.mxu0 0.0
      %2398 = vmatprep.subr.mxu0 0.0
      %2399 = vmatpush1.msra.mxu0 0.0
      %2400 = vmatprep.subr.mxu0 0.0
      %2401 = vmatpush1.msra.mxu0 0.0
      %2402 = vmatprep.subr.mxu0 0.0
      %2403 = vmatpush1.msra.mxu0 0.0
      %2404 = vmatprep.subr.mxu0 0.0
      %2405 = vmatpush1.msra.mxu0 0.0
      %2406 = vmatprep.subr.mxu0 0.0
      %2407 = vmatpush1.msra.mxu0 0.0
      %2408 = vmatprep.subr.mxu0 0.0
      %2409 = vmatpush1.msra.mxu0 0.0
      %2410 = vmatprep.subr.mxu0 0.0
      %2411 = vmatpush1.msra.mxu0 0.0
      %2412 = vmatprep.subr.mxu0 0.0
      %2413 = vmatpush1.msra.mxu0 0.0
      %2414 = vmatprep.subr.mxu0 0.0
      %2415 = vmatpush1.msra.mxu0 0.0
      %2416 = vmatprep.subr.mxu0 0.0
      %2417 = vmatpush1.msra.mxu0 0.0
      %2418 = vmatprep.subr.mxu0 0.0
      %2419 = vmatpush1.msra.mxu0 0.0
      %2420 = vmatprep.subr.mxu0 0.0
      %2421 = vmatpush1.msra.mxu0 0.0
      %2422 = vmatprep.subr.mxu0 0.0
      %2423 = vmatpush1.msra.mxu0 0.0
      %2424 = vmatprep.subr.mxu0 0.0
      %2425 = vmatpush1.msra.mxu0 0.0
      %2426 = vmatprep.subr.mxu0 0.0
      %2427 = vmatpush1.msra.mxu0 0.0
      %2428 = vmatprep.subr.mxu0 0.0
      %2429 = vmatpush1.msra.mxu0 0.0
      %2430 = vmatprep.subr.mxu0 0.0
      %2431 = vmatpush1.msra.mxu0 0.0
      %2432 = vmatprep.subr.mxu0 0.0
      %2433 = vmatpush1.msra.mxu0 0.0
      %2434 = vmatprep.subr.mxu0 0.0
      %2435 = vmatpush1.msra.mxu0 0.0
      %2436 = vmatprep.subr.mxu0 0.0
      %2437 = vmatpush1.msra.mxu0 0.0
      %2438 = vmatprep.subr.mxu0 0.0
      %2439 = vmatpush1.msra.mxu0 0.0
      %2440 = vmatprep.mubr.f32.mxu0 0.0
      %2441 = vmatmul.mubr.f32.gmra.mrb[0].mxu0 %v2368
      %v2442 = vpop.f32.mrb[0].mxu0
      %v2443 = vadd.f32 0.0, %v2442
      %v2444 = vpop.f32.mrb[0].mxu0
      %v2445 = vadd.f32 0.0, %v2444
      %2446 = vdwg.mxu0
      %2447 = vmatprep.subr.mxu0 0.0
      %2448 = vmatpush1.msra.mxu0 %v2374
      %2449 = vmatprep.subr.mxu0 0.0
      %2450 = vmatpush1.msra.mxu0 0.0
      %2451 = vmatprep.subr.mxu0 0.0
      %2452 = vmatpush1.msra.mxu0 0.0
      %2453 = vmatprep.subr.mxu0 0.0
      %2454 = vmatpush1.msra.mxu0 0.0
      %2455 = vmatprep.subr.mxu0 0.0
      %2456 = vmatpush1.msra.mxu0 0.0
      %2457 = vmatprep.subr.mxu0 0.0
      %2458 = vmatpush1.msra.mxu0 0.0
      %2459 = vmatprep.subr.mxu0 0.0
      %2460 = vmatpush1.msra.mxu0 0.0
      %2461 = vmatprep.subr.mxu0 0.0
      %2462 = vmatpush1.msra.mxu0 0.0
      %2463 = vmatprep.subr.mxu0 0.0
      %2464 = vmatpush1.msra.mxu0 0.0
      %2465 = vmatprep.subr.mxu0 0.0
      %2466 = vmatpush1.msra.mxu0 0.0
      %2467 = vmatprep.subr.mxu0 0.0
      %2468 = vmatpush1.msra.mxu0 0.0
      %2469 = vmatprep.subr.mxu0 0.0
      %2470 = vmatpush1.msra.mxu0 0.0
      %2471 = vmatprep.subr.mxu0 0.0
      %2472 = vmatpush1.msra.mxu0 0.0
      %2473 = vmatprep.subr.mxu0 0.0
      %2474 = vmatpush1.msra.mxu0 0.0
      %2475 = vmatprep.subr.mxu0 0.0
      %2476 = vmatpush1.msra.mxu0 0.0
      %2477 = vmatprep.subr.mxu0 0.0
      %2478 = vmatpush1.msra.mxu0 0.0
      %2479 = vmatprep.subr.mxu0 0.0
      %2480 = vmatpush1.msra.mxu0 0.0
      %2481 = vmatprep.subr.mxu0 0.0
      %2482 = vmatpush1.msra.mxu0 0.0
      %2483 = vmatprep.subr.mxu0 0.0
      %2484 = vmatpush1.msra.mxu0 0.0
      %2485 = vmatprep.subr.mxu0 0.0
      %2486 = vmatpush1.msra.mxu0 0.0
      %2487 = vmatprep.subr.mxu0 0.0
      %2488 = vmatpush1.msra.mxu0 0.0
      %2489 = vmatprep.subr.mxu0 0.0
      %2490 = vmatpush1.msra.mxu0 0.0
      %2491 = vmatprep.subr.mxu0 0.0
      %2492 = vmatpush1.msra.mxu0 0.0
      %2493 = vmatprep.subr.mxu0 0.0
      %2494 = vmatpush1.msra.mxu0 0.0
      %2495 = vmatprep.subr.mxu0 0.0
      %2496 = vmatpush1.msra.mxu0 0.0
      %2497 = vmatprep.subr.mxu0 0.0
      %2498 = vmatpush1.msra.mxu0 0.0
      %2499 = vmatprep.subr.mxu0 0.0
      %2500 = vmatpush1.msra.mxu0 0.0
      %2501 = vmatprep.subr.mxu0 0.0
      %2502 = vmatpush1.msra.mxu0 0.0
      %2503 = vmatprep.subr.mxu0 0.0
      %2504 = vmatpush1.msra.mxu0 0.0
      %2505 = vmatprep.subr.mxu0 0.0
      %2506 = vmatpush1.msra.mxu0 0.0
      %2507 = vmatprep.subr.mxu0 0.0
      %2508 = vmatpush1.msra.mxu0 0.0
      %2509 = vmatprep.subr.mxu0 0.0
      %2510 = vmatpush1.msra.mxu0 0.0
      %2511 = vmatprep.mubr.f32.mxu0 0.0
      %2512 = vmatmul.mubr.f32.gmra.mrb[0].mxu0 %v2368
      %v2513 = vpop.f32.mrb[0].mxu0
      %v2514 = vadd.f32 0.0, %v2513
      %v2515 = vpop.f32.mrb[0].mxu0
      %2516 = vdwg.mxu0
      %v2517 = vadd.f32 %v2351, %v2443
      %v2518 = vadd.f32 %v2352, %v2445
      %v2519 = vadd.f32 %v2353, %v2514
      %s2520 = scalar_lea.vmem %s6, 24
      %v2521 = vld [vmem:[%s2520] sm:$0xff]
      %2522 = vrot.lane.b32.xlu0 %v360, 110
      %v2523 = vpop.permute.xlu0 %2522
      %2524 = vrot.lane.b32.xlu0 %v371, 110
      %v2525 = vpop.permute.xlu0 %2524
      %2526 = vrot.lane.b32.xlu0 %v361, 110
      %v2527 = vpop.permute.xlu0 %2526
      %2528 = vrot.lane.b32.xlu0 %v372, 110
      %v2529 = vpop.permute.xlu0 %2528
      %v2530 = vsel %vm1056, %v2523, %v2525
      %v2531 = vsel %vm1056, %v2525, %v2527
      %v2532 = vsel %vm1056, %v2527, %v2529
      %v2534 = vsel %vm373, %v2521, 0
      %v2536 = vsel %vm377, %v2530, 0
      %v2538 = vsel %vm377, %v2531, 0
      %v2540 = vsel %vm377, %v2532, 0
      %2542 = vmatprep.subr.mxu0 %v2538
      %2543 = vmatpush1.msra.mxu0 %v2536
      %2544 = vmatprep.subr.mxu0 0.0
      %2545 = vmatpush1.msra.mxu0 0.0
      %2546 = vmatprep.subr.mxu0 0.0
      %2547 = vmatpush1.msra.mxu0 0.0
      %2548 = vmatprep.subr.mxu0 0.0
      %2549 = vmatpush1.msra.mxu0 0.0
      %2550 = vmatprep.subr.mxu0 0.0
      %2551 = vmatpush1.msra.mxu0 0.0
      %2552 = vmatprep.subr.mxu0 0.0
      %2553 = vmatpush1.msra.mxu0 0.0
      %2554 = vmatprep.subr.mxu0 0.0
      %2555 = vmatpush1.msra.mxu0 0.0
      %2556 = vmatprep.subr.mxu0 0.0
      %2557 = vmatpush1.msra.mxu0 0.0
      %2558 = vmatprep.subr.mxu0 0.0
      %2559 = vmatpush1.msra.mxu0 0.0
      %2560 = vmatprep.subr.mxu0 0.0
      %2561 = vmatpush1.msra.mxu0 0.0
      %2562 = vmatprep.subr.mxu0 0.0
      %2563 = vmatpush1.msra.mxu0 0.0
      %2564 = vmatprep.subr.mxu0 0.0
      %2565 = vmatpush1.msra.mxu0 0.0
      %2566 = vmatprep.subr.mxu0 0.0
      %2567 = vmatpush1.msra.mxu0 0.0
      %2568 = vmatprep.subr.mxu0 0.0
      %2569 = vmatpush1.msra.mxu0 0.0
      %2570 = vmatprep.subr.mxu0 0.0
      %2571 = vmatpush1.msra.mxu0 0.0
      %2572 = vmatprep.subr.mxu0 0.0
      %2573 = vmatpush1.msra.mxu0 0.0
      %2574 = vmatprep.subr.mxu0 0.0
      %2575 = vmatpush1.msra.mxu0 0.0
      %2576 = vmatprep.subr.mxu0 0.0
      %2577 = vmatpush1.msra.mxu0 0.0
      %2578 = vmatprep.subr.mxu0 0.0
      %2579 = vmatpush1.msra.mxu0 0.0
      %2580 = vmatprep.subr.mxu0 0.0
      %2581 = vmatpush1.msra.mxu0 0.0
      %2582 = vmatprep.subr.mxu0 0.0
      %2583 = vmatpush1.msra.mxu0 0.0
      %2584 = vmatprep.subr.mxu0 0.0
      %2585 = vmatpush1.msra.mxu0 0.0
      %2586 = vmatprep.subr.mxu0 0.0
      %2587 = vmatpush1.msra.mxu0 0.0
      %2588 = vmatprep.subr.mxu0 0.0
      %2589 = vmatpush1.msra.mxu0 0.0
      %2590 = vmatprep.subr.mxu0 0.0
      %2591 = vmatpush1.msra.mxu0 0.0
      %2592 = vmatprep.subr.mxu0 0.0
      %2593 = vmatpush1.msra.mxu0 0.0
      %2594 = vmatprep.subr.mxu0 0.0
      %2595 = vmatpush1.msra.mxu0 0.0
      %2596 = vmatprep.subr.mxu0 0.0
      %2597 = vmatpush1.msra.mxu0 0.0
      %2598 = vmatprep.subr.mxu0 0.0
      %2599 = vmatpush1.msra.mxu0 0.0
      %2600 = vmatprep.subr.mxu0 0.0
      %2601 = vmatpush1.msra.mxu0 0.0
      %2602 = vmatprep.subr.mxu0 0.0
      %2603 = vmatpush1.msra.mxu0 0.0
      %2604 = vmatprep.subr.mxu0 0.0
      %2605 = vmatpush1.msra.mxu0 0.0
      %2606 = vmatprep.mubr.f32.mxu0 0.0
      %2607 = vmatmul.mubr.f32.gmra.mrb[0].mxu0 %v2534
      %v2608 = vpop.f32.mrb[0].mxu0
      %v2609 = vadd.f32 0.0, %v2608
      %v2610 = vpop.f32.mrb[0].mxu0
      %v2611 = vadd.f32 0.0, %v2610
      %2612 = vdwg.mxu0
      %2613 = vmatprep.subr.mxu0 0.0
      %2614 = vmatpush1.msra.mxu0 %v2540
      %2615 = vmatprep.subr.mxu0 0.0
      %2616 = vmatpush1.msra.mxu0 0.0
      %2617 = vmatprep.subr.mxu0 0.0
      %2618 = vmatpush1.msra.mxu0 0.0
      %2619 = vmatprep.subr.mxu0 0.0
      %2620 = vmatpush1.msra.mxu0 0.0
      %2621 = vmatprep.subr.mxu0 0.0
      %2622 = vmatpush1.msra.mxu0 0.0
      %2623 = vmatprep.subr.mxu0 0.0
      %2624 = vmatpush1.msra.mxu0 0.0
      %2625 = vmatprep.subr.mxu0 0.0
      %2626 = vmatpush1.msra.mxu0 0.0
      %2627 = vmatprep.subr.mxu0 0.0
      %2628 = vmatpush1.msra.mxu0 0.0
      %2629 = vmatprep.subr.mxu0 0.0
      %2630 = vmatpush1.msra.mxu0 0.0
      %2631 = vmatprep.subr.mxu0 0.0
      %2632 = vmatpush1.msra.mxu0 0.0
      %2633 = vmatprep.subr.mxu0 0.0
      %2634 = vmatpush1.msra.mxu0 0.0
      %2635 = vmatprep.subr.mxu0 0.0
      %2636 = vmatpush1.msra.mxu0 0.0
      %2637 = vmatprep.subr.mxu0 0.0
      %2638 = vmatpush1.msra.mxu0 0.0
      %2639 = vmatprep.subr.mxu0 0.0
      %2640 = vmatpush1.msra.mxu0 0.0
      %2641 = vmatprep.subr.mxu0 0.0
      %2642 = vmatpush1.msra.mxu0 0.0
      %2643 = vmatprep.subr.mxu0 0.0
      %2644 = vmatpush1.msra.mxu0 0.0
      %2645 = vmatprep.subr.mxu0 0.0
      %2646 = vmatpush1.msra.mxu0 0.0
      %2647 = vmatprep.subr.mxu0 0.0
      %2648 = vmatpush1.msra.mxu0 0.0
      %2649 = vmatprep.subr.mxu0 0.0
      %2650 = vmatpush1.msra.mxu0 0.0
      %2651 = vmatprep.subr.mxu0 0.0
      %2652 = vmatpush1.msra.mxu0 0.0
      %2653 = vmatprep.subr.mxu0 0.0
      %2654 = vmatpush1.msra.mxu0 0.0
      %2655 = vmatprep.subr.mxu0 0.0
      %2656 = vmatpush1.msra.mxu0 0.0
      %2657 = vmatprep.subr.mxu0 0.0
      %2658 = vmatpush1.msra.mxu0 0.0
      %2659 = vmatprep.subr.mxu0 0.0
      %2660 = vmatpush1.msra.mxu0 0.0
      %2661 = vmatprep.subr.mxu0 0.0
      %2662 = vmatpush1.msra.mxu0 0.0
      %2663 = vmatprep.subr.mxu0 0.0
      %2664 = vmatpush1.msra.mxu0 0.0
      %2665 = vmatprep.subr.mxu0 0.0
      %2666 = vmatpush1.msra.mxu0 0.0
      %2667 = vmatprep.subr.mxu0 0.0
      %2668 = vmatpush1.msra.mxu0 0.0
      %2669 = vmatprep.subr.mxu0 0.0
      %2670 = vmatpush1.msra.mxu0 0.0
      %2671 = vmatprep.subr.mxu0 0.0
      %2672 = vmatpush1.msra.mxu0 0.0
      %2673 = vmatprep.subr.mxu0 0.0
      %2674 = vmatpush1.msra.mxu0 0.0
      %2675 = vmatprep.subr.mxu0 0.0
      %2676 = vmatpush1.msra.mxu0 0.0
      %2677 = vmatprep.mubr.f32.mxu0 0.0
      %2678 = vmatmul.mubr.f32.gmra.mrb[0].mxu0 %v2534
      %v2679 = vpop.f32.mrb[0].mxu0
      %v2680 = vadd.f32 0.0, %v2679
      %v2681 = vpop.f32.mrb[0].mxu0
      %2682 = vdwg.mxu0
      %v2683 = vadd.f32 %v2517, %v2609
      %v2684 = vadd.f32 %v2518, %v2611
      %v2685 = vadd.f32 %v2519, %v2680
      %s2686 = scalar_lea.vmem %s6, 32
      %v2687 = vld [vmem:[%s2686] sm:$0xff]
      %2688 = vrot.lane.b32.xlu0 %v360, 109
      %v2689 = vpop.permute.xlu0 %2688
      %2690 = vrot.lane.b32.xlu0 %v371, 109
      %v2691 = vpop.permute.xlu0 %2690
      %2692 = vrot.lane.b32.xlu0 %v361, 109
      %v2693 = vpop.permute.xlu0 %2692
      %2694 = vrot.lane.b32.xlu0 %v372, 109
      %v2695 = vpop.permute.xlu0 %2694
      %v2696 = vsel %vm1220, %v2689, %v2691
      %v2697 = vsel %vm1220, %v2691, %v2693
      %v2698 = vsel %vm1220, %v2693, %v2695
      %v2700 = vsel %vm373, %v2687, 0
      %v2702 = vsel %vm377, %v2696, 0
      %v2704 = vsel %vm377, %v2697, 0
      %v2706 = vsel %vm377, %v2698, 0
      %2708 = vmatprep.subr.mxu0 %v2704
      %2709 = vmatpush1.msra.mxu0 %v2702
      %2710 = vmatprep.subr.mxu0 0.0
      %2711 = vmatpush1.msra.mxu0 0.0
      %2712 = vmatprep.subr.mxu0 0.0
      %2713 = vmatpush1.msra.mxu0 0.0
      %2714 = vmatprep.subr.mxu0 0.0
      %2715 = vmatpush1.msra.mxu0 0.0
      %2716 = vmatprep.subr.mxu0 0.0
      %2717 = vmatpush1.msra.mxu0 0.0
      %2718 = vmatprep.subr.mxu0 0.0
      %2719 = vmatpush1.msra.mxu0 0.0
      %2720 = vmatprep.subr.mxu0 0.0
      %2721 = vmatpush1.msra.mxu0 0.0
      %2722 = vmatprep.subr.mxu0 0.0
      %2723 = vmatpush1.msra.mxu0 0.0
      %2724 = vmatprep.subr.mxu0 0.0
      %2725 = vmatpush1.msra.mxu0 0.0
      %2726 = vmatprep.subr.mxu0 0.0
      %2727 = vmatpush1.msra.mxu0 0.0
      %2728 = vmatprep.subr.mxu0 0.0
      %2729 = vmatpush1.msra.mxu0 0.0
      %2730 = vmatprep.subr.mxu0 0.0
      %2731 = vmatpush1.msra.mxu0 0.0
      %2732 = vmatprep.subr.mxu0 0.0
      %2733 = vmatpush1.msra.mxu0 0.0
      %2734 = vmatprep.subr.mxu0 0.0
      %2735 = vmatpush1.msra.mxu0 0.0
      %2736 = vmatprep.subr.mxu0 0.0
      %2737 = vmatpush1.msra.mxu0 0.0
      %2738 = vmatprep.subr.mxu0 0.0
      %2739 = vmatpush1.msra.mxu0 0.0
      %2740 = vmatprep.subr.mxu0 0.0
      %2741 = vmatpush1.msra.mxu0 0.0
      %2742 = vmatprep.subr.mxu0 0.0
      %2743 = vmatpush1.msra.mxu0 0.0
      %2744 = vmatprep.subr.mxu0 0.0
      %2745 = vmatpush1.msra.mxu0 0.0
      %2746 = vmatprep.subr.mxu0 0.0
      %2747 = vmatpush1.msra.mxu0 0.0
      %2748 = vmatprep.subr.mxu0 0.0
      %2749 = vmatpush1.msra.mxu0 0.0
      %2750 = vmatprep.subr.mxu0 0.0
      %2751 = vmatpush1.msra.mxu0 0.0
      %2752 = vmatprep.subr.mxu0 0.0
      %2753 = vmatpush1.msra.mxu0 0.0
      %2754 = vmatprep.subr.mxu0 0.0
      %2755 = vmatpush1.msra.mxu0 0.0
      %2756 = vmatprep.subr.mxu0 0.0
      %2757 = vmatpush1.msra.mxu0 0.0
      %2758 = vmatprep.subr.mxu0 0.0
      %2759 = vmatpush1.msra.mxu0 0.0
      %2760 = vmatprep.subr.mxu0 0.0
      %2761 = vmatpush1.msra.mxu0 0.0
      %2762 = vmatprep.subr.mxu0 0.0
      %2763 = vmatpush1.msra.mxu0 0.0
      %2764 = vmatprep.subr.mxu0 0.0
      %2765 = vmatpush1.msra.mxu0 0.0
      %2766 = vmatprep.subr.mxu0 0.0
      %2767 = vmatpush1.msra.mxu0 0.0
      %2768 = vmatprep.subr.mxu0 0.0
      %2769 = vmatpush1.msra.mxu0 0.0
      %2770 = vmatprep.subr.mxu0 0.0
      %2771 = vmatpush1.msra.mxu0 0.0
      %2772 = vmatprep.mubr.f32.mxu0 0.0
      %2773 = vmatmul.mubr.f32.gmra.mrb[0].mxu0 %v2700
      %v2774 = vpop.f32.mrb[0].mxu0
      %v2775 = vadd.f32 0.0, %v2774
      %v2776 = vpop.f32.mrb[0].mxu0
      %v2777 = vadd.f32 0.0, %v2776
      %2778 = vdwg.mxu0
      %2779 = vmatprep.subr.mxu0 0.0
      %2780 = vmatpush1.msra.mxu0 %v2706
      %2781 = vmatprep.subr.mxu0 0.0
      %2782 = vmatpush1.msra.mxu0 0.0
      %2783 = vmatprep.subr.mxu0 0.0
      %2784 = vmatpush1.msra.mxu0 0.0
      %2785 = vmatprep.subr.mxu0 0.0
      %2786 = vmatpush1.msra.mxu0 0.0
      %2787 = vmatprep.subr.mxu0 0.0
      %2788 = vmatpush1.msra.mxu0 0.0
      %2789 = vmatprep.subr.mxu0 0.0
      %2790 = vmatpush1.msra.mxu0 0.0
      %2791 = vmatprep.subr.mxu0 0.0
      %2792 = vmatpush1.msra.mxu0 0.0
      %2793 = vmatprep.subr.mxu0 0.0
      %2794 = vmatpush1.msra.mxu0 0.0
      %2795 = vmatprep.subr.mxu0 0.0
      %2796 = vmatpush1.msra.mxu0 0.0
      %2797 = vmatprep.subr.mxu0 0.0
      %2798 = vmatpush1.msra.mxu0 0.0
      %2799 = vmatprep.subr.mxu0 0.0
      %2800 = vmatpush1.msra.mxu0 0.0
      %2801 = vmatprep.subr.mxu0 0.0
      %2802 = vmatpush1.msra.mxu0 0.0
      %2803 = vmatprep.subr.mxu0 0.0
      %2804 = vmatpush1.msra.mxu0 0.0
      %2805 = vmatprep.subr.mxu0 0.0
      %2806 = vmatpush1.msra.mxu0 0.0
      %2807 = vmatprep.subr.mxu0 0.0
      %2808 = vmatpush1.msra.mxu0 0.0
      %2809 = vmatprep.subr.mxu0 0.0
      %2810 = vmatpush1.msra.mxu0 0.0
      %2811 = vmatprep.subr.mxu0 0.0
      %2812 = vmatpush1.msra.mxu0 0.0
      %2813 = vmatprep.subr.mxu0 0.0
      %2814 = vmatpush1.msra.mxu0 0.0
      %2815 = vmatprep.subr.mxu0 0.0
      %2816 = vmatpush1.msra.mxu0 0.0
      %2817 = vmatprep.subr.mxu0 0.0
      %2818 = vmatpush1.msra.mxu0 0.0
      %2819 = vmatprep.subr.mxu0 0.0
      %2820 = vmatpush1.msra.mxu0 0.0
      %2821 = vmatprep.subr.mxu0 0.0
      %2822 = vmatpush1.msra.mxu0 0.0
      %2823 = vmatprep.subr.mxu0 0.0
      %2824 = vmatpush1.msra.mxu0 0.0
      %2825 = vmatprep.subr.mxu0 0.0
      %2826 = vmatpush1.msra.mxu0 0.0
      %2827 = vmatprep.subr.mxu0 0.0
      %2828 = vmatpush1.msra.mxu0 0.0
      %2829 = vmatprep.subr.mxu0 0.0
      %2830 = vmatpush1.msra.mxu0 0.0
      %2831 = vmatprep.subr.mxu0 0.0
      %2832 = vmatpush1.msra.mxu0 0.0
      %2833 = vmatprep.subr.mxu0 0.0
      %2834 = vmatpush1.msra.mxu0 0.0
      %2835 = vmatprep.subr.mxu0 0.0
      %2836 = vmatpush1.msra.mxu0 0.0
      %2837 = vmatprep.subr.mxu0 0.0
      %2838 = vmatpush1.msra.mxu0 0.0
      %2839 = vmatprep.subr.mxu0 0.0
      %2840 = vmatpush1.msra.mxu0 0.0
      %2841 = vmatprep.subr.mxu0 0.0
      %2842 = vmatpush1.msra.mxu0 0.0
      %2843 = vmatprep.mubr.f32.mxu0 0.0
      %2844 = vmatmul.mubr.f32.gmra.mrb[0].mxu0 %v2700
      %v2845 = vpop.f32.mrb[0].mxu0
      %v2846 = vadd.f32 0.0, %v2845
      %v2847 = vpop.f32.mrb[0].mxu0
      %2848 = vdwg.mxu0
      %v2849 = vadd.f32 %v2683, %v2775
      %v2850 = vadd.f32 %v2684, %v2777
      %v2851 = vadd.f32 %v2685, %v2846
      %s2852 = scalar_lea.vmem %s6, 40
      %v2853 = vld [vmem:[%s2852] sm:$0xff]
      %2854 = vrot.lane.b32.xlu0 %v360, 108
      %v2855 = vpop.permute.xlu0 %2854
      %2856 = vrot.lane.b32.xlu0 %v371, 108
      %v2857 = vpop.permute.xlu0 %2856
      %2858 = vrot.lane.b32.xlu0 %v361, 108
      %v2859 = vpop.permute.xlu0 %2858
      %2860 = vrot.lane.b32.xlu0 %v372, 108
      %v2861 = vpop.permute.xlu0 %2860
      %v2862 = vsel %vm1384, %v2855, %v2857
      %v2863 = vsel %vm1384, %v2857, %v2859
      %v2864 = vsel %vm1384, %v2859, %v2861
      %v2866 = vsel %vm373, %v2853, 0
      %v2868 = vsel %vm377, %v2862, 0
      %v2870 = vsel %vm377, %v2863, 0
      %v2872 = vsel %vm377, %v2864, 0
      %2874 = vmatprep.subr.mxu0 %v2870
      %2875 = vmatpush1.msra.mxu0 %v2868
      %2876 = vmatprep.subr.mxu0 0.0
      %2877 = vmatpush1.msra.mxu0 0.0
      %2878 = vmatprep.subr.mxu0 0.0
      %2879 = vmatpush1.msra.mxu0 0.0
      %2880 = vmatprep.subr.mxu0 0.0
      %2881 = vmatpush1.msra.mxu0 0.0
      %2882 = vmatprep.subr.mxu0 0.0
      %2883 = vmatpush1.msra.mxu0 0.0
      %2884 = vmatprep.subr.mxu0 0.0
      %2885 = vmatpush1.msra.mxu0 0.0
      %2886 = vmatprep.subr.mxu0 0.0
      %2887 = vmatpush1.msra.mxu0 0.0
      %2888 = vmatprep.subr.mxu0 0.0
      %2889 = vmatpush1.msra.mxu0 0.0
      %2890 = vmatprep.subr.mxu0 0.0
      %2891 = vmatpush1.msra.mxu0 0.0
      %2892 = vmatprep.subr.mxu0 0.0
      %2893 = vmatpush1.msra.mxu0 0.0
      %2894 = vmatprep.subr.mxu0 0.0
      %2895 = vmatpush1.msra.mxu0 0.0
      %2896 = vmatprep.subr.mxu0 0.0
      %2897 = vmatpush1.msra.mxu0 0.0
      %2898 = vmatprep.subr.mxu0 0.0
      %2899 = vmatpush1.msra.mxu0 0.0
      %2900 = vmatprep.subr.mxu0 0.0
      %2901 = vmatpush1.msra.mxu0 0.0
      %2902 = vmatprep.subr.mxu0 0.0
      %2903 = vmatpush1.msra.mxu0 0.0
      %2904 = vmatprep.subr.mxu0 0.0
      %2905 = vmatpush1.msra.mxu0 0.0
      %2906 = vmatprep.subr.mxu0 0.0
      %2907 = vmatpush1.msra.mxu0 0.0
      %2908 = vmatprep.subr.mxu0 0.0
      %2909 = vmatpush1.msra.mxu0 0.0
      %2910 = vmatprep.subr.mxu0 0.0
      %2911 = vmatpush1.msra.mxu0 0.0
      %2912 = vmatprep.subr.mxu0 0.0
      %2913 = vmatpush1.msra.mxu0 0.0
      %2914 = vmatprep.subr.mxu0 0.0
      %2915 = vmatpush1.msra.mxu0 0.0
      %2916 = vmatprep.subr.mxu0 0.0
      %2917 = vmatpush1.msra.mxu0 0.0
      %2918 = vmatprep.subr.mxu0 0.0
      %2919 = vmatpush1.msra.mxu0 0.0
      %2920 = vmatprep.subr.mxu0 0.0
      %2921 = vmatpush1.msra.mxu0 0.0
      %2922 = vmatprep.subr.mxu0 0.0
      %2923 = vmatpush1.msra.mxu0 0.0
      %2924 = vmatprep.subr.mxu0 0.0
      %2925 = vmatpush1.msra.mxu0 0.0
      %2926 = vmatprep.subr.mxu0 0.0
      %2927 = vmatpush1.msra.mxu0 0.0
      %2928 = vmatprep.subr.mxu0 0.0
      %2929 = vmatpush1.msra.mxu0 0.0
      %2930 = vmatprep.subr.mxu0 0.0
      %2931 = vmatpush1.msra.mxu0 0.0
      %2932 = vmatprep.subr.mxu0 0.0
      %2933 = vmatpush1.msra.mxu0 0.0
      %2934 = vmatprep.subr.mxu0 0.0
      %2935 = vmatpush1.msra.mxu0 0.0
      %2936 = vmatprep.subr.mxu0 0.0
      %2937 = vmatpush1.msra.mxu0 0.0
      %2938 = vmatprep.mubr.f32.mxu0 0.0
      %2939 = vmatmul.mubr.f32.gmra.mrb[0].mxu0 %v2866
      %v2940 = vpop.f32.mrb[0].mxu0
      %v2941 = vadd.f32 0.0, %v2940
      %v2942 = vpop.f32.mrb[0].mxu0
      %v2943 = vadd.f32 0.0, %v2942
      %2944 = vdwg.mxu0
      %2945 = vmatprep.subr.mxu0 0.0
      %2946 = vmatpush1.msra.mxu0 %v2872
      %2947 = vmatprep.subr.mxu0 0.0
      %2948 = vmatpush1.msra.mxu0 0.0
      %2949 = vmatprep.subr.mxu0 0.0
      %2950 = vmatpush1.msra.mxu0 0.0
      %2951 = vmatprep.subr.mxu0 0.0
      %2952 = vmatpush1.msra.mxu0 0.0
      %2953 = vmatprep.subr.mxu0 0.0
      %2954 = vmatpush1.msra.mxu0 0.0
      %2955 = vmatprep.subr.mxu0 0.0
      %2956 = vmatpush1.msra.mxu0 0.0
      %2957 = vmatprep.subr.mxu0 0.0
      %2958 = vmatpush1.msra.mxu0 0.0
      %2959 = vmatprep.subr.mxu0 0.0
      %2960 = vmatpush1.msra.mxu0 0.0
      %2961 = vmatprep.subr.mxu0 0.0
      %2962 = vmatpush1.msra.mxu0 0.0
      %2963 = vmatprep.subr.mxu0 0.0
      %2964 = vmatpush1.msra.mxu0 0.0
      %2965 = vmatprep.subr.mxu0 0.0
      %2966 = vmatpush1.msra.mxu0 0.0
      %2967 = vmatprep.subr.mxu0 0.0
      %2968 = vmatpush1.msra.mxu0 0.0
      %2969 = vmatprep.subr.mxu0 0.0
      %2970 = vmatpush1.msra.mxu0 0.0
      %2971 = vmatprep.subr.mxu0 0.0
      %2972 = vmatpush1.msra.mxu0 0.0
      %2973 = vmatprep.subr.mxu0 0.0
      %2974 = vmatpush1.msra.mxu0 0.0
      %2975 = vmatprep.subr.mxu0 0.0
      %2976 = vmatpush1.msra.mxu0 0.0
      %2977 = vmatprep.subr.mxu0 0.0
      %2978 = vmatpush1.msra.mxu0 0.0
      %2979 = vmatprep.subr.mxu0 0.0
      %2980 = vmatpush1.msra.mxu0 0.0
      %2981 = vmatprep.subr.mxu0 0.0
      %2982 = vmatpush1.msra.mxu0 0.0
      %2983 = vmatprep.subr.mxu0 0.0
      %2984 = vmatpush1.msra.mxu0 0.0
      %2985 = vmatprep.subr.mxu0 0.0
      %2986 = vmatpush1.msra.mxu0 0.0
      %2987 = vmatprep.subr.mxu0 0.0
      %2988 = vmatpush1.msra.mxu0 0.0
      %2989 = vmatprep.subr.mxu0 0.0
      %2990 = vmatpush1.msra.mxu0 0.0
      %2991 = vmatprep.subr.mxu0 0.0
      %2992 = vmatpush1.msra.mxu0 0.0
      %2993 = vmatprep.subr.mxu0 0.0
      %2994 = vmatpush1.msra.mxu0 0.0
      %2995 = vmatprep.subr.mxu0 0.0
      %2996 = vmatpush1.msra.mxu0 0.0
      %2997 = vmatprep.subr.mxu0 0.0
      %2998 = vmatpush1.msra.mxu0 0.0
      %2999 = vmatprep.subr.mxu0 0.0
      %3000 = vmatpush1.msra.mxu0 0.0
      %3001 = vmatprep.subr.mxu0 0.0
      %3002 = vmatpush1.msra.mxu0 0.0
      %3003 = vmatprep.subr.mxu0 0.0
      %3004 = vmatpush1.msra.mxu0 0.0
      %3005 = vmatprep.subr.mxu0 0.0
      %3006 = vmatpush1.msra.mxu0 0.0
      %3007 = vmatprep.subr.mxu0 0.0
      %3008 = vmatpush1.msra.mxu0 0.0
      %3009 = vmatprep.mubr.f32.mxu0 0.0
      %3010 = vmatmul.mubr.f32.gmra.mrb[0].mxu0 %v2866
      %v3011 = vpop.f32.mrb[0].mxu0
      %v3012 = vadd.f32 0.0, %v3011
      %v3013 = vpop.f32.mrb[0].mxu0
      %3014 = vdwg.mxu0
      %v3015 = vadd.f32 %v2849, %v2941
      %v3016 = vadd.f32 %v2850, %v2943
      %v3017 = vadd.f32 %v2851, %v3012
      %s3018 = scalar_lea.vmem %s6, 48
      %v3019 = vld [vmem:[%s3018] sm:$0xff]
      %3020 = vrot.lane.b32.xlu0 %v360, 92
      %v3021 = vpop.permute.xlu0 %3020
      %3022 = vrot.lane.b32.xlu0 %v371, 92
      %v3023 = vpop.permute.xlu0 %3022
      %3024 = vrot.lane.b32.xlu0 %v361, 92
      %v3025 = vpop.permute.xlu0 %3024
      %3026 = vrot.lane.b32.xlu0 %v372, 92
      %v3027 = vpop.permute.xlu0 %3026
      %v3028 = vsel %vm1548, %v3021, %v3023
      %v3029 = vsel %vm1548, %v3023, %v3025
      %v3030 = vsel %vm1548, %v3025, %v3027
      %v3032 = vsel %vm373, %v3019, 0
      %v3034 = vsel %vm377, %v3028, 0
      %v3036 = vsel %vm377, %v3029, 0
      %v3038 = vsel %vm377, %v3030, 0
      %3040 = vmatprep.subr.mxu0 %v3036
      %3041 = vmatpush1.msra.mxu0 %v3034
      %3042 = vmatprep.subr.mxu0 0.0
      %3043 = vmatpush1.msra.mxu0 0.0
      %3044 = vmatprep.subr.mxu0 0.0
      %3045 = vmatpush1.msra.mxu0 0.0
      %3046 = vmatprep.subr.mxu0 0.0
      %3047 = vmatpush1.msra.mxu0 0.0
      %3048 = vmatprep.subr.mxu0 0.0
      %3049 = vmatpush1.msra.mxu0 0.0
      %3050 = vmatprep.subr.mxu0 0.0
      %3051 = vmatpush1.msra.mxu0 0.0
      %3052 = vmatprep.subr.mxu0 0.0
      %3053 = vmatpush1.msra.mxu0 0.0
      %3054 = vmatprep.subr.mxu0 0.0
      %3055 = vmatpush1.msra.mxu0 0.0
      %3056 = vmatprep.subr.mxu0 0.0
      %3057 = vmatpush1.msra.mxu0 0.0
      %3058 = vmatprep.subr.mxu0 0.0
      %3059 = vmatpush1.msra.mxu0 0.0
      %3060 = vmatprep.subr.mxu0 0.0
      %3061 = vmatpush1.msra.mxu0 0.0
      %3062 = vmatprep.subr.mxu0 0.0
      %3063 = vmatpush1.msra.mxu0 0.0
      %3064 = vmatprep.subr.mxu0 0.0
      %3065 = vmatpush1.msra.mxu0 0.0
      %3066 = vmatprep.subr.mxu0 0.0
      %3067 = vmatpush1.msra.mxu0 0.0
      %3068 = vmatprep.subr.mxu0 0.0
      %3069 = vmatpush1.msra.mxu0 0.0
      %3070 = vmatprep.subr.mxu0 0.0
      %3071 = vmatpush1.msra.mxu0 0.0
      %3072 = vmatprep.subr.mxu0 0.0
      %3073 = vmatpush1.msra.mxu0 0.0
      %3074 = vmatprep.subr.mxu0 0.0
      %3075 = vmatpush1.msra.mxu0 0.0
      %3076 = vmatprep.subr.mxu0 0.0
      %3077 = vmatpush1.msra.mxu0 0.0
      %3078 = vmatprep.subr.mxu0 0.0
      %3079 = vmatpush1.msra.mxu0 0.0
      %3080 = vmatprep.subr.mxu0 0.0
      %3081 = vmatpush1.msra.mxu0 0.0
      %3082 = vmatprep.subr.mxu0 0.0
      %3083 = vmatpush1.msra.mxu0 0.0
      %3084 = vmatprep.subr.mxu0 0.0
      %3085 = vmatpush1.msra.mxu0 0.0
      %3086 = vmatprep.subr.mxu0 0.0
      %3087 = vmatpush1.msra.mxu0 0.0
      %3088 = vmatprep.subr.mxu0 0.0
      %3089 = vmatpush1.msra.mxu0 0.0
      %3090 = vmatprep.subr.mxu0 0.0
      %3091 = vmatpush1.msra.mxu0 0.0
      %3092 = vmatprep.subr.mxu0 0.0
      %3093 = vmatpush1.msra.mxu0 0.0
      %3094 = vmatprep.subr.mxu0 0.0
      %3095 = vmatpush1.msra.mxu0 0.0
      %3096 = vmatprep.subr.mxu0 0.0
      %3097 = vmatpush1.msra.mxu0 0.0
      %3098 = vmatprep.subr.mxu0 0.0
      %3099 = vmatpush1.msra.mxu0 0.0
      %3100 = vmatprep.subr.mxu0 0.0
      %3101 = vmatpush1.msra.mxu0 0.0
      %3102 = vmatprep.subr.mxu0 0.0
      %3103 = vmatpush1.msra.mxu0 0.0
      %3104 = vmatprep.mubr.f32.mxu0 0.0
      %3105 = vmatmul.mubr.f32.gmra.mrb[0].mxu0 %v3032
      %v3106 = vpop.f32.mrb[0].mxu0
      %v3107 = vadd.f32 0.0, %v3106
      %v3108 = vpop.f32.mrb[0].mxu0
      %v3109 = vadd.f32 0.0, %v3108
      %3110 = vdwg.mxu0
      %3111 = vmatprep.subr.mxu0 0.0
      %3112 = vmatpush1.msra.mxu0 %v3038
      %3113 = vmatprep.subr.mxu0 0.0
      %3114 = vmatpush1.msra.mxu0 0.0
      %3115 = vmatprep.subr.mxu0 0.0
      %3116 = vmatpush1.msra.mxu0 0.0
      %3117 = vmatprep.subr.mxu0 0.0
      %3118 = vmatpush1.msra.mxu0 0.0
      %3119 = vmatprep.subr.mxu0 0.0
      %3120 = vmatpush1.msra.mxu0 0.0
      %3121 = vmatprep.subr.mxu0 0.0
      %3122 = vmatpush1.msra.mxu0 0.0
      %3123 = vmatprep.subr.mxu0 0.0
      %3124 = vmatpush1.msra.mxu0 0.0
      %3125 = vmatprep.subr.mxu0 0.0
      %3126 = vmatpush1.msra.mxu0 0.0
      %3127 = vmatprep.subr.mxu0 0.0
      %3128 = vmatpush1.msra.mxu0 0.0
      %3129 = vmatprep.subr.mxu0 0.0
      %3130 = vmatpush1.msra.mxu0 0.0
      %3131 = vmatprep.subr.mxu0 0.0
      %3132 = vmatpush1.msra.mxu0 0.0
      %3133 = vmatprep.subr.mxu0 0.0
      %3134 = vmatpush1.msra.mxu0 0.0
      %3135 = vmatprep.subr.mxu0 0.0
      %3136 = vmatpush1.msra.mxu0 0.0
      %3137 = vmatprep.subr.mxu0 0.0
      %3138 = vmatpush1.msra.mxu0 0.0
      %3139 = vmatprep.subr.mxu0 0.0
      %3140 = vmatpush1.msra.mxu0 0.0
      %3141 = vmatprep.subr.mxu0 0.0
      %3142 = vmatpush1.msra.mxu0 0.0
      %3143 = vmatprep.subr.mxu0 0.0
      %3144 = vmatpush1.msra.mxu0 0.0
      %3145 = vmatprep.subr.mxu0 0.0
      %3146 = vmatpush1.msra.mxu0 0.0
      %3147 = vmatprep.subr.mxu0 0.0
      %3148 = vmatpush1.msra.mxu0 0.0
      %3149 = vmatprep.subr.mxu0 0.0
      %3150 = vmatpush1.msra.mxu0 0.0
      %3151 = vmatprep.subr.mxu0 0.0
      %3152 = vmatpush1.msra.mxu0 0.0
      %3153 = vmatprep.subr.mxu0 0.0
      %3154 = vmatpush1.msra.mxu0 0.0
      %3155 = vmatprep.subr.mxu0 0.0
      %3156 = vmatpush1.msra.mxu0 0.0
      %3157 = vmatprep.subr.mxu0 0.0
      %3158 = vmatpush1.msra.mxu0 0.0
      %3159 = vmatprep.subr.mxu0 0.0
      %3160 = vmatpush1.msra.mxu0 0.0
      %3161 = vmatprep.subr.mxu0 0.0
      %3162 = vmatpush1.msra.mxu0 0.0
      %3163 = vmatprep.subr.mxu0 0.0
      %3164 = vmatpush1.msra.mxu0 0.0
      %3165 = vmatprep.subr.mxu0 0.0
      %3166 = vmatpush1.msra.mxu0 0.0
      %3167 = vmatprep.subr.mxu0 0.0
      %3168 = vmatpush1.msra.mxu0 0.0
      %3169 = vmatprep.subr.mxu0 0.0
      %3170 = vmatpush1.msra.mxu0 0.0
      %3171 = vmatprep.subr.mxu0 0.0
      %3172 = vmatpush1.msra.mxu0 0.0
      %3173 = vmatprep.subr.mxu0 0.0
      %3174 = vmatpush1.msra.mxu0 0.0
      %3175 = vmatprep.mubr.f32.mxu0 0.0
      %3176 = vmatmul.mubr.f32.gmra.mrb[0].mxu0 %v3032
      %v3177 = vpop.f32.mrb[0].mxu0
      %v3178 = vadd.f32 0.0, %v3177
      %v3179 = vpop.f32.mrb[0].mxu0
      %3180 = vdwg.mxu0
      %v3181 = vadd.f32 %v3015, %v3107
      %v3182 = vadd.f32 %v3016, %v3109
      %v3183 = vadd.f32 %v3017, %v3178
      %s3184 = scalar_lea.vmem %s6, 56
      %v3185 = vld [vmem:[%s3184] sm:$0xff]
      %3186 = vrot.lane.b32.xlu0 %v360, 91
      %v3187 = vpop.permute.xlu0 %3186
      %3188 = vrot.lane.b32.xlu0 %v371, 91
      %v3189 = vpop.permute.xlu0 %3188
      %3190 = vrot.lane.b32.xlu0 %v361, 91
      %v3191 = vpop.permute.xlu0 %3190
      %3192 = vrot.lane.b32.xlu0 %v372, 91
      %v3193 = vpop.permute.xlu0 %3192
      %v3194 = vsel %vm1712, %v3187, %v3189
      %v3195 = vsel %vm1712, %v3189, %v3191
      %v3196 = vsel %vm1712, %v3191, %v3193
      %v3198 = vsel %vm373, %v3185, 0
      %v3200 = vsel %vm377, %v3194, 0
      %v3202 = vsel %vm377, %v3195, 0
      %v3204 = vsel %vm377, %v3196, 0
      %3206 = vmatprep.subr.mxu0 %v3202
      %3207 = vmatpush1.msra.mxu0 %v3200
      %3208 = vmatprep.subr.mxu0 0.0
      %3209 = vmatpush1.msra.mxu0 0.0
      %3210 = vmatprep.subr.mxu0 0.0
      %3211 = vmatpush1.msra.mxu0 0.0
      %3212 = vmatprep.subr.mxu0 0.0
      %3213 = vmatpush1.msra.mxu0 0.0
      %3214 = vmatprep.subr.mxu0 0.0
      %3215 = vmatpush1.msra.mxu0 0.0
      %3216 = vmatprep.subr.mxu0 0.0
      %3217 = vmatpush1.msra.mxu0 0.0
      %3218 = vmatprep.subr.mxu0 0.0
      %3219 = vmatpush1.msra.mxu0 0.0
      %3220 = vmatprep.subr.mxu0 0.0
      %3221 = vmatpush1.msra.mxu0 0.0
      %3222 = vmatprep.subr.mxu0 0.0
      %3223 = vmatpush1.msra.mxu0 0.0
      %3224 = vmatprep.subr.mxu0 0.0
      %3225 = vmatpush1.msra.mxu0 0.0
      %3226 = vmatprep.subr.mxu0 0.0
      %3227 = vmatpush1.msra.mxu0 0.0
      %3228 = vmatprep.subr.mxu0 0.0
      %3229 = vmatpush1.msra.mxu0 0.0
      %3230 = vmatprep.subr.mxu0 0.0
      %3231 = vmatpush1.msra.mxu0 0.0
      %3232 = vmatprep.subr.mxu0 0.0
      %3233 = vmatpush1.msra.mxu0 0.0
      %3234 = vmatprep.subr.mxu0 0.0
      %3235 = vmatpush1.msra.mxu0 0.0
      %3236 = vmatprep.subr.mxu0 0.0
      %3237 = vmatpush1.msra.mxu0 0.0
      %3238 = vmatprep.subr.mxu0 0.0
      %3239 = vmatpush1.msra.mxu0 0.0
      %3240 = vmatprep.subr.mxu0 0.0
      %3241 = vmatpush1.msra.mxu0 0.0
      %3242 = vmatprep.subr.mxu0 0.0
      %3243 = vmatpush1.msra.mxu0 0.0
      %3244 = vmatprep.subr.mxu0 0.0
      %3245 = vmatpush1.msra.mxu0 0.0
      %3246 = vmatprep.subr.mxu0 0.0
      %3247 = vmatpush1.msra.mxu0 0.0
      %3248 = vmatprep.subr.mxu0 0.0
      %3249 = vmatpush1.msra.mxu0 0.0
      %3250 = vmatprep.subr.mxu0 0.0
      %3251 = vmatpush1.msra.mxu0 0.0
      %3252 = vmatprep.subr.mxu0 0.0
      %3253 = vmatpush1.msra.mxu0 0.0
      %3254 = vmatprep.subr.mxu0 0.0
      %3255 = vmatpush1.msra.mxu0 0.0
      %3256 = vmatprep.subr.mxu0 0.0
      %3257 = vmatpush1.msra.mxu0 0.0
      %3258 = vmatprep.subr.mxu0 0.0
      %3259 = vmatpush1.msra.mxu0 0.0
      %3260 = vmatprep.subr.mxu0 0.0
      %3261 = vmatpush1.msra.mxu0 0.0
      %3262 = vmatprep.subr.mxu0 0.0
      %3263 = vmatpush1.msra.mxu0 0.0
      %3264 = vmatprep.subr.mxu0 0.0
      %3265 = vmatpush1.msra.mxu0 0.0
      %3266 = vmatprep.subr.mxu0 0.0
      %3267 = vmatpush1.msra.mxu0 0.0
      %3268 = vmatprep.subr.mxu0 0.0
      %3269 = vmatpush1.msra.mxu0 0.0
      %3270 = vmatprep.mubr.f32.mxu0 0.0
      %3271 = vmatmul.mubr.f32.gmra.mrb[0].mxu0 %v3198
      %v3272 = vpop.f32.mrb[0].mxu0
      %v3273 = vadd.f32 0.0, %v3272
      %v3274 = vpop.f32.mrb[0].mxu0
      %v3275 = vadd.f32 0.0, %v3274
      %3276 = vdwg.mxu0
      %3277 = vmatprep.subr.mxu0 0.0
      %3278 = vmatpush1.msra.mxu0 %v3204
      %3279 = vmatprep.subr.mxu0 0.0
      %3280 = vmatpush1.msra.mxu0 0.0
      %3281 = vmatprep.subr.mxu0 0.0
      %3282 = vmatpush1.msra.mxu0 0.0
      %3283 = vmatprep.subr.mxu0 0.0
      %3284 = vmatpush1.msra.mxu0 0.0
      %3285 = vmatprep.subr.mxu0 0.0
      %3286 = vmatpush1.msra.mxu0 0.0
      %3287 = vmatprep.subr.mxu0 0.0
      %3288 = vmatpush1.msra.mxu0 0.0
      %3289 = vmatprep.subr.mxu0 0.0
      %3290 = vmatpush1.msra.mxu0 0.0
      %3291 = vmatprep.subr.mxu0 0.0
      %3292 = vmatpush1.msra.mxu0 0.0
      %3293 = vmatprep.subr.mxu0 0.0
      %3294 = vmatpush1.msra.mxu0 0.0
      %3295 = vmatprep.subr.mxu0 0.0
      %3296 = vmatpush1.msra.mxu0 0.0
      %3297 = vmatprep.subr.mxu0 0.0
      %3298 = vmatpush1.msra.mxu0 0.0
      %3299 = vmatprep.subr.mxu0 0.0
      %3300 = vmatpush1.msra.mxu0 0.0
      %3301 = vmatprep.subr.mxu0 0.0
      %3302 = vmatpush1.msra.mxu0 0.0
      %3303 = vmatprep.subr.mxu0 0.0
      %3304 = vmatpush1.msra.mxu0 0.0
      %3305 = vmatprep.subr.mxu0 0.0
      %3306 = vmatpush1.msra.mxu0 0.0
      %3307 = vmatprep.subr.mxu0 0.0
      %3308 = vmatpush1.msra.mxu0 0.0
      %3309 = vmatprep.subr.mxu0 0.0
      %3310 = vmatpush1.msra.mxu0 0.0
      %3311 = vmatprep.subr.mxu0 0.0
      %3312 = vmatpush1.msra.mxu0 0.0
      %3313 = vmatprep.subr.mxu0 0.0
      %3314 = vmatpush1.msra.mxu0 0.0
      %3315 = vmatprep.subr.mxu0 0.0
      %3316 = vmatpush1.msra.mxu0 0.0
      %3317 = vmatprep.subr.mxu0 0.0
      %3318 = vmatpush1.msra.mxu0 0.0
      %3319 = vmatprep.subr.mxu0 0.0
      %3320 = vmatpush1.msra.mxu0 0.0
      %3321 = vmatprep.subr.mxu0 0.0
      %3322 = vmatpush1.msra.mxu0 0.0
      %3323 = vmatprep.subr.mxu0 0.0
      %3324 = vmatpush1.msra.mxu0 0.0
      %3325 = vmatprep.subr.mxu0 0.0
      %3326 = vmatpush1.msra.mxu0 0.0
      %3327 = vmatprep.subr.mxu0 0.0
      %3328 = vmatpush1.msra.mxu0 0.0
      %3329 = vmatprep.subr.mxu0 0.0
      %3330 = vmatpush1.msra.mxu0 0.0
      %3331 = vmatprep.subr.mxu0 0.0
      %3332 = vmatpush1.msra.mxu0 0.0
      %3333 = vmatprep.subr.mxu0 0.0
      %3334 = vmatpush1.msra.mxu0 0.0
      %3335 = vmatprep.subr.mxu0 0.0
      %3336 = vmatpush1.msra.mxu0 0.0
      %3337 = vmatprep.subr.mxu0 0.0
      %3338 = vmatpush1.msra.mxu0 0.0
      %3339 = vmatprep.subr.mxu0 0.0
      %3340 = vmatpush1.msra.mxu0 0.0
      %3341 = vmatprep.mubr.f32.mxu0 0.0
      %3342 = vmatmul.mubr.f32.gmra.mrb[0].mxu0 %v3198
      %v3343 = vpop.f32.mrb[0].mxu0
      %v3344 = vadd.f32 0.0, %v3343
      %v3345 = vpop.f32.mrb[0].mxu0
      %3346 = vdwg.mxu0
      %v3347 = vadd.f32 %v3181, %v3273
      %v3348 = vadd.f32 %v3182, %v3275
      %v3349 = vadd.f32 %v3183, %v3344
      %s3350 = scalar_lea.vmem %s6, 64
      %v3351 = vld [vmem:[%s3350] sm:$0xff]
      %3352 = vrot.lane.b32.xlu0 %v360, 90
      %v3353 = vpop.permute.xlu0 %3352
      %3354 = vrot.lane.b32.xlu0 %v371, 90
      %v3355 = vpop.permute.xlu0 %3354
      %3356 = vrot.lane.b32.xlu0 %v361, 90
      %v3357 = vpop.permute.xlu0 %3356
      %3358 = vrot.lane.b32.xlu0 %v372, 90
      %v3359 = vpop.permute.xlu0 %3358
      %v3360 = vsel %vm1876, %v3353, %v3355
      %v3361 = vsel %vm1876, %v3355, %v3357
      %v3362 = vsel %vm1876, %v3357, %v3359
      %v3364 = vsel %vm373, %v3351, 0
      %v3366 = vsel %vm377, %v3360, 0
      %v3368 = vsel %vm377, %v3361, 0
      %v3370 = vsel %vm377, %v3362, 0
      %3372 = vmatprep.subr.mxu0 %v3368
      %3373 = vmatpush1.msra.mxu0 %v3366
      %3374 = vmatprep.subr.mxu0 0.0
      %3375 = vmatpush1.msra.mxu0 0.0
      %3376 = vmatprep.subr.mxu0 0.0
      %3377 = vmatpush1.msra.mxu0 0.0
      %3378 = vmatprep.subr.mxu0 0.0
      %3379 = vmatpush1.msra.mxu0 0.0
      %3380 = vmatprep.subr.mxu0 0.0
      %3381 = vmatpush1.msra.mxu0 0.0
      %3382 = vmatprep.subr.mxu0 0.0
      %3383 = vmatpush1.msra.mxu0 0.0
      %3384 = vmatprep.subr.mxu0 0.0
      %3385 = vmatpush1.msra.mxu0 0.0
      %3386 = vmatprep.subr.mxu0 0.0
      %3387 = vmatpush1.msra.mxu0 0.0
      %3388 = vmatprep.subr.mxu0 0.0
      %3389 = vmatpush1.msra.mxu0 0.0
      %3390 = vmatprep.subr.mxu0 0.0
      %3391 = vmatpush1.msra.mxu0 0.0
      %3392 = vmatprep.subr.mxu0 0.0
      %3393 = vmatpush1.msra.mxu0 0.0
      %3394 = vmatprep.subr.mxu0 0.0
      %3395 = vmatpush1.msra.mxu0 0.0
      %3396 = vmatprep.subr.mxu0 0.0
      %3397 = vmatpush1.msra.mxu0 0.0
      %3398 = vmatprep.subr.mxu0 0.0
      %3399 = vmatpush1.msra.mxu0 0.0
      %3400 = vmatprep.subr.mxu0 0.0
      %3401 = vmatpush1.msra.mxu0 0.0
      %3402 = vmatprep.subr.mxu0 0.0
      %3403 = vmatpush1.msra.mxu0 0.0
      %3404 = vmatprep.subr.mxu0 0.0
      %3405 = vmatpush1.msra.mxu0 0.0
      %3406 = vmatprep.subr.mxu0 0.0
      %3407 = vmatpush1.msra.mxu0 0.0
      %3408 = vmatprep.subr.mxu0 0.0
      %3409 = vmatpush1.msra.mxu0 0.0
      %3410 = vmatprep.subr.mxu0 0.0
      %3411 = vmatpush1.msra.mxu0 0.0
      %3412 = vmatprep.subr.mxu0 0.0
      %3413 = vmatpush1.msra.mxu0 0.0
      %3414 = vmatprep.subr.mxu0 0.0
      %3415 = vmatpush1.msra.mxu0 0.0
      %3416 = vmatprep.subr.mxu0 0.0
      %3417 = vmatpush1.msra.mxu0 0.0
      %3418 = vmatprep.subr.mxu0 0.0
      %3419 = vmatpush1.msra.mxu0 0.0
      %3420 = vmatprep.subr.mxu0 0.0
      %3421 = vmatpush1.msra.mxu0 0.0
      %3422 = vmatprep.subr.mxu0 0.0
      %3423 = vmatpush1.msra.mxu0 0.0
      %3424 = vmatprep.subr.mxu0 0.0
      %3425 = vmatpush1.msra.mxu0 0.0
      %3426 = vmatprep.subr.mxu0 0.0
      %3427 = vmatpush1.msra.mxu0 0.0
      %3428 = vmatprep.subr.mxu0 0.0
      %3429 = vmatpush1.msra.mxu0 0.0
      %3430 = vmatprep.subr.mxu0 0.0
      %3431 = vmatpush1.msra.mxu0 0.0
      %3432 = vmatprep.subr.mxu0 0.0
      %3433 = vmatpush1.msra.mxu0 0.0
      %3434 = vmatprep.subr.mxu0 0.0
      %3435 = vmatpush1.msra.mxu0 0.0
      %3436 = vmatprep.mubr.f32.mxu0 0.0
      %3437 = vmatmul.mubr.f32.gmra.mrb[0].mxu0 %v3364
      %v3438 = vpop.f32.mrb[0].mxu0
      %v3439 = vadd.f32 0.0, %v3438
      %v3440 = vpop.f32.mrb[0].mxu0
      %v3441 = vadd.f32 0.0, %v3440
      %3442 = vdwg.mxu0
      %3443 = vmatprep.subr.mxu0 0.0
      %3444 = vmatpush1.msra.mxu0 %v3370
      %3445 = vmatprep.subr.mxu0 0.0
      %3446 = vmatpush1.msra.mxu0 0.0
      %3447 = vmatprep.subr.mxu0 0.0
      %3448 = vmatpush1.msra.mxu0 0.0
      %3449 = vmatprep.subr.mxu0 0.0
      %3450 = vmatpush1.msra.mxu0 0.0
      %3451 = vmatprep.subr.mxu0 0.0
      %3452 = vmatpush1.msra.mxu0 0.0
      %3453 = vmatprep.subr.mxu0 0.0
      %3454 = vmatpush1.msra.mxu0 0.0
      %3455 = vmatprep.subr.mxu0 0.0
      %3456 = vmatpush1.msra.mxu0 0.0
      %3457 = vmatprep.subr.mxu0 0.0
      %3458 = vmatpush1.msra.mxu0 0.0
      %3459 = vmatprep.subr.mxu0 0.0
      %3460 = vmatpush1.msra.mxu0 0.0
      %3461 = vmatprep.subr.mxu0 0.0
      %3462 = vmatpush1.msra.mxu0 0.0
      %3463 = vmatprep.subr.mxu0 0.0
      %3464 = vmatpush1.msra.mxu0 0.0
      %3465 = vmatprep.subr.mxu0 0.0
      %3466 = vmatpush1.msra.mxu0 0.0
      %3467 = vmatprep.subr.mxu0 0.0
      %3468 = vmatpush1.msra.mxu0 0.0
      %3469 = vmatprep.subr.mxu0 0.0
      %3470 = vmatpush1.msra.mxu0 0.0
      %3471 = vmatprep.subr.mxu0 0.0
      %3472 = vmatpush1.msra.mxu0 0.0
      %3473 = vmatprep.subr.mxu0 0.0
      %3474 = vmatpush1.msra.mxu0 0.0
      %3475 = vmatprep.subr.mxu0 0.0
      %3476 = vmatpush1.msra.mxu0 0.0
      %3477 = vmatprep.subr.mxu0 0.0
      %3478 = vmatpush1.msra.mxu0 0.0
      %3479 = vmatprep.subr.mxu0 0.0
      %3480 = vmatpush1.msra.mxu0 0.0
      %3481 = vmatprep.subr.mxu0 0.0
      %3482 = vmatpush1.msra.mxu0 0.0
      %3483 = vmatprep.subr.mxu0 0.0
      %3484 = vmatpush1.msra.mxu0 0.0
      %3485 = vmatprep.subr.mxu0 0.0
      %3486 = vmatpush1.msra.mxu0 0.0
      %3487 = vmatprep.subr.mxu0 0.0
      %3488 = vmatpush1.msra.mxu0 0.0
      %3489 = vmatprep.subr.mxu0 0.0
      %3490 = vmatpush1.msra.mxu0 0.0
      %3491 = vmatprep.subr.mxu0 0.0
      %3492 = vmatpush1.msra.mxu0 0.0
      %3493 = vmatprep.subr.mxu0 0.0
      %3494 = vmatpush1.msra.mxu0 0.0
      %3495 = vmatprep.subr.mxu0 0.0
      %3496 = vmatpush1.msra.mxu0 0.0
      %3497 = vmatprep.subr.mxu0 0.0
      %3498 = vmatpush1.msra.mxu0 0.0
      %3499 = vmatprep.subr.mxu0 0.0
      %3500 = vmatpush1.msra.mxu0 0.0
      %3501 = vmatprep.subr.mxu0 0.0
      %3502 = vmatpush1.msra.mxu0 0.0
      %3503 = vmatprep.subr.mxu0 0.0
      %3504 = vmatpush1.msra.mxu0 0.0
      %3505 = vmatprep.subr.mxu0 0.0
      %3506 = vmatpush1.msra.mxu0 0.0
      %3507 = vmatprep.mubr.f32.mxu0 0.0
      %3508 = vmatmul.mubr.f32.gmra.mrb[0].mxu0 %v3364
      %v3509 = vpop.f32.mrb[0].mxu0
      %v3510 = vadd.f32 0.0, %v3509
      %v3511 = vpop.f32.mrb[0].mxu0
      %3512 = vdwg.mxu0
      %v3513 = vadd.f32 %v3347, %v3439
      %v3514 = vadd.f32 %v3348, %v3441
      %v3515 = vadd.f32 %v3349, %v3510
      %v3516 = vmax.f32 %v3513, 0.0
      %v3517 = vmax.f32 %v3514, 0.0
      %v3518 = vmax.f32 %v3515, 0.0
      %v3519 = vld [vmem:[%s8] sm:$0xff]
      %v3520 = vld [vmem:[%s9] sm:$0xff]
      %3522 = vset.pattern.permute.xlu0 0
      %3523 = vperm.xlu0 %3522, %v3520
      %v3524 = vpop.permute.xlu0 %3523
      %vm3526 = vcmask 130048
      %v3528 = vsel %vm3526, %v3519, 0
      %3530 = vmatprep.subr.mxu0 %v2031
      %3531 = vmatpush1.msra.mxu0 %v2030
      %3532 = vmatprep.subr.mxu0 %v3517
      %3533 = vmatpush1.msra.mxu0 %v3516
      %3534 = vmatprep.subr.mxu0 0.0
      %3535 = vmatpush1.msra.mxu0 0.0
      %3536 = vmatprep.subr.mxu0 0.0
      %3537 = vmatpush1.msra.mxu0 0.0
      %3538 = vmatprep.subr.mxu0 0.0
      %3539 = vmatpush1.msra.mxu0 0.0
      %3540 = vmatprep.subr.mxu0 0.0
      %3541 = vmatpush1.msra.mxu0 0.0
      %3542 = vmatprep.subr.mxu0 0.0
      %3543 = vmatpush1.msra.mxu0 0.0
      %3544 = vmatprep.subr.mxu0 0.0
      %3545 = vmatpush1.msra.mxu0 0.0
      %3546 = vmatprep.subr.mxu0 0.0
      %3547 = vmatpush1.msra.mxu0 0.0
      %3548 = vmatprep.subr.mxu0 0.0
      %3549 = vmatpush1.msra.mxu0 0.0
      %3550 = vmatprep.subr.mxu0 0.0
      %3551 = vmatpush1.msra.mxu0 0.0
      %3552 = vmatprep.subr.mxu0 0.0
      %3553 = vmatpush1.msra.mxu0 0.0
      %3554 = vmatprep.subr.mxu0 0.0
      %3555 = vmatpush1.msra.mxu0 0.0
      %3556 = vmatprep.subr.mxu0 0.0
      %3557 = vmatpush1.msra.mxu0 0.0
      %3558 = vmatprep.subr.mxu0 0.0
      %3559 = vmatpush1.msra.mxu0 0.0
      %3560 = vmatprep.subr.mxu0 0.0
      %3561 = vmatpush1.msra.mxu0 0.0
      %3562 = vmatprep.subr.mxu0 0.0
      %3563 = vmatpush1.msra.mxu0 0.0
      %3564 = vmatprep.subr.mxu0 0.0
      %3565 = vmatpush1.msra.mxu0 0.0
      %3566 = vmatprep.subr.mxu0 0.0
      %3567 = vmatpush1.msra.mxu0 0.0
      %3568 = vmatprep.subr.mxu0 0.0
      %3569 = vmatpush1.msra.mxu0 0.0
      %3570 = vmatprep.subr.mxu0 0.0
      %3571 = vmatpush1.msra.mxu0 0.0
      %3572 = vmatprep.subr.mxu0 0.0
      %3573 = vmatpush1.msra.mxu0 0.0
      %3574 = vmatprep.subr.mxu0 0.0
      %3575 = vmatpush1.msra.mxu0 0.0
      %3576 = vmatprep.subr.mxu0 0.0
      %3577 = vmatpush1.msra.mxu0 0.0
      %3578 = vmatprep.subr.mxu0 0.0
      %3579 = vmatpush1.msra.mxu0 0.0
      %3580 = vmatprep.subr.mxu0 0.0
      %3581 = vmatpush1.msra.mxu0 0.0
      %3582 = vmatprep.subr.mxu0 0.0
      %3583 = vmatpush1.msra.mxu0 0.0
      %3584 = vmatprep.subr.mxu0 0.0
      %3585 = vmatpush1.msra.mxu0 0.0
      %3586 = vmatprep.subr.mxu0 0.0
      %3587 = vmatpush1.msra.mxu0 0.0
      %3588 = vmatprep.subr.mxu0 0.0
      %3589 = vmatpush1.msra.mxu0 0.0
      %3590 = vmatprep.subr.mxu0 0.0
      %3591 = vmatpush1.msra.mxu0 0.0
      %3592 = vmatprep.subr.mxu0 0.0
      %3593 = vmatpush1.msra.mxu0 0.0
      %3594 = vmatprep.mubr.f32.mxu0 0.0
      %3595 = vmatmul.mubr.f32.gmra.mrb[0].mxu0 %v3528
      %v3596 = vpop.f32.mrb[0].mxu0
      %v3597 = vadd.f32 %v3524, %v3596
      %v3598 = vpop.f32.mrb[0].mxu0
      %v3599 = vadd.f32 %v3524, %v3598
      %3600 = vdwg.mxu0
      %3601 = vmatprep.subr.mxu0 0.0
      %3602 = vmatpush1.msra.mxu0 %v2032
      %3603 = vmatprep.subr.mxu0 0.0
      %3604 = vmatpush1.msra.mxu0 %v3518
      %3605 = vmatprep.subr.mxu0 0.0
      %3606 = vmatpush1.msra.mxu0 0.0
      %3607 = vmatprep.subr.mxu0 0.0
      %3608 = vmatpush1.msra.mxu0 0.0
      %3609 = vmatprep.subr.mxu0 0.0
      %3610 = vmatpush1.msra.mxu0 0.0
      %3611 = vmatprep.subr.mxu0 0.0
      %3612 = vmatpush1.msra.mxu0 0.0
      %3613 = vmatprep.subr.mxu0 0.0
      %3614 = vmatpush1.msra.mxu0 0.0
      %3615 = vmatprep.subr.mxu0 0.0
      %3616 = vmatpush1.msra.mxu0 0.0
      %3617 = vmatprep.subr.mxu0 0.0
      %3618 = vmatpush1.msra.mxu0 0.0
      %3619 = vmatprep.subr.mxu0 0.0
      %3620 = vmatpush1.msra.mxu0 0.0
      %3621 = vmatprep.subr.mxu0 0.0
      %3622 = vmatpush1.msra.mxu0 0.0
      %3623 = vmatprep.subr.mxu0 0.0
      %3624 = vmatpush1.msra.mxu0 0.0
      %3625 = vmatprep.subr.mxu0 0.0
      %3626 = vmatpush1.msra.mxu0 0.0
      %3627 = vmatprep.subr.mxu0 0.0
      %3628 = vmatpush1.msra.mxu0 0.0
      %3629 = vmatprep.subr.mxu0 0.0
      %3630 = vmatpush1.msra.mxu0 0.0
      %3631 = vmatprep.subr.mxu0 0.0
      %3632 = vmatpush1.msra.mxu0 0.0
      %3633 = vmatprep.subr.mxu0 0.0
      %3634 = vmatpush1.msra.mxu0 0.0
      %3635 = vmatprep.subr.mxu0 0.0
      %3636 = vmatpush1.msra.mxu0 0.0
      %3637 = vmatprep.subr.mxu0 0.0
      %3638 = vmatpush1.msra.mxu0 0.0
      %3639 = vmatprep.subr.mxu0 0.0
      %3640 = vmatpush1.msra.mxu0 0.0
      %3641 = vmatprep.subr.mxu0 0.0
      %3642 = vmatpush1.msra.mxu0 0.0
      %3643 = vmatprep.subr.mxu0 0.0
      %3644 = vmatpush1.msra.mxu0 0.0
      %3645 = vmatprep.subr.mxu0 0.0
      %3646 = vmatpush1.msra.mxu0 0.0
      %3647 = vmatprep.subr.mxu0 0.0
      %3648 = vmatpush1.msra.mxu0 0.0
      %3649 = vmatprep.subr.mxu0 0.0
      %3650 = vmatpush1.msra.mxu0 0.0
      %3651 = vmatprep.subr.mxu0 0.0
      %3652 = vmatpush1.msra.mxu0 0.0
      %3653 = vmatprep.subr.mxu0 0.0
      %3654 = vmatpush1.msra.mxu0 0.0
      %3655 = vmatprep.subr.mxu0 0.0
      %3656 = vmatpush1.msra.mxu0 0.0
      %3657 = vmatprep.subr.mxu0 0.0
      %3658 = vmatpush1.msra.mxu0 0.0
      %3659 = vmatprep.subr.mxu0 0.0
      %3660 = vmatpush1.msra.mxu0 0.0
      %3661 = vmatprep.subr.mxu0 0.0
      %3662 = vmatpush1.msra.mxu0 0.0
      %3663 = vmatprep.subr.mxu0 0.0
      %3664 = vmatpush1.msra.mxu0 0.0
      %3665 = vmatprep.mubr.f32.mxu0 0.0
      %3666 = vmatmul.mubr.f32.gmra.mrb[0].mxu0 %v3528
      %v3667 = vpop.f32.mrb[0].mxu0
      %v3668 = vadd.f32 %v3524, %v3667
      %v3669 = vpop.f32.mrb[0].mxu0
      %3670 = vdwg.mxu0
      %v3671 = vmax.f32 %v3597, 0.0
      %v3672 = vmax.f32 %v3599, 0.0
      %v3673 = vmax.f32 %v3668, 0.0
      %3674 = vst [vmem:[%s359] sm:$0xff] %v3671
      %3675 = vst [vmem:[%s359 + $0x8] sm:$0xff] %v3672
      %3676 = vst [vmem:[%s359 + $0x10] sm:$0xff] %v3673
      %p3677 = scmp.lt.s32.totalorder %s21, 1
      %s3678 = scalar_select %p3677, %s21, 1
      %s3679 = smul.addr %s3678, 3
      %s3680 = smul.addr %s3679, 8
      %s3681 = scalar_lea.vmem %s10, %s3680
      // Predicated region
      $region61: #{resblock_forward.1} parent=59 // pred_check
        %p3682 = pneg %p254
      $region62: #{resblock_forward.1} parent=59 // pred_check_branch
        %3684 = sbr.rel (%p3682) target = $region64
      $region63: #{resblock_forward.1} parent=59 // pred_region
        _
      $region64: #{resblock_forward.1} parent=59 // pred_fallthru
        _
    $region60: #{resblock_forward.1} parent=5 // pred_fallthru
      _
    %p3685 = scmp.le.s32.totalorder 2, %s16
    // Predicated region
    $region65: #{resblock_forward.1} parent=5 // pred_check
      %p3686 = pneg %p3685
    $region66: #{resblock_forward.1} parent=5 // pred_check_branch
      %3688 = sbr.rel (%p3686) target = $region68
    $region67: #{resblock_forward.1} parent=5 // pred_region
      %s3689 = ssub.s32 %s16, 2
      // Predicated region
      $region69: #{resblock_forward.1} parent=67 // pred_check
        %p3690 = pneg %p260
      $region70: #{resblock_forward.1} parent=67 // pred_check_branch
        %3692 = sbr.rel (%p3690) target = $region72
      $region71: #{resblock_forward.1} parent=67 // pred_region
        %p3693 = scmp.lt.s32.totalorder %s22, 1
        %s3694 = scalar_select %p3693, %s22, 1
        %s3695 = smul.addr %s3694, 3
        %s3696 = smul.addr %s3695, 8
        %s3697 = scalar_lea.vmem %s10, %s3696
      $region72: #{resblock_forward.1} parent=67 // pred_fallthru
        _
    $region68: #{resblock_forward.1} parent=5 // pred_fallthru
      _
  $region6: #{resblock_forward.1} parent=0 // loop_footer
    %s20 = sadd.s32 1, %s16
  $region7: #{resblock_forward.1} parent=0 // loop_footer_branch
    %15 = sbr.rel target = $region3
  $region8: #{resblock_forward.1} parent=0 // loop_exit
    _

</llo_original>
